<compile_context>
chip_gen: v7x
topology: tpu7x:2x2x1
jax: 0.10.0
libtpu: 0.0.40
codegen_flags: <defaults>
</compile_context>

<pallas_src>
import functools

import jax
import jax.numpy as jnp
from jax import lax
from jax.experimental import pallas as pl
from jax.experimental.pallas import tpu as pltpu


# ---------------------------------------------------------------------------
# Generation-aware VMEM sizing
# ---------------------------------------------------------------------------
def _query_vmem_bytes():
    try:
        return int(pltpu.get_tpu_info().vmem_capacity_bytes)
    except Exception:
        return 64 * 1024 * 1024  # conservative fallback (v7x-like)


_VMEM_BYTES = _query_vmem_bytes()
_LARGE_VMEM = _VMEM_BYTES >= 100 * 1024 * 1024            # v5e / v6e (128 MiB)
_TILE_BUDGET = (48 if _LARGE_VMEM else 20) * 1024 * 1024   # working-set budget
_TILE_M_CANDIDATES = ((2048, 1024, 512, 256, 128, 64, 32, 16) if _LARGE_VMEM
                      else (512, 256, 128, 64, 32, 16))
_VMEM_LIMIT = (96 if _LARGE_VMEM else 32) * 1024 * 1024


def _cdiv(a, b):
    return (a + b - 1) // b


def _choose_tile_m(M, K, N, out_itemsize):
    """Largest M tile (multiple of 16, <= M) fitting the generation budget."""
    if M <= 16:
        return M                      # one block whose dims equal the array dims
    tile_m = 16
    for cand in _TILE_M_CANDIDATES:
        if cand > M:
            continue
        need = (2 * cand * K * 2              # double-buffered bf16 X tiles
                + 2 * K * N * 2               # resident bf16 weights (x2 safety)
                + 2 * N * 4 * 2               # resident f32 shift (x2 safety)
                + 2 * cand * N * out_itemsize)  # double-buffered output tiles
        if need <= _TILE_BUDGET:
            tile_m = cand
            break
    if not _LARGE_VMEM:
        # v7x: 2 TensorCores per chip -> keep >= 2 grid steps on big layers.
        while tile_m > 16 and _cdiv(M, tile_m) < 2:
            tile_m //= 2
    return tile_m


# ---------------------------------------------------------------------------
# Pallas kernel: fused  out = [relu]( (X_bf16 @ W_bf16) + shift )   (f32 acc)
# ---------------------------------------------------------------------------
def _fused_matmul_kernel(x_ref, w_ref, shift_ref, o_ref, *, apply_relu):
    acc = jnp.dot(x_ref[...], w_ref[...], preferred_element_type=jnp.float32)
    y = acc + shift_ref[...]
    if apply_relu:
        y = jnp.maximum(y, 0.0)
    o_ref[...] = y.astype(o_ref.dtype)


def fused_matmul(x_bf16, w_bf16, shift_f32, *, apply_relu, out_dtype):
    """x:(M,K) bf16, w:(K,N) bf16 (BN scale pre-folded), shift:(N,) f32.
    Returns (M, N) out_dtype = [relu](x @ w + shift).  No pad/slice glue:
    the partial trailing M block is masked by Pallas."""
    M, K = x_bf16.shape
    Kw, N = w_bf16.shape
    assert K == Kw
    out_itemsize = jnp.dtype(out_dtype).itemsize
    tile_m = _choose_tile_m(M, K, N, out_itemsize)
    grid_m = _cdiv(M, tile_m)
    shift2d = shift_f32.reshape(1, N)

    return pl.pallas_call(
        functools.partial(_fused_matmul_kernel, apply_relu=apply_relu),
        out_shape=jax.ShapeDtypeStruct((M, N), out_dtype),
        grid_spec=pltpu.PrefetchScalarGridSpec(
            num_scalar_prefetch=0,
            grid=(grid_m,),
            in_specs=[
                pl.BlockSpec((tile_m, K), lambda i: (i, 0)),
                pl.BlockSpec((K, N), lambda i: (0, 0)),    # resident weights
                pl.BlockSpec((1, N), lambda i: (0, 0)),    # resident shift
            ],
            out_specs=pl.BlockSpec((tile_m, N), lambda i: (i, 0)),
        ),
        compiler_params=pltpu.CompilerParams(
            dimension_semantics=("parallel",),
            vmem_limit_bytes=_VMEM_LIMIT,
        ),
    )(x_bf16, w_bf16, shift2d)


# ---------------------------------------------------------------------------
# Pallas kernel: fused FC chain  relu(x@w1+b1) -> relu(.@w2+b2) -> .@w3+b3
# (dropout in eval mode is identity).  All weights resident in VMEM.
# ---------------------------------------------------------------------------
def _fc_chain_kernel(x_ref, w1_ref, b1_ref, w2_ref, b2_ref, w3_ref, b3_ref,
                     o_ref):
    h = jnp.dot(x_ref[...], w1_ref[...], preferred_element_type=jnp.float32)
    h = jnp.maximum(h + b1_ref[...], 0.0).astype(jnp.bfloat16)
    h = jnp.dot(h, w2_ref[...], preferred_element_type=jnp.float32)
    h = jnp.maximum(h + b2_ref[...], 0.0).astype(jnp.bfloat16)
    # F.dropout(training=False) -> identity (inference semantics)
    h = jnp.dot(h, w3_ref[...], preferred_element_type=jnp.float32)
    o_ref[...] = (h + b3_ref[...]).astype(o_ref.dtype)


def fc_chain(x_bf16, packed):
    """x:(M, fc1_in) bf16 -> (M, embed) f32 through fc1/fc2/fc3 in one call."""
    w1, b1 = packed["fc1"]
    w2, b2 = packed["fc2"]
    w3, b3 = packed["fc3"]
    M, K1 = x_bf16.shape
    H1, H2, E = w1.shape[1], w2.shape[1], w3.shape[1]
    tile_m = _choose_tile_m(M, K1, max(H1, H2, E), 4)
    grid_m = _cdiv(M, tile_m)
    # TODO(synk): if fc1_in * fc_hidden1 weights ever exceed a few MiB, add a
    # K "arbitrary" reduction axis with a VMEM accumulator instead of keeping
    # the whole fc1 weight resident.
    return pl.pallas_call(
        _fc_chain_kernel,
        out_shape=jax.ShapeDtypeStruct((M, E), jnp.float32),
        grid_spec=pltpu.PrefetchScalarGridSpec(
            num_scalar_prefetch=0,
            grid=(grid_m,),
            in_specs=[
                pl.BlockSpec((tile_m, K1), lambda i: (i, 0)),
                pl.BlockSpec((K1, H1), lambda i: (0, 0)),
                pl.BlockSpec((1, H1), lambda i: (0, 0)),
                pl.BlockSpec((H1, H2), lambda i: (0, 0)),
                pl.BlockSpec((1, H2), lambda i: (0, 0)),
                pl.BlockSpec((H2, E), lambda i: (0, 0)),
                pl.BlockSpec((1, E), lambda i: (0, 0)),
            ],
            out_specs=pl.BlockSpec((tile_m, E), lambda i: (i, 0)),
        ),
        compiler_params=pltpu.CompilerParams(
            dimension_semantics=("parallel",),
            vmem_limit_bytes=_VMEM_LIMIT,
        ),
    )(x_bf16, w1, b1.reshape(1, H1), w2, b2.reshape(1, H2), w3,
      b3.reshape(1, E))


# ---------------------------------------------------------------------------
# Conv2d(+BN+ReLU) via im2col (bf16 glue, fused under jit) + Pallas matmul
# ---------------------------------------------------------------------------
def conv_bn_relu(x_nhwc_bf16, w_mat, shift, kernel, stride):
    kh, kw = kernel
    sh, sw = stride
    B, H, W, Cin = x_nhwc_bf16.shape
    Ho = (H - kh) // sh + 1
    Wo = (W - kw) // sw + 1
    # TODO(synk): for large frames, fold this im2col into the Pallas kernel
    # (kh*kw "arbitrary" reduction grid axis + in-kernel strided slices) so the
    # kh*kw-expanded patches tensor never hits HBM.
    patches = [x_nhwc_bf16[:, i:i + sh * Ho:sh, j:j + sw * Wo:sw, :]
               for i in range(kh) for j in range(kw)]
    p = jnp.stack(patches, axis=3).reshape(B * Ho * Wo, kh * kw * Cin)
    y = fused_matmul(p, w_mat, shift, apply_relu=True, out_dtype=jnp.bfloat16)
    return y.reshape(B, Ho, Wo, shift.shape[0])


# ---------------------------------------------------------------------------
# Parameters (deterministic, synthetic) + one-time packing
# ---------------------------------------------------------------------------
CONV_SPECS = (
    ("conv1", 3, 32, (5, 5), (2, 2)),
    ("conv2", 32, 64, (3, 3), (2, 2)),
    ("conv3", 64, 128, (3, 3), (2, 2)),
    ("conv4", 128, 256, (3, 3), (2, 2)),
)


def init_raw_params(key, fc_hidden1, fc_hidden2, embed_dim, fc1_in):
    eps = 1e-5
    params = {}
    keys = iter(jax.random.split(key, 40))

    for name, cin, cout, (kh, kw), _ in CONV_SPECS:
        w = jax.random.normal(next(keys), (cout, cin, kh, kw), jnp.float32) * 0.05
        b = jax.random.normal(next(keys), (cout,), jnp.float32) * 0.05
        gamma = 1.0 + 0.1 * jax.random.normal(next(keys), (cout,), jnp.float32)
        beta = 0.1 * jax.random.normal(next(keys), (cout,), jnp.float32)
        r_mean = 0.1 * jax.random.normal(next(keys), (cout,), jnp.float32)
        r_var = jnp.abs(1.0 + 0.1 * jax.random.normal(next(keys), (cout,), jnp.float32))
        scale = gamma / jnp.sqrt(r_var + eps)        # eval-mode BatchNorm
        shift = beta + (b - r_mean) * scale          # conv bias folded in
        params[name] = (w, scale, shift)

    def linear(k, n_out, n_in):
        k1, k2 = jax.random.split(k)
        w = jax.random.normal(k1, (n_out, n_in), jnp.float32) * 0.05
        b = jax.random.normal(k2, (n_out,), jnp.float32) * 0.05
        return w, b

    params["fc1"] = linear(next(keys), fc_hidden1, fc1_in)
    params["fc2"] = linear(next(keys), fc_hidden2, fc_hidden1)
    params["fc3"] = linear(next(keys), embed_dim, fc_hidden2)
    return params


def pack_params(raw):
    """One-time weight prep: reorder to im2col layout, fold BN scale, cast bf16."""
    packed = {}
    for name, cin, cout, (kh, kw), _ in CONV_SPECS:
        w, scale, shift = raw[name]
        # w[o,c,i,j] -> w_mat[(i*kw + j)*Cin + c, o]  (matches im2col ordering)
        w_mat = jnp.transpose(w, (2, 3, 1, 0)).reshape(kh * kw * cin, cout)
        w_mat = w_mat * scale[None, :]               # fold BN scale into weights
        packed[name] = (w_mat.astype(jnp.bfloat16), shift.astype(jnp.float32))
    for name in ("fc1", "fc2", "fc3"):
        w, b = raw[name]
        packed[name] = (w.T.astype(jnp.bfloat16), b.astype(jnp.float32))
    return packed


# ---------------------------------------------------------------------------
# EncoderCNN forward (T folded into batch; 5 pallas_call launches total)
# ---------------------------------------------------------------------------
def encoder_cnn_forward(packed, x_3d):
    """x_3d: (B, T, C, H, W) f32 -> (B, T, CNN_embed_dim) f32."""
    B, T, C, H, W = x_3d.shape
    x = x_3d.reshape(B * T, C, H, W)
    # NCHW -> NHWC, cast to bf16 once (before any im2col patch extraction)
    x = jnp.transpose(x, (0, 2, 3, 1)).astype(jnp.bfloat16)
    for name, _, _, kernel, stride in CONV_SPECS:
        w_mat, shift = packed[name]
        x = conv_bn_relu(x, w_mat, shift, kernel, stride)
    # flatten in PyTorch (C, H, W) order
    x = jnp.transpose(x, (0, 3, 1, 2)).reshape(B * T, -1)
    x = fc_chain(x, packed)                       # fc1+relu, fc2+relu, drop=id, fc3
    # torch.stack(dim=0).transpose_(0,1) -> (B, T, embed)
    return x.reshape(B, T, -1)


# ---------------------------------------------------------------------------
# Pure-JAX f32 reference (for validation of the bf16 Pallas path)
# ---------------------------------------------------------------------------
def reference_forward(raw, x_3d):
    B, T, C, H, W = x_3d.shape
    x = x_3d.reshape(B * T, C, H, W)
    for name, _, _, _, (sh, sw) in CONV_SPECS:
        w, scale, shift = raw[name]
        y = lax.conv_general_dilated(
            x, w, window_strides=(sh, sw), padding="VALID",
            dimension_numbers=("NCHW", "OIHW", "NCHW"))
        y = y * scale[None, :, None, None] + shift[None, :, None, None]
        x = jnp.maximum(y, 0.0)
    x = x.reshape(B * T, -1)
    w1, b1 = raw["fc1"]; x = jnp.maximum(x @ w1.T + b1, 0.0)
    w2, b2 = raw["fc2"]; x = jnp.maximum(x @ w2.T + b2, 0.0)
    w3, b3 = raw["fc3"]; x = x @ w3.T + b3
    return x.reshape(B, T, -1)


if __name__ == "__main__":
    # Small shapes consistent with the module: batch=2, seq=2, 3x34x34 frames.
    B, T, C, IMG_X, IMG_Y = 2, 2, 3, 34, 34
    FC_H1, FC_H2, EMBED = 32, 32, 16

    # conv output shapes (pad=0): 34 -> 15 -> 7 -> 3 -> 1 ; fc1 in = 256*1*1
    h, w = IMG_X, IMG_Y
    for _, _, _, (kh, kw), (sh, sw) in CONV_SPECS:
        h = (h - kh) // sh + 1
        w = (w - kw) // sw + 1
    FC1_IN = 256 * h * w

    key = jax.random.PRNGKey(0)
    k_params, k_x = jax.random.split(key)
    raw_params = init_raw_params(k_params, FC_H1, FC_H2, EMBED, FC1_IN)
    packed_params = pack_params(raw_params)
    x_3d = jax.random.normal(k_x, (B, T, C, IMG_X, IMG_Y), jnp.float32)

    fwd = jax.jit(encoder_cnn_forward)
    out = fwd(packed_params, x_3d)
    jax.block_until_ready(out)
    assert out.shape == (B, T, EMBED), out.shape

    ref = reference_forward(raw_params, x_3d)
    rel_err = jnp.linalg.norm(out - ref) / (jnp.linalg.norm(ref) + 1e-6)
    assert float(rel_err) < 0.05, f"relative error too high: {float(rel_err)}"

    print("KERNEL_OK")
</pallas_src>

<mosaic_0001>
module attributes {stable_mosaic.version = 11 : i64} {
  func.func @_fused_matmul_kernel(%arg0: i32, %arg1: memref<512x75xbf16, #tpu.memory_space<vmem>>, %arg2: memref<75x32xbf16, #tpu.memory_space<vmem>>, %arg3: memref<1x32xf32, #tpu.memory_space<vmem>>, %arg4: memref<512x32xbf16, #tpu.memory_space<vmem>>) attributes {dimension_semantics = [#tpu.dimension_semantics<parallel>], iteration_bounds = array<i64: 2>, scalar_prefetch = 0 : i64, scratch_operands = 0 : i64, tpu.core_type = #tpu.core_type<tc>, window_params = [{transform_indices = @transform_0, window_bounds = array<i64: 512, 75>}, {pipeline_mode = #tpu.pipeline_mode<synchronous>, transform_indices = @transform_1, window_bounds = array<i64: 75, 32>}, {pipeline_mode = #tpu.pipeline_mode<synchronous>, transform_indices = @transform_2, window_bounds = array<i64: 1, 32>}, {transform_indices = @transform_3, window_bounds = array<i64: 512, 32>}]} {
    %c0 = arith.constant 0 : index
    %c0_0 = arith.constant 0 : index
    %0 = vector.load %arg1[%c0, %c0_0] : memref<512x75xbf16, #tpu.memory_space<vmem>>, vector<512x75xbf16>
    %c0_1 = arith.constant 0 : index
    %c0_2 = arith.constant 0 : index
    %1 = vector.load %arg2[%c0_1, %c0_2] : memref<75x32xbf16, #tpu.memory_space<vmem>>, vector<75x32xbf16>
    %cst = arith.constant dense<0.000000e+00> : vector<512x32xf32>
    %2 = tpu.matmul %0, %1, %cst {dimension_numbers = #tpu.dot_dimension_numbers<[1], [0], [0], [1], [0, 0, 1, 1], [], []>} : vector<512x75xbf16>, vector<75x32xbf16>, vector<512x32xf32> -> vector<512x32xf32>
    %c0_3 = arith.constant 0 : index
    %c0_4 = arith.constant 0 : index
    %3 = vector.load %arg3[%c0_3, %c0_4] : memref<1x32xf32, #tpu.memory_space<vmem>>, vector<1x32xf32>
    %4 = vector.broadcast %3 : vector<1x32xf32> to vector<512x32xf32>
    %5 = arith.addf %2, %4 : vector<512x32xf32>
    %cst_5 = arith.constant 0.000000e+00 : f32
    %6 = vector.broadcast %cst_5 : f32 to vector<512x32xf32>
    %7 = arith.maximumf %5, %6 : vector<512x32xf32>
    %8 = arith.truncf %7 : vector<512x32xf32> to vector<512x32xbf16>
    %c0_6 = arith.constant 0 : index
    %c0_7 = arith.constant 0 : index
    %9 = vector.load %arg4[%c0_6, %c0_7] : memref<512x32xbf16, #tpu.memory_space<vmem>>, vector<512x32xbf16>
    tpu.vector_store %arg4[%c0_6, %c0_7], %8 {strides = array<i32>} : memref<512x32xbf16, #tpu.memory_space<vmem>>, vector<512x32xbf16>,
    return
  }
  func.func @transform_0(%arg0: i32) -> (i32, i32) {
    %c0_i32 = arith.constant 0 : i32
    %c0_i32_0 = arith.constant 0 : i32
    return %arg0, %c0_i32 : i32, i32
  }
  func.func @transform_1(%arg0: i32) -> (i32, i32) {
    %c0_i32 = arith.constant 0 : i32
    %c0_i32_0 = arith.constant 0 : i32
    %c0_i32_1 = arith.constant 0 : i32
    return %c0_i32, %c0_i32_0 : i32, i32
  }
  func.func @transform_2(%arg0: i32) -> (i32, i32) {
    %c0_i32 = arith.constant 0 : i32
    %c0_i32_0 = arith.constant 0 : i32
    %c0_i32_1 = arith.constant 0 : i32
    return %c0_i32, %c0_i32_0 : i32, i32
  }
  func.func @transform_3(%arg0: i32) -> (i32, i32) {
    %c0_i32 = arith.constant 0 : i32
    %c0_i32_0 = arith.constant 0 : i32
    return %arg0, %c0_i32 : i32, i32
  }
}

module attributes {stable_mosaic.version = 11 : i64} {
  func.func @_fused_matmul_kernel(%arg0: i32, %arg1: memref<128x288xbf16, #tpu.memory_space<vmem>>, %arg2: memref<288x64xbf16, #tpu.memory_space<vmem>>, %arg3: memref<1x64xf32, #tpu.memory_space<vmem>>, %arg4: memref<128x64xbf16, #tpu.memory_space<vmem>>) attributes {dimension_semantics = [#tpu.dimension_semantics<parallel>], iteration_bounds = array<i64: 2>, scalar_prefetch = 0 : i64, scratch_operands = 0 : i64, tpu.core_type = #tpu.core_type<tc>, window_params = [{transform_indices = @transform_0, window_bounds = array<i64: 128, 288>}, {pipeline_mode = #tpu.pipeline_mode<synchronous>, transform_indices = @transform_1, window_bounds = array<i64: 288, 64>}, {pipeline_mode = #tpu.pipeline_mode<synchronous>, transform_indices = @transform_2, window_bounds = array<i64: 1, 64>}, {transform_indices = @transform_3, window_bounds = array<i64: 128, 64>}]} {
    %c0 = arith.constant 0 : index
    %c0_0 = arith.constant 0 : index
    %0 = vector.load %arg1[%c0, %c0_0] : memref<128x288xbf16, #tpu.memory_space<vmem>>, vector<128x288xbf16>
    %c0_1 = arith.constant 0 : index
    %c0_2 = arith.constant 0 : index
    %1 = vector.load %arg2[%c0_1, %c0_2] : memref<288x64xbf16, #tpu.memory_space<vmem>>, vector<288x64xbf16>
    %cst = arith.constant dense<0.000000e+00> : vector<128x64xf32>
    %2 = tpu.matmul %0, %1, %cst {dimension_numbers = #tpu.dot_dimension_numbers<[1], [0], [0], [1], [0, 0, 1, 1], [], []>} : vector<128x288xbf16>, vector<288x64xbf16>, vector<128x64xf32> -> vector<128x64xf32>
    %c0_3 = arith.constant 0 : index
    %c0_4 = arith.constant 0 : index
    %3 = vector.load %arg3[%c0_3, %c0_4] : memref<1x64xf32, #tpu.memory_space<vmem>>, vector<1x64xf32>
    %4 = vector.broadcast %3 : vector<1x64xf32> to vector<128x64xf32>
    %5 = arith.addf %2, %4 : vector<128x64xf32>
    %cst_5 = arith.constant 0.000000e+00 : f32
    %6 = vector.broadcast %cst_5 : f32 to vector<128x64xf32>
    %7 = arith.maximumf %5, %6 : vector<128x64xf32>
    %8 = arith.truncf %7 : vector<128x64xf32> to vector<128x64xbf16>
    %c0_6 = arith.constant 0 : index
    %c0_7 = arith.constant 0 : index
    %9 = vector.load %arg4[%c0_6, %c0_7] : memref<128x64xbf16, #tpu.memory_space<vmem>>, vector<128x64xbf16>
    tpu.vector_store %arg4[%c0_6, %c0_7], %8 {strides = array<i32>} : memref<128x64xbf16, #tpu.memory_space<vmem>>, vector<128x64xbf16>,
    return
  }
  func.func @transform_0(%arg0: i32) -> (i32, i32) {
    %c0_i32 = arith.constant 0 : i32
    %c0_i32_0 = arith.constant 0 : i32
    return %arg0, %c0_i32 : i32, i32
  }
  func.func @transform_1(%arg0: i32) -> (i32, i32) {
    %c0_i32 = arith.constant 0 : i32
    %c0_i32_0 = arith.constant 0 : i32
    %c0_i32_1 = arith.constant 0 : i32
    return %c0_i32, %c0_i32_0 : i32, i32
  }
  func.func @transform_2(%arg0: i32) -> (i32, i32) {
    %c0_i32 = arith.constant 0 : i32
    %c0_i32_0 = arith.constant 0 : i32
    %c0_i32_1 = arith.constant 0 : i32
    return %c0_i32, %c0_i32_0 : i32, i32
  }
  func.func @transform_3(%arg0: i32) -> (i32, i32) {
    %c0_i32 = arith.constant 0 : i32
    %c0_i32_0 = arith.constant 0 : i32
    return %arg0, %c0_i32 : i32, i32
  }
}

module attributes {stable_mosaic.version = 11 : i64} {
  func.func @_fused_matmul_kernel(%arg0: i32, %arg1: memref<32x576xbf16, #tpu.memory_space<vmem>>, %arg2: memref<576x128xbf16, #tpu.memory_space<vmem>>, %arg3: memref<1x128xf32, #tpu.memory_space<vmem>>, %arg4: memref<32x128xbf16, #tpu.memory_space<vmem>>) attributes {dimension_semantics = [#tpu.dimension_semantics<parallel>], iteration_bounds = array<i64: 2>, scalar_prefetch = 0 : i64, scratch_operands = 0 : i64, tpu.core_type = #tpu.core_type<tc>, window_params = [{transform_indices = @transform_0, window_bounds = array<i64: 32, 576>}, {pipeline_mode = #tpu.pipeline_mode<synchronous>, transform_indices = @transform_1, window_bounds = array<i64: 576, 128>}, {pipeline_mode = #tpu.pipeline_mode<synchronous>, transform_indices = @transform_2, window_bounds = array<i64: 1, 128>}, {transform_indices = @transform_3, window_bounds = array<i64: 32, 128>}]} {
    %c0 = arith.constant 0 : index
    %c0_0 = arith.constant 0 : index
    %0 = vector.load %arg1[%c0, %c0_0] : memref<32x576xbf16, #tpu.memory_space<vmem>>, vector<32x576xbf16>
    %c0_1 = arith.constant 0 : index
    %c0_2 = arith.constant 0 : index
    %1 = vector.load %arg2[%c0_1, %c0_2] : memref<576x128xbf16, #tpu.memory_space<vmem>>, vector<576x128xbf16>
    %cst = arith.constant dense<0.000000e+00> : vector<32x128xf32>
    %2 = tpu.matmul %0, %1, %cst {dimension_numbers = #tpu.dot_dimension_numbers<[1], [0], [0], [1], [0, 0, 1, 1], [], []>} : vector<32x576xbf16>, vector<576x128xbf16>, vector<32x128xf32> -> vector<32x128xf32>
    %c0_3 = arith.constant 0 : index
    %c0_4 = arith.constant 0 : index
    %3 = vector.load %arg3[%c0_3, %c0_4] : memref<1x128xf32, #tpu.memory_space<vmem>>, vector<1x128xf32>
    %4 = vector.broadcast %3 : vector<1x128xf32> to vector<32x128xf32>
    %5 = arith.addf %2, %4 : vector<32x128xf32>
    %cst_5 = arith.constant 0.000000e+00 : f32
    %6 = vector.broadcast %cst_5 : f32 to vector<32x128xf32>
    %7 = arith.maximumf %5, %6 : vector<32x128xf32>
    %8 = arith.truncf %7 : vector<32x128xf32> to vector<32x128xbf16>
    %c0_6 = arith.constant 0 : index
    %c0_7 = arith.constant 0 : index
    %9 = vector.load %arg4[%c0_6, %c0_7] : memref<32x128xbf16, #tpu.memory_space<vmem>>, vector<32x128xbf16>
    tpu.vector_store %arg4[%c0_6, %c0_7], %8 {strides = array<i32>} : memref<32x128xbf16, #tpu.memory_space<vmem>>, vector<32x128xbf16>,
    return
  }
  func.func @transform_0(%arg0: i32) -> (i32, i32) {
    %c0_i32 = arith.constant 0 : i32
    %c0_i32_0 = arith.constant 0 : i32
    return %arg0, %c0_i32 : i32, i32
  }
  func.func @transform_1(%arg0: i32) -> (i32, i32) {
    %c0_i32 = arith.constant 0 : i32
    %c0_i32_0 = arith.constant 0 : i32
    %c0_i32_1 = arith.constant 0 : i32
    return %c0_i32, %c0_i32_0 : i32, i32
  }
  func.func @transform_2(%arg0: i32) -> (i32, i32) {
    %c0_i32 = arith.constant 0 : i32
    %c0_i32_0 = arith.constant 0 : i32
    %c0_i32_1 = arith.constant 0 : i32
    return %c0_i32, %c0_i32_0 : i32, i32
  }
  func.func @transform_3(%arg0: i32) -> (i32, i32) {
    %c0_i32 = arith.constant 0 : i32
    %c0_i32_0 = arith.constant 0 : i32
    return %arg0, %c0_i32 : i32, i32
  }
}

module attributes {stable_mosaic.version = 11 : i64} {
  func.func @_fused_matmul_kernel(%arg0: i32, %arg1: memref<4x1152xbf16, #tpu.memory_space<vmem>>, %arg2: memref<1152x256xbf16, #tpu.memory_space<vmem>>, %arg3: memref<1x256xf32, #tpu.memory_space<vmem>>, %arg4: memref<4x256xbf16, #tpu.memory_space<vmem>>) attributes {dimension_semantics = [#tpu.dimension_semantics<parallel>], iteration_bounds = array<i64: 1>, scalar_prefetch = 0 : i64, scratch_operands = 0 : i64, tpu.core_type = #tpu.core_type<tc>, window_params = [{transform_indices = @transform_0, window_bounds = array<i64: 4, 1152>}, {pipeline_mode = #tpu.pipeline_mode<synchronous>, transform_indices = @transform_1, window_bounds = array<i64: 1152, 256>}, {pipeline_mode = #tpu.pipeline_mode<synchronous>, transform_indices = @transform_2, window_bounds = array<i64: 1, 256>}, {transform_indices = @transform_3, window_bounds = array<i64: 4, 256>}]} {
    %c0 = arith.constant 0 : index
    %c0_0 = arith.constant 0 : index
    %0 = vector.load %arg1[%c0, %c0_0] : memref<4x1152xbf16, #tpu.memory_space<vmem>>, vector<4x1152xbf16>
    %c0_1 = arith.constant 0 : index
    %c0_2 = arith.constant 0 : index
    %1 = vector.load %arg2[%c0_1, %c0_2] : memref<1152x256xbf16, #tpu.memory_space<vmem>>, vector<1152x256xbf16>
    %cst = arith.constant dense<0.000000e+00> : vector<4x256xf32>
    %2 = tpu.matmul %0, %1, %cst {dimension_numbers = #tpu.dot_dimension_numbers<[1], [0], [0], [1], [0, 0, 1, 1], [], []>} : vector<4x1152xbf16>, vector<1152x256xbf16>, vector<4x256xf32> -> vector<4x256xf32>
    %c0_3 = arith.constant 0 : index
    %c0_4 = arith.constant 0 : index
    %3 = vector.load %arg3[%c0_3, %c0_4] : memref<1x256xf32, #tpu.memory_space<vmem>>, vector<1x256xf32>
    %4 = vector.broadcast %3 : vector<1x256xf32> to vector<4x256xf32>
    %5 = arith.addf %2, %4 : vector<4x256xf32>
    %cst_5 = arith.constant 0.000000e+00 : f32
    %6 = vector.broadcast %cst_5 : f32 to vector<4x256xf32>
    %7 = arith.maximumf %5, %6 : vector<4x256xf32>
    %8 = arith.truncf %7 : vector<4x256xf32> to vector<4x256xbf16>
    %c0_6 = arith.constant 0 : index
    %c0_7 = arith.constant 0 : index
    %9 = vector.load %arg4[%c0_6, %c0_7] : memref<4x256xbf16, #tpu.memory_space<vmem>>, vector<4x256xbf16>
    tpu.vector_store %arg4[%c0_6, %c0_7], %8 {strides = array<i32>} : memref<4x256xbf16, #tpu.memory_space<vmem>>, vector<4x256xbf16>,
    return
  }
  func.func @transform_0(%arg0: i32) -> (i32, i32) {
    %c0_i32 = arith.constant 0 : i32
    %c0_i32_0 = arith.constant 0 : i32
    return %arg0, %c0_i32 : i32, i32
  }
  func.func @transform_1(%arg0: i32) -> (i32, i32) {
    %c0_i32 = arith.constant 0 : i32
    %c0_i32_0 = arith.constant 0 : i32
    %c0_i32_1 = arith.constant 0 : i32
    return %c0_i32, %c0_i32_0 : i32, i32
  }
  func.func @transform_2(%arg0: i32) -> (i32, i32) {
    %c0_i32 = arith.constant 0 : i32
    %c0_i32_0 = arith.constant 0 : i32
    %c0_i32_1 = arith.constant 0 : i32
    return %c0_i32, %c0_i32_0 : i32, i32
  }
  func.func @transform_3(%arg0: i32) -> (i32, i32) {
    %c0_i32 = arith.constant 0 : i32
    %c0_i32_0 = arith.constant 0 : i32
    return %arg0, %c0_i32 : i32, i32
  }
}

module attributes {stable_mosaic.version = 11 : i64} {
  func.func @_fc_chain_kernel(%arg0: i32, %arg1: memref<4x256xbf16, #tpu.memory_space<vmem>>, %arg2: memref<256x32xbf16, #tpu.memory_space<vmem>>, %arg3: memref<1x32xf32, #tpu.memory_space<vmem>>, %arg4: memref<32x32xbf16, #tpu.memory_space<vmem>>, %arg5: memref<1x32xf32, #tpu.memory_space<vmem>>, %arg6: memref<32x16xbf16, #tpu.memory_space<vmem>>, %arg7: memref<1x16xf32, #tpu.memory_space<vmem>>, %arg8: memref<4x16xf32, #tpu.memory_space<vmem>>) attributes {dimension_semantics = [#tpu.dimension_semantics<parallel>], iteration_bounds = array<i64: 1>, scalar_prefetch = 0 : i64, scratch_operands = 0 : i64, tpu.core_type = #tpu.core_type<tc>, window_params = [{transform_indices = @transform_0, window_bounds = array<i64: 4, 256>}, {pipeline_mode = #tpu.pipeline_mode<synchronous>, transform_indices = @transform_1, window_bounds = array<i64: 256, 32>}, {pipeline_mode = #tpu.pipeline_mode<synchronous>, transform_indices = @transform_2, window_bounds = array<i64: 1, 32>}, {pipeline_mode = #tpu.pipeline_mode<synchronous>, transform_indices = @transform_3, window_bounds = array<i64: 32, 32>}, {pipeline_mode = #tpu.pipeline_mode<synchronous>, transform_indices = @transform_4, window_bounds = array<i64: 1, 32>}, {pipeline_mode = #tpu.pipeline_mode<synchronous>, transform_indices = @transform_5, window_bounds = array<i64: 32, 16>}, {pipeline_mode = #tpu.pipeline_mode<synchronous>, transform_indices = @transform_6, window_bounds = array<i64: 1, 16>}, {transform_indices = @transform_7, window_bounds = array<i64: 4, 16>}]} {
    %c0 = arith.constant 0 : index
    %c0_0 = arith.constant 0 : index
    %0 = vector.load %arg1[%c0, %c0_0] : memref<4x256xbf16, #tpu.memory_space<vmem>>, vector<4x256xbf16>
    %c0_1 = arith.constant 0 : index
    %c0_2 = arith.constant 0 : index
    %1 = vector.load %arg2[%c0_1, %c0_2] : memref<256x32xbf16, #tpu.memory_space<vmem>>, vector<256x32xbf16>
    %cst = arith.constant dense<0.000000e+00> : vector<4x32xf32>
    %2 = tpu.matmul %0, %1, %cst {dimension_numbers = #tpu.dot_dimension_numbers<[1], [0], [0], [1], [0, 0, 1, 1], [], []>} : vector<4x256xbf16>, vector<256x32xbf16>, vector<4x32xf32> -> vector<4x32xf32>
    %c0_3 = arith.constant 0 : index
    %c0_4 = arith.constant 0 : index
    %3 = vector.load %arg3[%c0_3, %c0_4] : memref<1x32xf32, #tpu.memory_space<vmem>>, vector<1x32xf32>
    %4 = vector.broadcast %3 : vector<1x32xf32> to vector<4x32xf32>
    %5 = arith.addf %2, %4 : vector<4x32xf32>
    %cst_5 = arith.constant 0.000000e+00 : f32
    %6 = vector.broadcast %cst_5 : f32 to vector<4x32xf32>
    %7 = arith.maximumf %5, %6 : vector<4x32xf32>
    %8 = arith.truncf %7 : vector<4x32xf32> to vector<4x32xbf16>
    %c0_6 = arith.constant 0 : index
    %c0_7 = arith.constant 0 : index
    %9 = vector.load %arg4[%c0_6, %c0_7] : memref<32x32xbf16, #tpu.memory_space<vmem>>, vector<32x32xbf16>
    %cst_8 = arith.constant dense<0.000000e+00> : vector<4x32xf32>
    %10 = tpu.matmul %8, %9, %cst_8 {dimension_numbers = #tpu.dot_dimension_numbers<[1], [0], [0], [1], [0, 0, 1, 1], [], []>} : vector<4x32xbf16>, vector<32x32xbf16>, vector<4x32xf32> -> vector<4x32xf32>
    %c0_9 = arith.constant 0 : index
    %c0_10 = arith.constant 0 : index
    %11 = vector.load %arg5[%c0_9, %c0_10] : memref<1x32xf32, #tpu.memory_space<vmem>>, vector<1x32xf32>
    %12 = vector.broadcast %11 : vector<1x32xf32> to vector<4x32xf32>
    %13 = arith.addf %10, %12 : vector<4x32xf32>
    %cst_11 = arith.constant 0.000000e+00 : f32
    %14 = vector.broadcast %cst_11 : f32 to vector<4x32xf32>
    %15 = arith.maximumf %13, %14 : vector<4x32xf32>
    %16 = arith.truncf %15 : vector<4x32xf32> to vector<4x32xbf16>
    %c0_12 = arith.constant 0 : index
    %c0_13 = arith.constant 0 : index
    %17 = vector.load %arg6[%c0_12, %c0_13] : memref<32x16xbf16, #tpu.memory_space<vmem>>, vector<32x16xbf16>
    %cst_14 = arith.constant dense<0.000000e+00> : vector<4x16xf32>
    %18 = tpu.matmul %16, %17, %cst_14 {dimension_numbers = #tpu.dot_dimension_numbers<[1], [0], [0], [1], [0, 0, 1, 1], [], []>} : vector<4x32xbf16>, vector<32x16xbf16>, vector<4x16xf32> -> vector<4x16xf32>
    %c0_15 = arith.constant 0 : index
    %c0_16 = arith.constant 0 : index
    %19 = vector.load %arg7[%c0_15, %c0_16] : memref<1x16xf32, #tpu.memory_space<vmem>>, vector<1x16xf32>
    %20 = vector.broadcast %19 : vector<1x16xf32> to vector<4x16xf32>
    %21 = arith.addf %18, %20 : vector<4x16xf32>
    %c0_17 = arith.constant 0 : index
    %c0_18 = arith.constant 0 : index
    %22 = vector.load %arg8[%c0_17, %c0_18] : memref<4x16xf32, #tpu.memory_space<vmem>>, vector<4x16xf32>
    tpu.vector_store %arg8[%c0_17, %c0_18], %21 {strides = array<i32>} : memref<4x16xf32, #tpu.memory_space<vmem>>, vector<4x16xf32>,
    return
  }
  func.func @transform_0(%arg0: i32) -> (i32, i32) {
    %c0_i32 = arith.constant 0 : i32
    %c0_i32_0 = arith.constant 0 : i32
    return %arg0, %c0_i32 : i32, i32
  }
  func.func @transform_1(%arg0: i32) -> (i32, i32) {
    %c0_i32 = arith.constant 0 : i32
    %c0_i32_0 = arith.constant 0 : i32
    %c0_i32_1 = arith.constant 0 : i32
    return %c0_i32, %c0_i32_0 : i32, i32
  }
  func.func @transform_2(%arg0: i32) -> (i32, i32) {
    %c0_i32 = arith.constant 0 : i32
    %c0_i32_0 = arith.constant 0 : i32
    %c0_i32_1 = arith.constant 0 : i32
    return %c0_i32, %c0_i32_0 : i32, i32
  }
  func.func @transform_3(%arg0: i32) -> (i32, i32) {
    %c0_i32 = arith.constant 0 : i32
    %c0_i32_0 = arith.constant 0 : i32
    %c0_i32_1 = arith.constant 0 : i32
    return %c0_i32, %c0_i32_0 : i32, i32
  }
  func.func @transform_4(%arg0: i32) -> (i32, i32) {
    %c0_i32 = arith.constant 0 : i32
    %c0_i32_0 = arith.constant 0 : i32
    %c0_i32_1 = arith.constant 0 : i32
    return %c0_i32, %c0_i32_0 : i32, i32
  }
  func.func @transform_5(%arg0: i32) -> (i32, i32) {
    %c0_i32 = arith.constant 0 : i32
    %c0_i32_0 = arith.constant 0 : i32
    %c0_i32_1 = arith.constant 0 : i32
    return %c0_i32, %c0_i32_0 : i32, i32
  }
  func.func @transform_6(%arg0: i32) -> (i32, i32) {
    %c0_i32 = arith.constant 0 : i32
    %c0_i32_0 = arith.constant 0 : i32
    %c0_i32_1 = arith.constant 0 : i32
    return %c0_i32, %c0_i32_0 : i32, i32
  }
  func.func @transform_7(%arg0: i32) -> (i32, i32) {
    %c0_i32 = arith.constant 0 : i32
    %c0_i32_0 = arith.constant 0 : i32
    return %arg0, %c0_i32 : i32, i32
  }
}

</mosaic_0001>

<llo_original>
// kernel: encoder_cnn_forward.5
$region0: #{encoder_cnn_forward.5}
  #allocation0 [shape = 'u32[]', space=smem, size = 0x4, offset = 0x4, fixed_abs, tag = 'smem constant byte address 0x4 - core index']
  #allocation1 [shape = 'u32[144,128]{1,0:T(1,128)}', space=vmem, size = 0x12000, scoped, tag = 'internal scratch']
  %s0 = inlined_call_operand.vmem [shape: bf16[900,75], index: 0, kind: input, shape index: {}]
  %s1 = inlined_call_operand.vmem [shape: bf16[75,32], index: 1, kind: input, shape index: {}]
  %s2 = inlined_call_operand.vmem [shape: f32[1,32], index: 2, kind: input, shape index: {}]
  %s3 = inlined_call_operand.vmem [shape: bf16[900,32], index: 3, kind: output, shape index: {}]
  %s4 = sld [smem:[#allocation0]]
  $region89: #{encoder_cnn_forward.5} parent=0
    _
  %s6 = ssub.s32 1, %s4
  %s7 = scalar_select 0, %s6, %s4
  $region1: #{encoder_cnn_forward.5} parent=0
    #allocation2 [shape = 'u8[262144]{0}', space=vmem, size = 0x40000, scoped, tag = 'output window, operand 0']
    loop: start=0, step=1, limit=4
    $region2: #{encoder_cnn_forward.5} parent=1 // loop_pre_header
      _
    $region3: #{encoder_cnn_forward.5} parent=1 // loop_header
      %s9 = sphi 0, %s13
      %p10 = scmp.ge.s32.totalorder %s9, 4
      %s19 = sphi 0, %s21
      %s22 = sphi 0, %s19
      %s23 = sphi 0, %s22
      %s39 = sphi 0, %s23
      %s43 = sphi 0, %s43
      %s45 = sphi 0, %s43
      %s46 = sphi 0, %s45
      %s60 = sphi 0, %s46
      %s64 = sphi 0, %s64
      %s66 = sphi 0, %s64
      %s67 = sphi 0, %s66
      %s81 = sphi 0, %s67
      %s87 = sphi 0, %s89
      %s90 = sphi 0, %s87
      %s91 = sphi 0, %s90
      %s107 = sphi 0, %s91
    $region4: #{encoder_cnn_forward.5} parent=1 // loop_header_branch
      %12 = sbr.rel (%p10) target = $region8
    $region5: #{encoder_cnn_forward.5} parent=1 // loop_body
      %s14 = ssub.s32 %s9, 1
      %s15 = ssub.s32 %s9, 2
      %s16 = sadd.s32 %s9, 1
      %s17 = ssub.s32 %s9, %s16
      %p18 = scmp.eq.s32.totalorder %s17, 0
      %s20 = sadd.s32 %s19, 1
      %s21 = scalar_select %p18, %s19, %s20
      %p24 = pneg %p18
      %p25 = scmp.eq.s32.totalorder %s9, 1
      %p26 = por %p24, %p25
      %p27 = scmp.ne.s32.totalorder %s19, %s22
      %p28 = scmp.eq.s32.totalorder %s9, 0
      %p29 = por %p27, %p28
      %p30 = scmp.ne.s32.totalorder %s19, %s22
      %p31 = scmp.eq.s32.totalorder %s14, 1
      %p32 = por %p30, %p31
      %p33 = scmp.ne.s32.totalorder %s22, %s23
      %p34 = scmp.eq.s32.totalorder %s14, 0
      %p35 = por %p33, %p34
      %p36 = scmp.ne.s32.totalorder %s22, %s23
      %p37 = scmp.eq.s32.totalorder %s15, 1
      %p38 = por %p36, %p37
      %p40 = scmp.ne.s32.totalorder %s23, %s39
      %p41 = scmp.eq.s32.totalorder %s15, 0
      %p42 = por %p40, %p41
      %s44 = sadd.s32 %s43, 1
      %p47 = scmp.eq.s32.totalorder %s9, 1
      %p48 = scmp.ne.s32.totalorder %s43, %s45
      %p49 = scmp.eq.s32.totalorder %s9, 0
      %p50 = por %p48, %p49
      %p51 = scmp.ne.s32.totalorder %s43, %s45
      %p52 = scmp.eq.s32.totalorder %s14, 1
      %p53 = por %p51, %p52
      %p54 = scmp.ne.s32.totalorder %s45, %s46
      %p55 = scmp.eq.s32.totalorder %s14, 0
      %p56 = por %p54, %p55
      %p57 = scmp.ne.s32.totalorder %s45, %s46
      %p58 = scmp.eq.s32.totalorder %s15, 1
      %p59 = por %p57, %p58
      %p61 = scmp.ne.s32.totalorder %s46, %s60
      %p62 = scmp.eq.s32.totalorder %s15, 0
      %p63 = por %p61, %p62
      %s65 = sadd.s32 %s64, 1
      %p68 = scmp.eq.s32.totalorder %s9, 1
      %p69 = scmp.ne.s32.totalorder %s64, %s66
      %p70 = scmp.eq.s32.totalorder %s9, 0
      %p71 = por %p69, %p70
      %p72 = scmp.ne.s32.totalorder %s64, %s66
      %p73 = scmp.eq.s32.totalorder %s14, 1
      %p74 = por %p72, %p73
      %p75 = scmp.ne.s32.totalorder %s66, %s67
      %p76 = scmp.eq.s32.totalorder %s14, 0
      %p77 = por %p75, %p76
      %p78 = scmp.ne.s32.totalorder %s66, %s67
      %p79 = scmp.eq.s32.totalorder %s15, 1
      %p80 = por %p78, %p79
      %p82 = scmp.ne.s32.totalorder %s67, %s81
      %p83 = scmp.eq.s32.totalorder %s15, 0
      %p84 = por %p82, %p83
      %s85 = ssub.s32 %s9, %s16
      %p86 = scmp.eq.s32.totalorder %s85, 0
      %s88 = sadd.s32 %s87, 1
      %s89 = scalar_select %p86, %s87, %s88
      %p92 = pneg %p86
      %p93 = scmp.eq.s32.totalorder %s9, 1
      %p94 = por %p92, %p93
      %p95 = scmp.ne.s32.totalorder %s87, %s90
      %p96 = scmp.eq.s32.totalorder %s9, 0
      %p97 = por %p95, %p96
      %p98 = scmp.ne.s32.totalorder %s87, %s90
      %p99 = scmp.eq.s32.totalorder %s14, 1
      %p100 = por %p98, %p99
      %p101 = scmp.ne.s32.totalorder %s90, %s91
      %p102 = scmp.eq.s32.totalorder %s14, 0
      %p103 = por %p101, %p102
      %p104 = scmp.ne.s32.totalorder %s90, %s91
      %p105 = scmp.eq.s32.totalorder %s15, 1
      %p106 = por %p104, %p105
      %p108 = scmp.ne.s32.totalorder %s91, %s107
      %p109 = scmp.eq.s32.totalorder %s15, 0
      %p110 = por %p108, %p109
      %p111 = scmp.le.s32.totalorder 1, %s9
      %p112 = scmp.lt.s32.totalorder %s9, 3
      %p113 = pnand %p111, %p112
      %p114 = pneg %p113
      // Predicated region
      $region9: #{encoder_cnn_forward.5} parent=5 // pred_check
        _
      $region10: #{encoder_cnn_forward.5} parent=5 // pred_check_branch
        %116 = sbr.rel (%p113) target = $region12
      $region11: #{encoder_cnn_forward.5} parent=5 // pred_region
        %s117 = ssub.s32 %s9, 1
        // Predicated region
        $region13: #{encoder_cnn_forward.5} parent=11 // pred_check
          %p118 = pneg %p56
        $region14: #{encoder_cnn_forward.5} parent=11 // pred_check_branch
          %120 = sbr.rel (%p118) target = $region16
        $region15: #{encoder_cnn_forward.5} parent=11 // pred_region
          _
        $region16: #{encoder_cnn_forward.5} parent=11 // pred_fallthru
          _
        // Predicated region
        $region17: #{encoder_cnn_forward.5} parent=11 // pred_check
          %p121 = pneg %p77
        $region18: #{encoder_cnn_forward.5} parent=11 // pred_check_branch
          %123 = sbr.rel (%p121) target = $region20
        $region19: #{encoder_cnn_forward.5} parent=11 // pred_region
          _
        $region20: #{encoder_cnn_forward.5} parent=11 // pred_fallthru
          _
      $region12: #{encoder_cnn_forward.5} parent=5 // pred_fallthru
        _
      %p124 = scmp.lt.s32.totalorder %s9, 2
      // Predicated region
      $region21: #{encoder_cnn_forward.5} parent=5 // pred_check
        %p125 = pneg %p124
      $region22: #{encoder_cnn_forward.5} parent=5 // pred_check_branch
        %127 = sbr.rel (%p125) target = $region24
      $region23: #{encoder_cnn_forward.5} parent=5 // pred_region
        // Predicated region
        $region25: #{encoder_cnn_forward.5} parent=23 // pred_check
          %p128 = pneg %p29
        $region26: #{encoder_cnn_forward.5} parent=23 // pred_check_branch
          %130 = sbr.rel (%p128) target = $region28
        $region27: #{encoder_cnn_forward.5} parent=23 // pred_region
          %s131 = smul.u32 64, %s9
          %s132 = ssub.s32 113, %s131
          %p133 = scmp.lt.s32.totalorder %s132, 64
          %s134 = scalar_select %p133, %s132, 64
          %s135 = smul.u32 64, %s134
          %p136 = scmp.lt.s32.totalorder %s131, 112
          %s137 = scalar_select %p136, %s131, 112
          %s138 = smul.addr %s137, 4
          %s139 = scalar_lea.vmem %s0, %s138
          %s140 = smul.u32 64, %s9
          %s141 = ssub.s32 113, %s140
          %p142 = scmp.lt.s32.totalorder %s141, 64
          %s143 = scalar_select %p142, %s141, 64
          %s144 = smul.u32 64, %s143
        $region28: #{encoder_cnn_forward.5} parent=23 // pred_fallthru
          _
      $region24: #{encoder_cnn_forward.5} parent=5 // pred_fallthru
        _
      %p145 = scmp.le.s32.totalorder 1, %s9
      %p146 = scmp.lt.s32.totalorder %s9, 3
      %p147 = pnand %p145, %p146
      %p148 = pneg %p147
      // Predicated region
      $region29: #{encoder_cnn_forward.5} parent=5 // pred_check
        _
      $region30: #{encoder_cnn_forward.5} parent=5 // pred_check_branch
        %150 = sbr.rel (%p147) target = $region32
      $region31: #{encoder_cnn_forward.5} parent=5 // pred_region
        %s151 = ssub.s32 %s9, 1
        %s152 = smul.u32 64, %s14
        %s153 = ssub.s32 113, %s152
        %p154 = scmp.lt.s32.totalorder %s153, 64
        %s155 = scalar_select %p154, %s153, 64
        %s156 = smul.u32 64, %s155
        %p157 = scmp.lt.s32.totalorder %s152, 112
        %s158 = scalar_select %p157, %s152, 112
        %s159 = smul.addr %s158, 4
        %s160 = scalar_lea.vmem %s0, %s159
        %p161 = pneg %p35
        %p162 = pneg %p32
        %p163 = pneg %p56
        %p164 = pneg %p53
        %p165 = pneg %p77
        %p166 = pneg %p74
        %p167 = pneg %p103
        %p168 = pneg %p100
        %s169 = sand.u32 %s90, 1
        %s170 = sand.u32 %s90, 1
        %s171 = smul.addr %s170, 256
        %s172 = scalar_lea.vmem [#allocation2], %s171
        %s173 = smul.u32 64, %s14
        %s174 = ssub.s32 113, %s173
        %p175 = scmp.lt.s32.totalorder %s174, 64
        %s176 = scalar_select %p175, %s174, 64
        %s177 = smul.u32 64, %s176
        %p178 = scmp.lt.s32.totalorder %s173, 112
        %s179 = scalar_select %p178, %s173, 112
        %s180 = smul.addr %s179, 4
        %s181 = scalar_lea.vmem %s0, %s180
        %s182 = smul.u32 64, %s14
        %s183 = ssub.s32 113, %s182
        %p184 = scmp.lt.s32.totalorder %s183, 64
        %s185 = scalar_select %p184, %s183, 64
        %s186 = smul.u32 64, %s185
        %s187 = smul.u32 64, %s14
        %s188 = ssub.s32 113, %s187
        %p189 = scmp.lt.s32.totalorder %s188, 64
        %s190 = scalar_select %p189, %s188, 64
        %s191 = smul.u32 64, %s190
        %v193 = vld [vmem:[%s181] sm:$0xf]
        %v194 = vld [vmem:[%s181 + $0x4] sm:$0xf]
        %v195 = vld [vmem:[%s181 + $0x8] sm:$0xf]
        %v196 = vld [vmem:[%s181 + $0xc] sm:$0xf]
        %v197 = vld [vmem:[%s181 + $0x10] sm:$0xf]
        %v198 = vld [vmem:[%s181 + $0x14] sm:$0xf]
        %v199 = vld [vmem:[%s181 + $0x18] sm:$0xf]
        %v200 = vld [vmem:[%s181 + $0x1c] sm:$0xf]
        %v201 = vld [vmem:[%s181 + $0x20] sm:$0xf]
        %v202 = vld [vmem:[%s181 + $0x24] sm:$0xf]
        %v203 = vld [vmem:[%s181 + $0x28] sm:$0xf]
        %v204 = vld [vmem:[%s181 + $0x2c] sm:$0xf]
        %v205 = vld [vmem:[%s181 + $0x30] sm:$0xf]
        %v206 = vld [vmem:[%s181 + $0x34] sm:$0xf]
        %v207 = vld [vmem:[%s181 + $0x38] sm:$0xf]
        %v208 = vld [vmem:[%s181 + $0x3c] sm:$0xf]
        %v209 = vld [vmem:[%s181 + $0x40] sm:$0xf]
        %v210 = vld [vmem:[%s181 + $0x44] sm:$0xf]
        %v211 = vld [vmem:[%s181 + $0x48] sm:$0xf]
        %v212 = vld [vmem:[%s181 + $0x4c] sm:$0xf]
        %v213 = vld [vmem:[%s181 + $0x50] sm:$0xf]
        %v214 = vld [vmem:[%s181 + $0x54] sm:$0xf]
        %v215 = vld [vmem:[%s181 + $0x58] sm:$0xf]
        %v216 = vld [vmem:[%s181 + $0x5c] sm:$0xf]
        %v217 = vld [vmem:[%s181 + $0x60] sm:$0xf]
        %v218 = vld [vmem:[%s181 + $0x64] sm:$0xf]
        %v219 = vld [vmem:[%s181 + $0x68] sm:$0xf]
        %v220 = vld [vmem:[%s181 + $0x6c] sm:$0xf]
        %v221 = vld [vmem:[%s181 + $0x70] sm:$0xf]
        %v222 = vld [vmem:[%s181 + $0x74] sm:$0xf]
        %v223 = vld [vmem:[%s181 + $0x78] sm:$0xf]
        %v224 = vld [vmem:[%s181 + $0x7c] sm:$0xf]
        %v225 = vld [vmem:[%s181 + $0x80] sm:$0xf]
        %v226 = vld [vmem:[%s181 + $0x84] sm:$0xf]
        %v227 = vld [vmem:[%s181 + $0x88] sm:$0xf]
        %v228 = vld [vmem:[%s181 + $0x8c] sm:$0xf]
        %v229 = vld [vmem:[%s181 + $0x90] sm:$0xf]
        %v230 = vld [vmem:[%s181 + $0x94] sm:$0xf]
        %v231 = vld [vmem:[%s181 + $0x98] sm:$0xf]
        %v232 = vld [vmem:[%s181 + $0x9c] sm:$0xf]
        %v233 = vld [vmem:[%s181 + $0xa0] sm:$0xf]
        %v234 = vld [vmem:[%s181 + $0xa4] sm:$0xf]
        %v235 = vld [vmem:[%s181 + $0xa8] sm:$0xf]
        %v236 = vld [vmem:[%s181 + $0xac] sm:$0xf]
        %v237 = vld [vmem:[%s181 + $0xb0] sm:$0xf]
        %v238 = vld [vmem:[%s181 + $0xb4] sm:$0xf]
        %v239 = vld [vmem:[%s181 + $0xb8] sm:$0xf]
        %v240 = vld [vmem:[%s181 + $0xbc] sm:$0xf]
        %v241 = vld [vmem:[%s181 + $0xc0] sm:$0xf]
        %v242 = vld [vmem:[%s181 + $0xc4] sm:$0xf]
        %v243 = vld [vmem:[%s181 + $0xc8] sm:$0xf]
        %v244 = vld [vmem:[%s181 + $0xcc] sm:$0xf]
        %v245 = vld [vmem:[%s181 + $0xd0] sm:$0xf]
        %v246 = vld [vmem:[%s181 + $0xd4] sm:$0xf]
        %v247 = vld [vmem:[%s181 + $0xd8] sm:$0xf]
        %v248 = vld [vmem:[%s181 + $0xdc] sm:$0xf]
        %v249 = vld [vmem:[%s181 + $0xe0] sm:$0xf]
        %v250 = vld [vmem:[%s181 + $0xe4] sm:$0xf]
        %v251 = vld [vmem:[%s181 + $0xe8] sm:$0xf]
        %v252 = vld [vmem:[%s181 + $0xec] sm:$0xf]
        %v253 = vld [vmem:[%s181 + $0xf0] sm:$0xf]
        %v254 = vld [vmem:[%s181 + $0xf4] sm:$0xf]
        %v255 = vld [vmem:[%s181 + $0xf8] sm:$0xf]
        %v256 = vld [vmem:[%s181 + $0xfc] sm:$0xf]
        %v257 = vld [vmem:[%s1] sm:$0xf]
        %v258 = vld [vmem:[%s1 + $0x4] sm:$0xf]
        %v259 = vld [vmem:[%s1 + $0x8] sm:$0xf]
        %v260 = vld [vmem:[%s1 + $0xc] sm:$0xf]
        %v261 = vld [vmem:[%s1 + $0x10] sm:$0xf]
        %v262 = vld [vmem:[%s1 + $0x14] sm:$0xf]
        %v263 = vld [vmem:[%s1 + $0x18] sm:$0xf]
        %v264 = vld [vmem:[%s1 + $0x1c] sm:$0xf]
        %v265 = vld [vmem:[%s1 + $0x20] sm:$0xf]
        %v266 = vld [vmem:[%s1 + $0x24] sm:$0x3]
        %v267 = vld [vmem:[%s2] sm:$0x1]
        %v269 = vlaneseq
        %v270 = vshrl.u32 %v269, 7
        %v271 = vsub.s32 0, %v270
        %v272 = vrot.slane %v267, %v271
        %v338 = vunpack.c.l.b16 %v193
        %v339 = vunpack.c.l.b16 %v194
        %v340 = vunpack.c.l.b16 %v195
        %v341 = vunpack.c.l.b16 %v196
        %v342 = vunpack.c.l.b16 %v197
        %v343 = vunpack.c.l.b16 %v198
        %v344 = vunpack.c.l.b16 %v199
        %v345 = vunpack.c.l.b16 %v200
        %v346 = vunpack.c.l.b16 %v201
        %v347 = vunpack.c.l.b16 %v202
        %v348 = vunpack.c.l.b16 %v203
        %v349 = vunpack.c.l.b16 %v204
        %v350 = vunpack.c.l.b16 %v205
        %v351 = vunpack.c.l.b16 %v206
        %v352 = vunpack.c.l.b16 %v207
        %v353 = vunpack.c.l.b16 %v208
        %v354 = vunpack.c.l.b16 %v209
        %v355 = vunpack.c.l.b16 %v210
        %v356 = vunpack.c.l.b16 %v211
        %v357 = vunpack.c.l.b16 %v212
        %v358 = vunpack.c.l.b16 %v213
        %v359 = vunpack.c.l.b16 %v214
        %v360 = vunpack.c.l.b16 %v215
        %v361 = vunpack.c.l.b16 %v216
        %v362 = vunpack.c.l.b16 %v217
        %v363 = vunpack.c.l.b16 %v218
        %v364 = vunpack.c.l.b16 %v219
        %v365 = vunpack.c.l.b16 %v220
        %v366 = vunpack.c.l.b16 %v221
        %v367 = vunpack.c.l.b16 %v222
        %v368 = vunpack.c.l.b16 %v223
        %v369 = vunpack.c.l.b16 %v224
        %v370 = vunpack.c.l.b16 %v225
        %v371 = vunpack.c.l.b16 %v226
        %v372 = vunpack.c.l.b16 %v227
        %v373 = vunpack.c.l.b16 %v228
        %v374 = vunpack.c.l.b16 %v229
        %v375 = vunpack.c.l.b16 %v230
        %v376 = vunpack.c.l.b16 %v231
        %v377 = vunpack.c.l.b16 %v232
        %v378 = vunpack.c.l.b16 %v233
        %v379 = vunpack.c.l.b16 %v234
        %v380 = vunpack.c.l.b16 %v235
        %v381 = vunpack.c.l.b16 %v236
        %v382 = vunpack.c.l.b16 %v237
        %v383 = vunpack.c.l.b16 %v238
        %v384 = vunpack.c.l.b16 %v239
        %v385 = vunpack.c.l.b16 %v240
        %v386 = vunpack.c.l.b16 %v241
        %v387 = vunpack.c.l.b16 %v242
        %v388 = vunpack.c.l.b16 %v243
        %v389 = vunpack.c.l.b16 %v244
        %v390 = vunpack.c.l.b16 %v245
        %v391 = vunpack.c.l.b16 %v246
        %v392 = vunpack.c.l.b16 %v247
        %v393 = vunpack.c.l.b16 %v248
        %v394 = vunpack.c.l.b16 %v249
        %v395 = vunpack.c.l.b16 %v250
        %v396 = vunpack.c.l.b16 %v251
        %v397 = vunpack.c.l.b16 %v252
        %v398 = vunpack.c.l.b16 %v253
        %v399 = vunpack.c.l.b16 %v254
        %v400 = vunpack.c.l.b16 %v255
        %v401 = vunpack.c.l.b16 %v256
        %v402 = vpack.c.b16 %v339, %v338
        %v403 = vpack.c.b16 %v341, %v340
        %v404 = vpack.c.b16 %v343, %v342
        %v405 = vpack.c.b16 %v345, %v344
        %v406 = vpack.c.b16 %v347, %v346
        %v407 = vpack.c.b16 %v349, %v348
        %v408 = vpack.c.b16 %v351, %v350
        %v409 = vpack.c.b16 %v353, %v352
        %v410 = vpack.c.b16 %v355, %v354
        %v411 = vpack.c.b16 %v357, %v356
        %v412 = vpack.c.b16 %v359, %v358
        %v413 = vpack.c.b16 %v361, %v360
        %v414 = vpack.c.b16 %v363, %v362
        %v415 = vpack.c.b16 %v365, %v364
        %v416 = vpack.c.b16 %v367, %v366
        %v417 = vpack.c.b16 %v369, %v368
        %v418 = vpack.c.b16 %v371, %v370
        %v419 = vpack.c.b16 %v373, %v372
        %v420 = vpack.c.b16 %v375, %v374
        %v421 = vpack.c.b16 %v377, %v376
        %v422 = vpack.c.b16 %v379, %v378
        %v423 = vpack.c.b16 %v381, %v380
        %v424 = vpack.c.b16 %v383, %v382
        %v425 = vpack.c.b16 %v385, %v384
        %v426 = vpack.c.b16 %v387, %v386
        %v427 = vpack.c.b16 %v389, %v388
        %v428 = vpack.c.b16 %v391, %v390
        %v429 = vpack.c.b16 %v393, %v392
        %v430 = vpack.c.b16 %v395, %v394
        %v431 = vpack.c.b16 %v397, %v396
        %v432 = vpack.c.b16 %v399, %v398
        %v433 = vpack.c.b16 %v401, %v400
        %v444 = vunpack.c.l.b16 %v257
        %v445 = vunpack.c.l.b16 %v258
        %v446 = vunpack.c.l.b16 %v259
        %v447 = vunpack.c.l.b16 %v260
        %v448 = vunpack.c.l.b16 %v261
        %v449 = vunpack.c.l.b16 %v262
        %v450 = vunpack.c.l.b16 %v263
        %v451 = vunpack.c.l.b16 %v264
        %v452 = vunpack.c.l.b16 %v265
        %v453 = vunpack.c.l.b16 %v266
        %v454 = vpack.c.b16 %v445, %v444
        %v455 = vpack.c.b16 %v447, %v446
        %v456 = vpack.c.b16 %v449, %v448
        %v457 = vpack.c.b16 %v451, %v450
        %v458 = vpack.c.b16 %v453, %v452
        %vm463 = vcmask 613376
        %v465 = vsel %vm463, %v402, 0
        %v468 = vsel %vm463, %v403, 0
        %v471 = vsel %vm463, %v404, 0
        %v474 = vsel %vm463, %v405, 0
        %v477 = vsel %vm463, %v406, 0
        %v480 = vsel %vm463, %v407, 0
        %v483 = vsel %vm463, %v408, 0
        %v486 = vsel %vm463, %v409, 0
        %v489 = vsel %vm463, %v410, 0
        %v492 = vsel %vm463, %v411, 0
        %v495 = vsel %vm463, %v412, 0
        %v498 = vsel %vm463, %v413, 0
        %v501 = vsel %vm463, %v414, 0
        %v504 = vsel %vm463, %v415, 0
        %v507 = vsel %vm463, %v416, 0
        %v510 = vsel %vm463, %v417, 0
        %v513 = vsel %vm463, %v418, 0
        %v516 = vsel %vm463, %v419, 0
        %v519 = vsel %vm463, %v420, 0
        %v522 = vsel %vm463, %v421, 0
        %v525 = vsel %vm463, %v422, 0
        %v528 = vsel %vm463, %v423, 0
        %v531 = vsel %vm463, %v424, 0
        %v534 = vsel %vm463, %v425, 0
        %v537 = vsel %vm463, %v426, 0
        %v540 = vsel %vm463, %v427, 0
        %v543 = vsel %vm463, %v428, 0
        %v546 = vsel %vm463, %v429, 0
        %v549 = vsel %vm463, %v430, 0
        %v552 = vsel %vm463, %v431, 0
        %v555 = vsel %vm463, %v432, 0
        %v558 = vsel %vm463, %v433, 0
        %vm560 = vcmask 1044480
        %vm561 = vcmask 1045504
        %v562 = vsel %vm560, 4294967295, 65535
        %v563 = vsel %vm561, %v562, 0
        %v565 = vand.u32 %v458, %v563
        %567 = vmatprep.subr.bf16.mxu0 0
        %568 = vmatpush1.bf16.msra.mxu0 %v454
        %569 = vmatprep.subr.bf16.mxu0 0
        %570 = vmatpush1.bf16.msra.mxu0 %v455
        %571 = vmatprep.subr.bf16.mxu0 0
        %572 = vmatpush1.bf16.msra.mxu0 %v456
        %573 = vmatprep.subr.bf16.mxu0 0
        %574 = vmatpush1.bf16.msra.mxu0 %v457
        %575 = vmatprep.subr.bf16.mxu0 0
        %576 = vmatpush1.bf16.msra.mxu0 %v565
        %577 = vmatprep.subr.bf16.mxu0 0
        %578 = vmatpush1.bf16.msra.mxu0 0
        %579 = vmatprep.subr.bf16.mxu0 0
        %580 = vmatpush1.bf16.msra.mxu0 0
        %581 = vmatprep.subr.bf16.mxu0 0
        %582 = vmatpush1.bf16.msra.mxu0 0
        %583 = vmatprep.subr.bf16.mxu0 0
        %584 = vmatpush1.bf16.msra.mxu0 0
        %585 = vmatprep.subr.bf16.mxu0 0
        %586 = vmatpush1.bf16.msra.mxu0 0
        %587 = vmatprep.subr.bf16.mxu0 0
        %588 = vmatpush1.bf16.msra.mxu0 0
        %589 = vmatprep.subr.bf16.mxu0 0
        %590 = vmatpush1.bf16.msra.mxu0 0
        %591 = vmatprep.subr.bf16.mxu0 0
        %592 = vmatpush1.bf16.msra.mxu0 0
        %593 = vmatprep.subr.bf16.mxu0 0
        %594 = vmatpush1.bf16.msra.mxu0 0
        %595 = vmatprep.subr.bf16.mxu0 0
        %596 = vmatpush1.bf16.msra.mxu0 0
        %597 = vmatprep.subr.bf16.mxu0 0
        %598 = vmatpush1.bf16.msra.mxu0 0
        %599 = vmatprep.mubr.bf16.mxu0 0
        %600 = vmatmul.mubr.bf16.gmra.mrb[0].mxu0 %v465
        %v601 = vpop.f32.mrb[0].mxu0
        %v602 = vadd.f32 %v272, %v601
        %v603 = vpop.f32.mrb[0].mxu0
        %v604 = vpop.f32.mrb[0].mxu0
        %v605 = vadd.f32 %v272, %v604
        %v606 = vpop.f32.mrb[0].mxu0
        %607 = vmatprep.mubr.bf16.mxu0 0
        %608 = vmatmul.mubr.bf16.gmra.mrb[0].mxu0 %v468
        %v609 = vpop.f32.mrb[0].mxu0
        %v610 = vadd.f32 %v272, %v609
        %v611 = vpop.f32.mrb[0].mxu0
        %v612 = vpop.f32.mrb[0].mxu0
        %v613 = vadd.f32 %v272, %v612
        %v614 = vpop.f32.mrb[0].mxu0
        %615 = vmatprep.mubr.bf16.mxu0 0
        %616 = vmatmul.mubr.bf16.gmra.mrb[0].mxu0 %v471
        %v617 = vpop.f32.mrb[0].mxu0
        %v618 = vadd.f32 %v272, %v617
        %v619 = vpop.f32.mrb[0].mxu0
        %v620 = vpop.f32.mrb[0].mxu0
        %v621 = vadd.f32 %v272, %v620
        %v622 = vpop.f32.mrb[0].mxu0
        %623 = vmatprep.mubr.bf16.mxu0 0
        %624 = vmatmul.mubr.bf16.gmra.mrb[0].mxu0 %v474
        %v625 = vpop.f32.mrb[0].mxu0
        %v626 = vadd.f32 %v272, %v625
        %v627 = vpop.f32.mrb[0].mxu0
        %v628 = vpop.f32.mrb[0].mxu0
        %v629 = vadd.f32 %v272, %v628
        %v630 = vpop.f32.mrb[0].mxu0
        %631 = vmatprep.mubr.bf16.mxu0 0
        %632 = vmatmul.mubr.bf16.gmra.mrb[0].mxu0 %v477
        %v633 = vpop.f32.mrb[0].mxu0
        %v634 = vadd.f32 %v272, %v633
        %v635 = vpop.f32.mrb[0].mxu0
        %v636 = vpop.f32.mrb[0].mxu0
        %v637 = vadd.f32 %v272, %v636
        %v638 = vpop.f32.mrb[0].mxu0
        %639 = vmatprep.mubr.bf16.mxu0 0
        %640 = vmatmul.mubr.bf16.gmra.mrb[0].mxu0 %v480
        %v641 = vpop.f32.mrb[0].mxu0
        %v642 = vadd.f32 %v272, %v641
        %v643 = vpop.f32.mrb[0].mxu0
        %v644 = vpop.f32.mrb[0].mxu0
        %v645 = vadd.f32 %v272, %v644
        %v646 = vpop.f32.mrb[0].mxu0
        %647 = vmatprep.mubr.bf16.mxu0 0
        %648 = vmatmul.mubr.bf16.gmra.mrb[0].mxu0 %v483
        %v649 = vpop.f32.mrb[0].mxu0
        %v650 = vadd.f32 %v272, %v649
        %v651 = vpop.f32.mrb[0].mxu0
        %v652 = vpop.f32.mrb[0].mxu0
        %v653 = vadd.f32 %v272, %v652
        %v654 = vpop.f32.mrb[0].mxu0
        %655 = vmatprep.mubr.bf16.mxu0 0
        %656 = vmatmul.mubr.bf16.gmra.mrb[0].mxu0 %v486
        %v657 = vpop.f32.mrb[0].mxu0
        %v658 = vadd.f32 %v272, %v657
        %v659 = vpop.f32.mrb[0].mxu0
        %v660 = vpop.f32.mrb[0].mxu0
        %v661 = vadd.f32 %v272, %v660
        %v662 = vpop.f32.mrb[0].mxu0
        %663 = vmatprep.mubr.bf16.mxu0 0
        %664 = vmatmul.mubr.bf16.gmra.mrb[0].mxu0 %v489
        %v665 = vpop.f32.mrb[0].mxu0
        %v666 = vadd.f32 %v272, %v665
        %v667 = vpop.f32.mrb[0].mxu0
        %v668 = vpop.f32.mrb[0].mxu0
        %v669 = vadd.f32 %v272, %v668
        %v670 = vpop.f32.mrb[0].mxu0
        %671 = vmatprep.mubr.bf16.mxu0 0
        %672 = vmatmul.mubr.bf16.gmra.mrb[0].mxu0 %v492
        %v673 = vpop.f32.mrb[0].mxu0
        %v674 = vadd.f32 %v272, %v673
        %v675 = vpop.f32.mrb[0].mxu0
        %v676 = vpop.f32.mrb[0].mxu0
        %v677 = vadd.f32 %v272, %v676
        %v678 = vpop.f32.mrb[0].mxu0
        %679 = vmatprep.mubr.bf16.mxu0 0
        %680 = vmatmul.mubr.bf16.gmra.mrb[0].mxu0 %v495
        %v681 = vpop.f32.mrb[0].mxu0
        %v682 = vadd.f32 %v272, %v681
        %v683 = vpop.f32.mrb[0].mxu0
        %v684 = vpop.f32.mrb[0].mxu0
        %v685 = vadd.f32 %v272, %v684
        %v686 = vpop.f32.mrb[0].mxu0
        %687 = vmatprep.mubr.bf16.mxu0 0
        %688 = vmatmul.mubr.bf16.gmra.mrb[0].mxu0 %v498
        %v689 = vpop.f32.mrb[0].mxu0
        %v690 = vadd.f32 %v272, %v689
        %v691 = vpop.f32.mrb[0].mxu0
        %v692 = vpop.f32.mrb[0].mxu0
        %v693 = vadd.f32 %v272, %v692
        %v694 = vpop.f32.mrb[0].mxu0
        %695 = vmatprep.mubr.bf16.mxu0 0
        %696 = vmatmul.mubr.bf16.gmra.mrb[0].mxu0 %v501
        %v697 = vpop.f32.mrb[0].mxu0
        %v698 = vadd.f32 %v272, %v697
        %v699 = vpop.f32.mrb[0].mxu0
        %v700 = vpop.f32.mrb[0].mxu0
        %v701 = vadd.f32 %v272, %v700
        %v702 = vpop.f32.mrb[0].mxu0
        %703 = vmatprep.mubr.bf16.mxu0 0
        %704 = vmatmul.mubr.bf16.gmra.mrb[0].mxu0 %v504
        %v705 = vpop.f32.mrb[0].mxu0
        %v706 = vadd.f32 %v272, %v705
        %v707 = vpop.f32.mrb[0].mxu0
        %v708 = vpop.f32.mrb[0].mxu0
        %v709 = vadd.f32 %v272, %v708
        %v710 = vpop.f32.mrb[0].mxu0
        %711 = vmatprep.mubr.bf16.mxu0 0
        %712 = vmatmul.mubr.bf16.gmra.mrb[0].mxu0 %v507
        %v713 = vpop.f32.mrb[0].mxu0
        %v714 = vadd.f32 %v272, %v713
        %v715 = vpop.f32.mrb[0].mxu0
        %v716 = vpop.f32.mrb[0].mxu0
        %v717 = vadd.f32 %v272, %v716
        %v718 = vpop.f32.mrb[0].mxu0
        %719 = vmatprep.mubr.bf16.mxu0 0
        %720 = vmatmul.mubr.bf16.gmra.mrb[0].mxu0 %v510
        %v721 = vpop.f32.mrb[0].mxu0
        %v722 = vadd.f32 %v272, %v721
        %v723 = vpop.f32.mrb[0].mxu0
        %v724 = vpop.f32.mrb[0].mxu0
        %v725 = vadd.f32 %v272, %v724
        %v726 = vpop.f32.mrb[0].mxu0
        %727 = vmatprep.mubr.bf16.mxu0 0
        %728 = vmatmul.mubr.bf16.gmra.mrb[0].mxu0 %v513
        %v729 = vpop.f32.mrb[0].mxu0
        %v730 = vadd.f32 %v272, %v729
        %v731 = vpop.f32.mrb[0].mxu0
        %v732 = vpop.f32.mrb[0].mxu0
        %v733 = vadd.f32 %v272, %v732
        %v734 = vpop.f32.mrb[0].mxu0
        %735 = vmatprep.mubr.bf16.mxu0 0
        %736 = vmatmul.mubr.bf16.gmra.mrb[0].mxu0 %v516
        %v737 = vpop.f32.mrb[0].mxu0
        %v738 = vadd.f32 %v272, %v737
        %v739 = vpop.f32.mrb[0].mxu0
        %v740 = vpop.f32.mrb[0].mxu0
        %v741 = vadd.f32 %v272, %v740
        %v742 = vpop.f32.mrb[0].mxu0
        %743 = vmatprep.mubr.bf16.mxu0 0
        %744 = vmatmul.mubr.bf16.gmra.mrb[0].mxu0 %v519
        %v745 = vpop.f32.mrb[0].mxu0
        %v746 = vadd.f32 %v272, %v745
        %v747 = vpop.f32.mrb[0].mxu0
        %v748 = vpop.f32.mrb[0].mxu0
        %v749 = vadd.f32 %v272, %v748
        %v750 = vpop.f32.mrb[0].mxu0
        %751 = vmatprep.mubr.bf16.mxu0 0
        %752 = vmatmul.mubr.bf16.gmra.mrb[0].mxu0 %v522
        %v753 = vpop.f32.mrb[0].mxu0
        %v754 = vadd.f32 %v272, %v753
        %v755 = vpop.f32.mrb[0].mxu0
        %v756 = vpop.f32.mrb[0].mxu0
        %v757 = vadd.f32 %v272, %v756
        %v758 = vpop.f32.mrb[0].mxu0
        %759 = vmatprep.mubr.bf16.mxu0 0
        %760 = vmatmul.mubr.bf16.gmra.mrb[0].mxu0 %v525
        %v761 = vpop.f32.mrb[0].mxu0
        %v762 = vadd.f32 %v272, %v761
        %v763 = vpop.f32.mrb[0].mxu0
        %v764 = vpop.f32.mrb[0].mxu0
        %v765 = vadd.f32 %v272, %v764
        %v766 = vpop.f32.mrb[0].mxu0
        %767 = vmatprep.mubr.bf16.mxu0 0
        %768 = vmatmul.mubr.bf16.gmra.mrb[0].mxu0 %v528
        %v769 = vpop.f32.mrb[0].mxu0
        %v770 = vadd.f32 %v272, %v769
        %v771 = vpop.f32.mrb[0].mxu0
        %v772 = vpop.f32.mrb[0].mxu0
        %v773 = vadd.f32 %v272, %v772
        %v774 = vpop.f32.mrb[0].mxu0
        %775 = vmatprep.mubr.bf16.mxu0 0
        %776 = vmatmul.mubr.bf16.gmra.mrb[0].mxu0 %v531
        %v777 = vpop.f32.mrb[0].mxu0
        %v778 = vadd.f32 %v272, %v777
        %v779 = vpop.f32.mrb[0].mxu0
        %v780 = vpop.f32.mrb[0].mxu0
        %v781 = vadd.f32 %v272, %v780
        %v782 = vpop.f32.mrb[0].mxu0
        %783 = vmatprep.mubr.bf16.mxu0 0
        %784 = vmatmul.mubr.bf16.gmra.mrb[0].mxu0 %v534
        %v785 = vpop.f32.mrb[0].mxu0
        %v786 = vadd.f32 %v272, %v785
        %v787 = vpop.f32.mrb[0].mxu0
        %v788 = vpop.f32.mrb[0].mxu0
        %v789 = vadd.f32 %v272, %v788
        %v790 = vpop.f32.mrb[0].mxu0
        %791 = vmatprep.mubr.bf16.mxu0 0
        %792 = vmatmul.mubr.bf16.gmra.mrb[0].mxu0 %v537
        %v793 = vpop.f32.mrb[0].mxu0
        %v794 = vadd.f32 %v272, %v793
        %v795 = vpop.f32.mrb[0].mxu0
        %v796 = vpop.f32.mrb[0].mxu0
        %v797 = vadd.f32 %v272, %v796
        %v798 = vpop.f32.mrb[0].mxu0
        %799 = vmatprep.mubr.bf16.mxu0 0
        %800 = vmatmul.mubr.bf16.gmra.mrb[0].mxu0 %v540
        %v801 = vpop.f32.mrb[0].mxu0
        %v802 = vadd.f32 %v272, %v801
        %v803 = vpop.f32.mrb[0].mxu0
        %v804 = vpop.f32.mrb[0].mxu0
        %v805 = vadd.f32 %v272, %v804
        %v806 = vpop.f32.mrb[0].mxu0
        %807 = vmatprep.mubr.bf16.mxu0 0
        %808 = vmatmul.mubr.bf16.gmra.mrb[0].mxu0 %v543
        %v809 = vpop.f32.mrb[0].mxu0
        %v810 = vadd.f32 %v272, %v809
        %v811 = vpop.f32.mrb[0].mxu0
        %v812 = vpop.f32.mrb[0].mxu0
        %v813 = vadd.f32 %v272, %v812
        %v814 = vpop.f32.mrb[0].mxu0
        %815 = vmatprep.mubr.bf16.mxu0 0
        %816 = vmatmul.mubr.bf16.gmra.mrb[0].mxu0 %v546
        %v817 = vpop.f32.mrb[0].mxu0
        %v818 = vadd.f32 %v272, %v817
        %v819 = vpop.f32.mrb[0].mxu0
        %v820 = vpop.f32.mrb[0].mxu0
        %v821 = vadd.f32 %v272, %v820
        %v822 = vpop.f32.mrb[0].mxu0
        %823 = vmatprep.mubr.bf16.mxu0 0
        %824 = vmatmul.mubr.bf16.gmra.mrb[0].mxu0 %v549
        %v825 = vpop.f32.mrb[0].mxu0
        %v826 = vadd.f32 %v272, %v825
        %v827 = vpop.f32.mrb[0].mxu0
        %v828 = vpop.f32.mrb[0].mxu0
        %v829 = vadd.f32 %v272, %v828
        %v830 = vpop.f32.mrb[0].mxu0
        %831 = vmatprep.mubr.bf16.mxu0 0
        %832 = vmatmul.mubr.bf16.gmra.mrb[0].mxu0 %v552
        %v833 = vpop.f32.mrb[0].mxu0
        %v834 = vadd.f32 %v272, %v833
        %v835 = vpop.f32.mrb[0].mxu0
        %v836 = vpop.f32.mrb[0].mxu0
        %v837 = vadd.f32 %v272, %v836
        %v838 = vpop.f32.mrb[0].mxu0
        %839 = vmatprep.mubr.bf16.mxu0 0
        %840 = vmatmul.mubr.bf16.gmra.mrb[0].mxu0 %v555
        %v841 = vpop.f32.mrb[0].mxu0
        %v842 = vadd.f32 %v272, %v841
        %v843 = vpop.f32.mrb[0].mxu0
        %v844 = vpop.f32.mrb[0].mxu0
        %v845 = vadd.f32 %v272, %v844
        %v846 = vpop.f32.mrb[0].mxu0
        %847 = vmatprep.mubr.bf16.mxu0 0
        %848 = vmatmul.mubr.bf16.gmra.mrb[0].mxu0 %v558
        %v849 = vpop.f32.mrb[0].mxu0
        %v850 = vadd.f32 %v272, %v849
        %v851 = vpop.f32.mrb[0].mxu0
        %v852 = vpop.f32.mrb[0].mxu0
        %v853 = vadd.f32 %v272, %v852
        %v854 = vpop.f32.mrb[0].mxu0
        %855 = vdwg.mxu0
        %v856 = vmax.f32 %v602, 0.0
        %v857 = vmax.f32 %v605, 0.0
        %v858 = vmax.f32 %v610, 0.0
        %v859 = vmax.f32 %v613, 0.0
        %v860 = vmax.f32 %v618, 0.0
        %v861 = vmax.f32 %v621, 0.0
        %v862 = vmax.f32 %v626, 0.0
        %v863 = vmax.f32 %v629, 0.0
        %v864 = vmax.f32 %v634, 0.0
        %v865 = vmax.f32 %v637, 0.0
        %v866 = vmax.f32 %v642, 0.0
        %v867 = vmax.f32 %v645, 0.0
        %v868 = vmax.f32 %v650, 0.0
        %v869 = vmax.f32 %v653, 0.0
        %v870 = vmax.f32 %v658, 0.0
        %v871 = vmax.f32 %v661, 0.0
        %v872 = vmax.f32 %v666, 0.0
        %v873 = vmax.f32 %v669, 0.0
        %v874 = vmax.f32 %v674, 0.0
        %v875 = vmax.f32 %v677, 0.0
        %v876 = vmax.f32 %v682, 0.0
        %v877 = vmax.f32 %v685, 0.0
        %v878 = vmax.f32 %v690, 0.0
        %v879 = vmax.f32 %v693, 0.0
        %v880 = vmax.f32 %v698, 0.0
        %v881 = vmax.f32 %v701, 0.0
        %v882 = vmax.f32 %v706, 0.0
        %v883 = vmax.f32 %v709, 0.0
        %v884 = vmax.f32 %v714, 0.0
        %v885 = vmax.f32 %v717, 0.0
        %v886 = vmax.f32 %v722, 0.0
        %v887 = vmax.f32 %v725, 0.0
        %v888 = vmax.f32 %v730, 0.0
        %v889 = vmax.f32 %v733, 0.0
        %v890 = vmax.f32 %v738, 0.0
        %v891 = vmax.f32 %v741, 0.0
        %v892 = vmax.f32 %v746, 0.0
        %v893 = vmax.f32 %v749, 0.0
        %v894 = vmax.f32 %v754, 0.0
        %v895 = vmax.f32 %v757, 0.0
        %v896 = vmax.f32 %v762, 0.0
        %v897 = vmax.f32 %v765, 0.0
        %v898 = vmax.f32 %v770, 0.0
        %v899 = vmax.f32 %v773, 0.0
        %v900 = vmax.f32 %v778, 0.0
        %v901 = vmax.f32 %v781, 0.0
        %v902 = vmax.f32 %v786, 0.0
        %v903 = vmax.f32 %v789, 0.0
        %v904 = vmax.f32 %v794, 0.0
        %v905 = vmax.f32 %v797, 0.0
        %v906 = vmax.f32 %v802, 0.0
        %v907 = vmax.f32 %v805, 0.0
        %v908 = vmax.f32 %v810, 0.0
        %v909 = vmax.f32 %v813, 0.0
        %v910 = vmax.f32 %v818, 0.0
        %v911 = vmax.f32 %v821, 0.0
        %v912 = vmax.f32 %v826, 0.0
        %v913 = vmax.f32 %v829, 0.0
        %v914 = vmax.f32 %v834, 0.0
        %v915 = vmax.f32 %v837, 0.0
        %v916 = vmax.f32 %v842, 0.0
        %v917 = vmax.f32 %v845, 0.0
        %v918 = vmax.f32 %v850, 0.0
        %v919 = vmax.f32 %v853, 0.0
        %v920 = vpack.c.bf16 %v857, %v856
        %v921 = vpack.c.bf16 %v859, %v858
        %v922 = vpack.c.bf16 %v861, %v860
        %v923 = vpack.c.bf16 %v863, %v862
        %v924 = vpack.c.bf16 %v865, %v864
        %v925 = vpack.c.bf16 %v867, %v866
        %v926 = vpack.c.bf16 %v869, %v868
        %v927 = vpack.c.bf16 %v871, %v870
        %v928 = vpack.c.bf16 %v873, %v872
        %v929 = vpack.c.bf16 %v875, %v874
        %v930 = vpack.c.bf16 %v877, %v876
        %v931 = vpack.c.bf16 %v879, %v878
        %v932 = vpack.c.bf16 %v881, %v880
        %v933 = vpack.c.bf16 %v883, %v882
        %v934 = vpack.c.bf16 %v885, %v884
        %v935 = vpack.c.bf16 %v887, %v886
        %v936 = vpack.c.bf16 %v889, %v888
        %v937 = vpack.c.bf16 %v891, %v890
        %v938 = vpack.c.bf16 %v893, %v892
        %v939 = vpack.c.bf16 %v895, %v894
        %v940 = vpack.c.bf16 %v897, %v896
        %v941 = vpack.c.bf16 %v899, %v898
        %v942 = vpack.c.bf16 %v901, %v900
        %v943 = vpack.c.bf16 %v903, %v902
        %v944 = vpack.c.bf16 %v905, %v904
        %v945 = vpack.c.bf16 %v907, %v906
        %v946 = vpack.c.bf16 %v909, %v908
        %v947 = vpack.c.bf16 %v911, %v910
        %v948 = vpack.c.bf16 %v913, %v912
        %v949 = vpack.c.bf16 %v915, %v914
        %v950 = vpack.c.bf16 %v917, %v916
        %v951 = vpack.c.bf16 %v919, %v918
        %v984 = vunpack.c.l.b16 %v920
        %v985 = vunpack.c.h.b16 %v920
        %v986 = vunpack.c.l.b16 %v921
        %v987 = vunpack.c.h.b16 %v921
        %v988 = vunpack.c.l.b16 %v922
        %v989 = vunpack.c.h.b16 %v922
        %v990 = vunpack.c.l.b16 %v923
        %v991 = vunpack.c.h.b16 %v923
        %v992 = vunpack.c.l.b16 %v924
        %v993 = vunpack.c.h.b16 %v924
        %v994 = vunpack.c.l.b16 %v925
        %v995 = vunpack.c.h.b16 %v925
        %v996 = vunpack.c.l.b16 %v926
        %v997 = vunpack.c.h.b16 %v926
        %v998 = vunpack.c.l.b16 %v927
        %v999 = vunpack.c.h.b16 %v927
        %v1000 = vunpack.c.l.b16 %v928
        %v1001 = vunpack.c.h.b16 %v928
        %v1002 = vunpack.c.l.b16 %v929
        %v1003 = vunpack.c.h.b16 %v929
        %v1004 = vunpack.c.l.b16 %v930
        %v1005 = vunpack.c.h.b16 %v930
        %v1006 = vunpack.c.l.b16 %v931
        %v1007 = vunpack.c.h.b16 %v931
        %v1008 = vunpack.c.l.b16 %v932
        %v1009 = vunpack.c.h.b16 %v932
        %v1010 = vunpack.c.l.b16 %v933
        %v1011 = vunpack.c.h.b16 %v933
        %v1012 = vunpack.c.l.b16 %v934
        %v1013 = vunpack.c.h.b16 %v934
        %v1014 = vunpack.c.l.b16 %v935
        %v1015 = vunpack.c.h.b16 %v935
        %v1016 = vunpack.c.l.b16 %v936
        %v1017 = vunpack.c.h.b16 %v936
        %v1018 = vunpack.c.l.b16 %v937
        %v1019 = vunpack.c.h.b16 %v937
        %v1020 = vunpack.c.l.b16 %v938
        %v1021 = vunpack.c.h.b16 %v938
        %v1022 = vunpack.c.l.b16 %v939
        %v1023 = vunpack.c.h.b16 %v939
        %v1024 = vunpack.c.l.b16 %v940
        %v1025 = vunpack.c.h.b16 %v940
        %v1026 = vunpack.c.l.b16 %v941
        %v1027 = vunpack.c.h.b16 %v941
        %v1028 = vunpack.c.l.b16 %v942
        %v1029 = vunpack.c.h.b16 %v942
        %v1030 = vunpack.c.l.b16 %v943
        %v1031 = vunpack.c.h.b16 %v943
        %v1032 = vunpack.c.l.b16 %v944
        %v1033 = vunpack.c.h.b16 %v944
        %v1034 = vunpack.c.l.b16 %v945
        %v1035 = vunpack.c.h.b16 %v945
        %v1036 = vunpack.c.l.b16 %v946
        %v1037 = vunpack.c.h.b16 %v946
        %v1038 = vunpack.c.l.b16 %v947
        %v1039 = vunpack.c.h.b16 %v947
        %v1040 = vunpack.c.l.b16 %v948
        %v1041 = vunpack.c.h.b16 %v948
        %v1042 = vunpack.c.l.b16 %v949
        %v1043 = vunpack.c.h.b16 %v949
        %v1044 = vunpack.c.l.b16 %v950
        %v1045 = vunpack.c.h.b16 %v950
        %v1046 = vunpack.c.l.b16 %v951
        %v1047 = vunpack.c.h.b16 %v951
        %v1048 = vpack.c.b16 %v984, %v984
        %v1049 = vpack.c.b16 %v985, %v985
        %v1050 = vpack.c.b16 %v986, %v986
        %v1051 = vpack.c.b16 %v987, %v987
        %v1052 = vpack.c.b16 %v988, %v988
        %v1053 = vpack.c.b16 %v989, %v989
        %v1054 = vpack.c.b16 %v990, %v990
        %v1055 = vpack.c.b16 %v991, %v991
        %v1056 = vpack.c.b16 %v992, %v992
        %v1057 = vpack.c.b16 %v993, %v993
        %v1058 = vpack.c.b16 %v994, %v994
        %v1059 = vpack.c.b16 %v995, %v995
        %v1060 = vpack.c.b16 %v996, %v996
        %v1061 = vpack.c.b16 %v997, %v997
        %v1062 = vpack.c.b16 %v998, %v998
        %v1063 = vpack.c.b16 %v999, %v999
        %v1064 = vpack.c.b16 %v1000, %v1000
        %v1065 = vpack.c.b16 %v1001, %v1001
        %v1066 = vpack.c.b16 %v1002, %v1002
        %v1067 = vpack.c.b16 %v1003, %v1003
        %v1068 = vpack.c.b16 %v1004, %v1004
        %v1069 = vpack.c.b16 %v1005, %v1005
        %v1070 = vpack.c.b16 %v1006, %v1006
        %v1071 = vpack.c.b16 %v1007, %v1007
        %v1072 = vpack.c.b16 %v1008, %v1008
        %v1073 = vpack.c.b16 %v1009, %v1009
        %v1074 = vpack.c.b16 %v1010, %v1010
        %v1075 = vpack.c.b16 %v1011, %v1011
        %v1076 = vpack.c.b16 %v1012, %v1012
        %v1077 = vpack.c.b16 %v1013, %v1013
        %v1078 = vpack.c.b16 %v1014, %v1014
        %v1079 = vpack.c.b16 %v1015, %v1015
        %v1080 = vpack.c.b16 %v1016, %v1016
        %v1081 = vpack.c.b16 %v1017, %v1017
        %v1082 = vpack.c.b16 %v1018, %v1018
        %v1083 = vpack.c.b16 %v1019, %v1019
        %v1084 = vpack.c.b16 %v1020, %v1020
        %v1085 = vpack.c.b16 %v1021, %v1021
        %v1086 = vpack.c.b16 %v1022, %v1022
        %v1087 = vpack.c.b16 %v1023, %v1023
        %v1088 = vpack.c.b16 %v1024, %v1024
        %v1089 = vpack.c.b16 %v1025, %v1025
        %v1090 = vpack.c.b16 %v1026, %v1026
        %v1091 = vpack.c.b16 %v1027, %v1027
        %v1092 = vpack.c.b16 %v1028, %v1028
        %v1093 = vpack.c.b16 %v1029, %v1029
        %v1094 = vpack.c.b16 %v1030, %v1030
        %v1095 = vpack.c.b16 %v1031, %v1031
        %v1096 = vpack.c.b16 %v1032, %v1032
        %v1097 = vpack.c.b16 %v1033, %v1033
        %v1098 = vpack.c.b16 %v1034, %v1034
        %v1099 = vpack.c.b16 %v1035, %v1035
        %v1100 = vpack.c.b16 %v1036, %v1036
        %v1101 = vpack.c.b16 %v1037, %v1037
        %v1102 = vpack.c.b16 %v1038, %v1038
        %v1103 = vpack.c.b16 %v1039, %v1039
        %v1104 = vpack.c.b16 %v1040, %v1040
        %v1105 = vpack.c.b16 %v1041, %v1041
        %v1106 = vpack.c.b16 %v1042, %v1042
        %v1107 = vpack.c.b16 %v1043, %v1043
        %v1108 = vpack.c.b16 %v1044, %v1044
        %v1109 = vpack.c.b16 %v1045, %v1045
        %v1110 = vpack.c.b16 %v1046, %v1046
        %v1111 = vpack.c.b16 %v1047, %v1047
        %vm1176 = vcmask 257024
        %1177 = vst.msk [vmem:[%s172] sm:$0xf] %vm1176, %v1048
        %1178 = vst.msk [vmem:[%s172 + $0x4] sm:$0xf] %vm1176, %v1049
        %1179 = vst.msk [vmem:[%s172 + $0x8] sm:$0xf] %vm1176, %v1050
        %1180 = vst.msk [vmem:[%s172 + $0xc] sm:$0xf] %vm1176, %v1051
        %1181 = vst.msk [vmem:[%s172 + $0x10] sm:$0xf] %vm1176, %v1052
        %1182 = vst.msk [vmem:[%s172 + $0x14] sm:$0xf] %vm1176, %v1053
        %1183 = vst.msk [vmem:[%s172 + $0x18] sm:$0xf] %vm1176, %v1054
        %1184 = vst.msk [vmem:[%s172 + $0x1c] sm:$0xf] %vm1176, %v1055
        %1185 = vst.msk [vmem:[%s172 + $0x20] sm:$0xf] %vm1176, %v1056
        %1186 = vst.msk [vmem:[%s172 + $0x24] sm:$0xf] %vm1176, %v1057
        %1187 = vst.msk [vmem:[%s172 + $0x28] sm:$0xf] %vm1176, %v1058
        %1188 = vst.msk [vmem:[%s172 + $0x2c] sm:$0xf] %vm1176, %v1059
        %1189 = vst.msk [vmem:[%s172 + $0x30] sm:$0xf] %vm1176, %v1060
        %1190 = vst.msk [vmem:[%s172 + $0x34] sm:$0xf] %vm1176, %v1061
        %1191 = vst.msk [vmem:[%s172 + $0x38] sm:$0xf] %vm1176, %v1062
        %1192 = vst.msk [vmem:[%s172 + $0x3c] sm:$0xf] %vm1176, %v1063
        %1193 = vst.msk [vmem:[%s172 + $0x40] sm:$0xf] %vm1176, %v1064
        %1194 = vst.msk [vmem:[%s172 + $0x44] sm:$0xf] %vm1176, %v1065
        %1195 = vst.msk [vmem:[%s172 + $0x48] sm:$0xf] %vm1176, %v1066
        %1196 = vst.msk [vmem:[%s172 + $0x4c] sm:$0xf] %vm1176, %v1067
        %1197 = vst.msk [vmem:[%s172 + $0x50] sm:$0xf] %vm1176, %v1068
        %1198 = vst.msk [vmem:[%s172 + $0x54] sm:$0xf] %vm1176, %v1069
        %1199 = vst.msk [vmem:[%s172 + $0x58] sm:$0xf] %vm1176, %v1070
        %1200 = vst.msk [vmem:[%s172 + $0x5c] sm:$0xf] %vm1176, %v1071
        %1201 = vst.msk [vmem:[%s172 + $0x60] sm:$0xf] %vm1176, %v1072
        %1202 = vst.msk [vmem:[%s172 + $0x64] sm:$0xf] %vm1176, %v1073
        %1203 = vst.msk [vmem:[%s172 + $0x68] sm:$0xf] %vm1176, %v1074
        %1204 = vst.msk [vmem:[%s172 + $0x6c] sm:$0xf] %vm1176, %v1075
        %1205 = vst.msk [vmem:[%s172 + $0x70] sm:$0xf] %vm1176, %v1076
        %1206 = vst.msk [vmem:[%s172 + $0x74] sm:$0xf] %vm1176, %v1077
        %1207 = vst.msk [vmem:[%s172 + $0x78] sm:$0xf] %vm1176, %v1078
        %1208 = vst.msk [vmem:[%s172 + $0x7c] sm:$0xf] %vm1176, %v1079
        %1209 = vst.msk [vmem:[%s172 + $0x80] sm:$0xf] %vm1176, %v1080
        %1210 = vst.msk [vmem:[%s172 + $0x84] sm:$0xf] %vm1176, %v1081
        %1211 = vst.msk [vmem:[%s172 + $0x88] sm:$0xf] %vm1176, %v1082
        %1212 = vst.msk [vmem:[%s172 + $0x8c] sm:$0xf] %vm1176, %v1083
        %1213 = vst.msk [vmem:[%s172 + $0x90] sm:$0xf] %vm1176, %v1084
        %1214 = vst.msk [vmem:[%s172 + $0x94] sm:$0xf] %vm1176, %v1085
        %1215 = vst.msk [vmem:[%s172 + $0x98] sm:$0xf] %vm1176, %v1086
        %1216 = vst.msk [vmem:[%s172 + $0x9c] sm:$0xf] %vm1176, %v1087
        %1217 = vst.msk [vmem:[%s172 + $0xa0] sm:$0xf] %vm1176, %v1088
        %1218 = vst.msk [vmem:[%s172 + $0xa4] sm:$0xf] %vm1176, %v1089
        %1219 = vst.msk [vmem:[%s172 + $0xa8] sm:$0xf] %vm1176, %v1090
        %1220 = vst.msk [vmem:[%s172 + $0xac] sm:$0xf] %vm1176, %v1091
        %1221 = vst.msk [vmem:[%s172 + $0xb0] sm:$0xf] %vm1176, %v1092
        %1222 = vst.msk [vmem:[%s172 + $0xb4] sm:$0xf] %vm1176, %v1093
        %1223 = vst.msk [vmem:[%s172 + $0xb8] sm:$0xf] %vm1176, %v1094
        %1224 = vst.msk [vmem:[%s172 + $0xbc] sm:$0xf] %vm1176, %v1095
        %1225 = vst.msk [vmem:[%s172 + $0xc0] sm:$0xf] %vm1176, %v1096
        %1226 = vst.msk [vmem:[%s172 + $0xc4] sm:$0xf] %vm1176, %v1097
        %1227 = vst.msk [vmem:[%s172 + $0xc8] sm:$0xf] %vm1176, %v1098
        %1228 = vst.msk [vmem:[%s172 + $0xcc] sm:$0xf] %vm1176, %v1099
        %1229 = vst.msk [vmem:[%s172 + $0xd0] sm:$0xf] %vm1176, %v1100
        %1230 = vst.msk [vmem:[%s172 + $0xd4] sm:$0xf] %vm1176, %v1101
        %1231 = vst.msk [vmem:[%s172 + $0xd8] sm:$0xf] %vm1176, %v1102
        %1232 = vst.msk [vmem:[%s172 + $0xdc] sm:$0xf] %vm1176, %v1103
        %1233 = vst.msk [vmem:[%s172 + $0xe0] sm:$0xf] %vm1176, %v1104
        %1234 = vst.msk [vmem:[%s172 + $0xe4] sm:$0xf] %vm1176, %v1105
        %1235 = vst.msk [vmem:[%s172 + $0xe8] sm:$0xf] %vm1176, %v1106
        %1236 = vst.msk [vmem:[%s172 + $0xec] sm:$0xf] %vm1176, %v1107
        %1237 = vst.msk [vmem:[%s172 + $0xf0] sm:$0xf] %vm1176, %v1108
        %1238 = vst.msk [vmem:[%s172 + $0xf4] sm:$0xf] %vm1176, %v1109
        %1239 = vst.msk [vmem:[%s172 + $0xf8] sm:$0xf] %vm1176, %v1110
        %1240 = vst.msk [vmem:[%s172 + $0xfc] sm:$0xf] %vm1176, %v1111
        %s1241 = sand.u32 %s90, 1
        %s1242 = sand.u32 %s90, 1
        %s1243 = smul.addr %s1242, 256
        %s1244 = scalar_lea.vmem [#allocation2], %s1243
        // Predicated region
        $region33: #{encoder_cnn_forward.5} parent=31 // pred_check
          %p1245 = pneg %p100
        $region34: #{encoder_cnn_forward.5} parent=31 // pred_check_branch
          %1247 = sbr.rel (%p1245) target = $region36
        $region35: #{encoder_cnn_forward.5} parent=31 // pred_region
          %s1248 = smul.u32 64, %s14
          %s1249 = ssub.s32 113, %s1248
          %p1250 = scmp.lt.s32.totalorder %s1249, 64
          %s1251 = scalar_select %p1250, %s1249, 64
          %s1252 = smul.u32 64, %s1251
          %p1253 = scmp.ne.s32.totalorder 0, %s1252
          %s1254 = smul.addr %s1248, 4
          %s1255 = scalar_lea.vmem %s3, %s1254
          // Predicated region
          $region37: #{encoder_cnn_forward.5} parent=35 // pred_check
            %p1256 = pneg %p1253
          $region38: #{encoder_cnn_forward.5} parent=35 // pred_check_branch
            %1258 = sbr.rel (%p1256) target = $region40
          $region39: #{encoder_cnn_forward.5} parent=35 // pred_region
            // Predicated region
            $region41: #{encoder_cnn_forward.5} parent=39 // pred_check
              _
            $region42: #{encoder_cnn_forward.5} parent=39 // pred_check_branch
              %1260 = sbr.rel target = $region44
            $region43: #{encoder_cnn_forward.5} parent=39 // pred_region
              // Predicated region
              $region63: #{encoder_cnn_forward.5} parent=43 // pred_check
                _
              $region64: #{encoder_cnn_forward.5} parent=43 // pred_check_branch
                %1435 = sbr.rel (0) target = $region66
              $region65: #{encoder_cnn_forward.5} parent=43 // pred_region
                %s1437 = sshrl.u32 %s1251, 6
                // While loop
                $region67: #{encoder_cnn_forward.5} parent=65 // loop_pre_header
                  _
                $region68: #{encoder_cnn_forward.5} parent=65 // loop_header
                  %s1439 = sphi 0, %s1441
                  %p1440 = scmp.ge.s32.totalorder %s1439, %s1437
                  %s1444 = sphi 0, %s1577
                  %s1445 = sphi %s1244, %s1580
                  %s1446 = sphi %s1255, %s1581
                $region69: #{encoder_cnn_forward.5} parent=65 // loop_header_branch
                  %1443 = sbr.rel (%p1440) target = $region73
                $region70: #{encoder_cnn_forward.5} parent=65 // loop_body
                  %v1447 = vld [vmem:[%s1445] sm:$0xf]
                  %1448 = vst [vmem:[%s1446] sm:$0xf] %v1447
                  %v1449 = vld [vmem:[%s1445 + $0x4] sm:$0xf]
                  %1450 = vst [vmem:[%s1446 + $0x4] sm:$0xf] %v1449
                  %v1451 = vld [vmem:[%s1445 + $0x8] sm:$0xf]
                  %1452 = vst [vmem:[%s1446 + $0x8] sm:$0xf] %v1451
                  %v1453 = vld [vmem:[%s1445 + $0xc] sm:$0xf]
                  %1454 = vst [vmem:[%s1446 + $0xc] sm:$0xf] %v1453
                  %v1455 = vld [vmem:[%s1445 + $0x10] sm:$0xf]
                  %1456 = vst [vmem:[%s1446 + $0x10] sm:$0xf] %v1455
                  %v1457 = vld [vmem:[%s1445 + $0x14] sm:$0xf]
                  %1458 = vst [vmem:[%s1446 + $0x14] sm:$0xf] %v1457
                  %v1459 = vld [vmem:[%s1445 + $0x18] sm:$0xf]
                  %1460 = vst [vmem:[%s1446 + $0x18] sm:$0xf] %v1459
                  %v1461 = vld [vmem:[%s1445 + $0x1c] sm:$0xf]
                  %1462 = vst [vmem:[%s1446 + $0x1c] sm:$0xf] %v1461
                  %v1463 = vld [vmem:[%s1445 + $0x20] sm:$0xf]
                  %1464 = vst [vmem:[%s1446 + $0x20] sm:$0xf] %v1463
                  %v1465 = vld [vmem:[%s1445 + $0x24] sm:$0xf]
                  %1466 = vst [vmem:[%s1446 + $0x24] sm:$0xf] %v1465
                  %v1467 = vld [vmem:[%s1445 + $0x28] sm:$0xf]
                  %1468 = vst [vmem:[%s1446 + $0x28] sm:$0xf] %v1467
                  %v1469 = vld [vmem:[%s1445 + $0x2c] sm:$0xf]
                  %1470 = vst [vmem:[%s1446 + $0x2c] sm:$0xf] %v1469
                  %v1471 = vld [vmem:[%s1445 + $0x30] sm:$0xf]
                  %1472 = vst [vmem:[%s1446 + $0x30] sm:$0xf] %v1471
                  %v1473 = vld [vmem:[%s1445 + $0x34] sm:$0xf]
                  %1474 = vst [vmem:[%s1446 + $0x34] sm:$0xf] %v1473
                  %v1475 = vld [vmem:[%s1445 + $0x38] sm:$0xf]
                  %1476 = vst [vmem:[%s1446 + $0x38] sm:$0xf] %v1475
                  %v1477 = vld [vmem:[%s1445 + $0x3c] sm:$0xf]
                  %1478 = vst [vmem:[%s1446 + $0x3c] sm:$0xf] %v1477
                  %v1479 = vld [vmem:[%s1445 + $0x40] sm:$0xf]
                  %1480 = vst [vmem:[%s1446 + $0x40] sm:$0xf] %v1479
                  %v1481 = vld [vmem:[%s1445 + $0x44] sm:$0xf]
                  %1482 = vst [vmem:[%s1446 + $0x44] sm:$0xf] %v1481
                  %v1483 = vld [vmem:[%s1445 + $0x48] sm:$0xf]
                  %1484 = vst [vmem:[%s1446 + $0x48] sm:$0xf] %v1483
                  %v1485 = vld [vmem:[%s1445 + $0x4c] sm:$0xf]
                  %1486 = vst [vmem:[%s1446 + $0x4c] sm:$0xf] %v1485
                  %v1487 = vld [vmem:[%s1445 + $0x50] sm:$0xf]
                  %1488 = vst [vmem:[%s1446 + $0x50] sm:$0xf] %v1487
                  %v1489 = vld [vmem:[%s1445 + $0x54] sm:$0xf]
                  %1490 = vst [vmem:[%s1446 + $0x54] sm:$0xf] %v1489
                  %v1491 = vld [vmem:[%s1445 + $0x58] sm:$0xf]
                  %1492 = vst [vmem:[%s1446 + $0x58] sm:$0xf] %v1491
                  %v1493 = vld [vmem:[%s1445 + $0x5c] sm:$0xf]
                  %1494 = vst [vmem:[%s1446 + $0x5c] sm:$0xf] %v1493
                  %v1495 = vld [vmem:[%s1445 + $0x60] sm:$0xf]
                  %1496 = vst [vmem:[%s1446 + $0x60] sm:$0xf] %v1495
                  %v1497 = vld [vmem:[%s1445 + $0x64] sm:$0xf]
                  %1498 = vst [vmem:[%s1446 + $0x64] sm:$0xf] %v1497
                  %v1499 = vld [vmem:[%s1445 + $0x68] sm:$0xf]
                  %1500 = vst [vmem:[%s1446 + $0x68] sm:$0xf] %v1499
                  %v1501 = vld [vmem:[%s1445 + $0x6c] sm:$0xf]
                  %1502 = vst [vmem:[%s1446 + $0x6c] sm:$0xf] %v1501
                  %v1503 = vld [vmem:[%s1445 + $0x70] sm:$0xf]
                  %1504 = vst [vmem:[%s1446 + $0x70] sm:$0xf] %v1503
                  %v1505 = vld [vmem:[%s1445 + $0x74] sm:$0xf]
                  %1506 = vst [vmem:[%s1446 + $0x74] sm:$0xf] %v1505
                  %v1507 = vld [vmem:[%s1445 + $0x78] sm:$0xf]
                  %1508 = vst [vmem:[%s1446 + $0x78] sm:$0xf] %v1507
                  %v1509 = vld [vmem:[%s1445 + $0x7c] sm:$0xf]
                  %1510 = vst [vmem:[%s1446 + $0x7c] sm:$0xf] %v1509
                  %v1511 = vld [vmem:[%s1445 + $0x80] sm:$0xf]
                  %1512 = vst [vmem:[%s1446 + $0x80] sm:$0xf] %v1511
                  %v1513 = vld [vmem:[%s1445 + $0x84] sm:$0xf]
                  %1514 = vst [vmem:[%s1446 + $0x84] sm:$0xf] %v1513
                  %v1515 = vld [vmem:[%s1445 + $0x88] sm:$0xf]
                  %1516 = vst [vmem:[%s1446 + $0x88] sm:$0xf] %v1515
                  %v1517 = vld [vmem:[%s1445 + $0x8c] sm:$0xf]
                  %1518 = vst [vmem:[%s1446 + $0x8c] sm:$0xf] %v1517
                  %v1519 = vld [vmem:[%s1445 + $0x90] sm:$0xf]
                  %1520 = vst [vmem:[%s1446 + $0x90] sm:$0xf] %v1519
                  %v1521 = vld [vmem:[%s1445 + $0x94] sm:$0xf]
                  %1522 = vst [vmem:[%s1446 + $0x94] sm:$0xf] %v1521
                  %v1523 = vld [vmem:[%s1445 + $0x98] sm:$0xf]
                  %1524 = vst [vmem:[%s1446 + $0x98] sm:$0xf] %v1523
                  %v1525 = vld [vmem:[%s1445 + $0x9c] sm:$0xf]
                  %1526 = vst [vmem:[%s1446 + $0x9c] sm:$0xf] %v1525
                  %v1527 = vld [vmem:[%s1445 + $0xa0] sm:$0xf]
                  %1528 = vst [vmem:[%s1446 + $0xa0] sm:$0xf] %v1527
                  %v1529 = vld [vmem:[%s1445 + $0xa4] sm:$0xf]
                  %1530 = vst [vmem:[%s1446 + $0xa4] sm:$0xf] %v1529
                  %v1531 = vld [vmem:[%s1445 + $0xa8] sm:$0xf]
                  %1532 = vst [vmem:[%s1446 + $0xa8] sm:$0xf] %v1531
                  %v1533 = vld [vmem:[%s1445 + $0xac] sm:$0xf]
                  %1534 = vst [vmem:[%s1446 + $0xac] sm:$0xf] %v1533
                  %v1535 = vld [vmem:[%s1445 + $0xb0] sm:$0xf]
                  %1536 = vst [vmem:[%s1446 + $0xb0] sm:$0xf] %v1535
                  %v1537 = vld [vmem:[%s1445 + $0xb4] sm:$0xf]
                  %1538 = vst [vmem:[%s1446 + $0xb4] sm:$0xf] %v1537
                  %v1539 = vld [vmem:[%s1445 + $0xb8] sm:$0xf]
                  %1540 = vst [vmem:[%s1446 + $0xb8] sm:$0xf] %v1539
                  %v1541 = vld [vmem:[%s1445 + $0xbc] sm:$0xf]
                  %1542 = vst [vmem:[%s1446 + $0xbc] sm:$0xf] %v1541
                  %v1543 = vld [vmem:[%s1445 + $0xc0] sm:$0xf]
                  %1544 = vst [vmem:[%s1446 + $0xc0] sm:$0xf] %v1543
                  %v1545 = vld [vmem:[%s1445 + $0xc4] sm:$0xf]
                  %1546 = vst [vmem:[%s1446 + $0xc4] sm:$0xf] %v1545
                  %v1547 = vld [vmem:[%s1445 + $0xc8] sm:$0xf]
                  %1548 = vst [vmem:[%s1446 + $0xc8] sm:$0xf] %v1547
                  %v1549 = vld [vmem:[%s1445 + $0xcc] sm:$0xf]
                  %1550 = vst [vmem:[%s1446 + $0xcc] sm:$0xf] %v1549
                  %v1551 = vld [vmem:[%s1445 + $0xd0] sm:$0xf]
                  %1552 = vst [vmem:[%s1446 + $0xd0] sm:$0xf] %v1551
                  %v1553 = vld [vmem:[%s1445 + $0xd4] sm:$0xf]
                  %1554 = vst [vmem:[%s1446 + $0xd4] sm:$0xf] %v1553
                  %v1555 = vld [vmem:[%s1445 + $0xd8] sm:$0xf]
                  %1556 = vst [vmem:[%s1446 + $0xd8] sm:$0xf] %v1555
                  %v1557 = vld [vmem:[%s1445 + $0xdc] sm:$0xf]
                  %1558 = vst [vmem:[%s1446 + $0xdc] sm:$0xf] %v1557
                  %v1559 = vld [vmem:[%s1445 + $0xe0] sm:$0xf]
                  %1560 = vst [vmem:[%s1446 + $0xe0] sm:$0xf] %v1559
                  %v1561 = vld [vmem:[%s1445 + $0xe4] sm:$0xf]
                  %1562 = vst [vmem:[%s1446 + $0xe4] sm:$0xf] %v1561
                  %v1563 = vld [vmem:[%s1445 + $0xe8] sm:$0xf]
                  %1564 = vst [vmem:[%s1446 + $0xe8] sm:$0xf] %v1563
                  %v1565 = vld [vmem:[%s1445 + $0xec] sm:$0xf]
                  %1566 = vst [vmem:[%s1446 + $0xec] sm:$0xf] %v1565
                  %v1567 = vld [vmem:[%s1445 + $0xf0] sm:$0xf]
                  %1568 = vst [vmem:[%s1446 + $0xf0] sm:$0xf] %v1567
                  %v1569 = vld [vmem:[%s1445 + $0xf4] sm:$0xf]
                  %1570 = vst [vmem:[%s1446 + $0xf4] sm:$0xf] %v1569
                  %v1571 = vld [vmem:[%s1445 + $0xf8] sm:$0xf]
                  %1572 = vst [vmem:[%s1446 + $0xf8] sm:$0xf] %v1571
                  %v1573 = vld [vmem:[%s1445 + $0xfc] sm:$0xf]
                  %1574 = vst [vmem:[%s1446 + $0xfc] sm:$0xf] %v1573
                  %s1575 = sadd.s32 1, %s1444
                  %p1576 = scmp.ge.s32.totalorder %s1575, %s1437
                  %s1577 = scalar_select %p1576, 0, %s1575
                  %s1578 = smul.u32 %s1577, 256
                  %s1579 = smul.u32 %s1577, 256
                  %s1580 = scalar_lea.vmem %s1244, %s1578 [#allocation2]
                  %s1581 = scalar_lea.vmem %s1255, %s1579
                $region71: #{encoder_cnn_forward.5} parent=65 // loop_footer
                  %s1441 = sadd.s32 %s1439, 1
                $region72: #{encoder_cnn_forward.5} parent=65 // loop_footer_branch
                  %1438 = sbr.rel target = $region68
                $region73: #{encoder_cnn_forward.5} parent=65 // loop_exit
                  _
                %s1582 = sshrl.u32 %s1251, 6
                %s1583 = sand.u32 %s1251, 63
                %s1584 = smul.u32 %s1582, 64
                %s1585 = smul.u32 4, %s1584
                %s1586 = scalar_lea.vmem %s1244, %s1585 [#allocation2]
                %s1587 = smul.u32 4, %s1584
                %s1588 = scalar_lea.vmem %s1255, %s1587
                // While loop
                $region74: #{encoder_cnn_forward.5} parent=65 // loop_pre_header
                  _
                $region75: #{encoder_cnn_forward.5} parent=65 // loop_header
                  %s1590 = sphi 0, %s1592
                  %p1591 = scmp.ge.s32.totalorder %s1590, %s1583
                  %s1595 = sphi 0, %s1602
                  %s1596 = sphi %s1586, %s1605
                  %s1597 = sphi %s1588, %s1606
                $region76: #{encoder_cnn_forward.5} parent=65 // loop_header_branch
                  %1594 = sbr.rel (%p1591) target = $region80
                $region77: #{encoder_cnn_forward.5} parent=65 // loop_body
                  %v1598 = vld [vmem:[%s1596] sm:$0xf]
                  %1599 = vst [vmem:[%s1597] sm:$0xf] %v1598
                  %s1600 = sadd.s32 1, %s1595
                  %p1601 = scmp.ge.s32.totalorder %s1600, %s1583
                  %s1602 = scalar_select %p1601, 0, %s1600
                  %s1603 = smul.u32 %s1602, 4
                  %s1604 = smul.u32 %s1602, 4
                  %s1605 = scalar_lea.vmem %s1586, %s1603 [#allocation2]
                  %s1606 = scalar_lea.vmem %s1588, %s1604
                $region78: #{encoder_cnn_forward.5} parent=65 // loop_footer
                  %s1592 = sadd.s32 %s1590, 1
                $region79: #{encoder_cnn_forward.5} parent=65 // loop_footer_branch
                  %1589 = sbr.rel target = $region75
                $region80: #{encoder_cnn_forward.5} parent=65 // loop_exit
                  _
              $region66: #{encoder_cnn_forward.5} parent=43 // pred_fallthru
                _
            $region44: #{encoder_cnn_forward.5} parent=39 // pred_fallthru
              _
            // Predicated region
            $region45: #{encoder_cnn_forward.5} parent=39 // pred_check
              _
            $region46: #{encoder_cnn_forward.5} parent=39 // pred_check_branch
              %1262 = sbr.rel (0) target = $region48
            $region47: #{encoder_cnn_forward.5} parent=39 // pred_region
              %s1264 = sshrl.u32 %s1251, 6
              // While loop
              $region49: #{encoder_cnn_forward.5} parent=47 // loop_pre_header
                _
              $region50: #{encoder_cnn_forward.5} parent=47 // loop_header
                %s1266 = sphi 0, %s1268
                %p1267 = scmp.ge.s32.totalorder %s1266, %s1264
                %s1271 = sphi 0, %s1404
                %s1272 = sphi %s1244, %s1407
                %s1273 = sphi %s1255, %s1408
              $region51: #{encoder_cnn_forward.5} parent=47 // loop_header_branch
                %1270 = sbr.rel (%p1267) target = $region55
              $region52: #{encoder_cnn_forward.5} parent=47 // loop_body
                %v1274 = vld [vmem:[%s1272] sm:$0xf]
                %1275 = vst [vmem:[%s1273] sm:$0xf] %v1274
                %v1276 = vld [vmem:[%s1272 + $0x4] sm:$0xf]
                %1277 = vst [vmem:[%s1273 + $0x4] sm:$0xf] %v1276
                %v1278 = vld [vmem:[%s1272 + $0x8] sm:$0xf]
                %1279 = vst [vmem:[%s1273 + $0x8] sm:$0xf] %v1278
                %v1280 = vld [vmem:[%s1272 + $0xc] sm:$0xf]
                %1281 = vst [vmem:[%s1273 + $0xc] sm:$0xf] %v1280
                %v1282 = vld [vmem:[%s1272 + $0x10] sm:$0xf]
                %1283 = vst [vmem:[%s1273 + $0x10] sm:$0xf] %v1282
                %v1284 = vld [vmem:[%s1272 + $0x14] sm:$0xf]
                %1285 = vst [vmem:[%s1273 + $0x14] sm:$0xf] %v1284
                %v1286 = vld [vmem:[%s1272 + $0x18] sm:$0xf]
                %1287 = vst [vmem:[%s1273 + $0x18] sm:$0xf] %v1286
                %v1288 = vld [vmem:[%s1272 + $0x1c] sm:$0xf]
                %1289 = vst [vmem:[%s1273 + $0x1c] sm:$0xf] %v1288
                %v1290 = vld [vmem:[%s1272 + $0x20] sm:$0xf]
                %1291 = vst [vmem:[%s1273 + $0x20] sm:$0xf] %v1290
                %v1292 = vld [vmem:[%s1272 + $0x24] sm:$0xf]
                %1293 = vst [vmem:[%s1273 + $0x24] sm:$0xf] %v1292
                %v1294 = vld [vmem:[%s1272 + $0x28] sm:$0xf]
                %1295 = vst [vmem:[%s1273 + $0x28] sm:$0xf] %v1294
                %v1296 = vld [vmem:[%s1272 + $0x2c] sm:$0xf]
                %1297 = vst [vmem:[%s1273 + $0x2c] sm:$0xf] %v1296
                %v1298 = vld [vmem:[%s1272 + $0x30] sm:$0xf]
                %1299 = vst [vmem:[%s1273 + $0x30] sm:$0xf] %v1298
                %v1300 = vld [vmem:[%s1272 + $0x34] sm:$0xf]
                %1301 = vst [vmem:[%s1273 + $0x34] sm:$0xf] %v1300
                %v1302 = vld [vmem:[%s1272 + $0x38] sm:$0xf]
                %1303 = vst [vmem:[%s1273 + $0x38] sm:$0xf] %v1302
                %v1304 = vld [vmem:[%s1272 + $0x3c] sm:$0xf]
                %1305 = vst [vmem:[%s1273 + $0x3c] sm:$0xf] %v1304
                %v1306 = vld [vmem:[%s1272 + $0x40] sm:$0xf]
                %1307 = vst [vmem:[%s1273 + $0x40] sm:$0xf] %v1306
                %v1308 = vld [vmem:[%s1272 + $0x44] sm:$0xf]
                %1309 = vst [vmem:[%s1273 + $0x44] sm:$0xf] %v1308
                %v1310 = vld [vmem:[%s1272 + $0x48] sm:$0xf]
                %1311 = vst [vmem:[%s1273 + $0x48] sm:$0xf] %v1310
                %v1312 = vld [vmem:[%s1272 + $0x4c] sm:$0xf]
                %1313 = vst [vmem:[%s1273 + $0x4c] sm:$0xf] %v1312
                %v1314 = vld [vmem:[%s1272 + $0x50] sm:$0xf]
                %1315 = vst [vmem:[%s1273 + $0x50] sm:$0xf] %v1314
                %v1316 = vld [vmem:[%s1272 + $0x54] sm:$0xf]
                %1317 = vst [vmem:[%s1273 + $0x54] sm:$0xf] %v1316
                %v1318 = vld [vmem:[%s1272 + $0x58] sm:$0xf]
                %1319 = vst [vmem:[%s1273 + $0x58] sm:$0xf] %v1318
                %v1320 = vld [vmem:[%s1272 + $0x5c] sm:$0xf]
                %1321 = vst [vmem:[%s1273 + $0x5c] sm:$0xf] %v1320
                %v1322 = vld [vmem:[%s1272 + $0x60] sm:$0xf]
                %1323 = vst [vmem:[%s1273 + $0x60] sm:$0xf] %v1322
                %v1324 = vld [vmem:[%s1272 + $0x64] sm:$0xf]
                %1325 = vst [vmem:[%s1273 + $0x64] sm:$0xf] %v1324
                %v1326 = vld [vmem:[%s1272 + $0x68] sm:$0xf]
                %1327 = vst [vmem:[%s1273 + $0x68] sm:$0xf] %v1326
                %v1328 = vld [vmem:[%s1272 + $0x6c] sm:$0xf]
                %1329 = vst [vmem:[%s1273 + $0x6c] sm:$0xf] %v1328
                %v1330 = vld [vmem:[%s1272 + $0x70] sm:$0xf]
                %1331 = vst [vmem:[%s1273 + $0x70] sm:$0xf] %v1330
                %v1332 = vld [vmem:[%s1272 + $0x74] sm:$0xf]
                %1333 = vst [vmem:[%s1273 + $0x74] sm:$0xf] %v1332
                %v1334 = vld [vmem:[%s1272 + $0x78] sm:$0xf]
                %1335 = vst [vmem:[%s1273 + $0x78] sm:$0xf] %v1334
                %v1336 = vld [vmem:[%s1272 + $0x7c] sm:$0xf]
                %1337 = vst [vmem:[%s1273 + $0x7c] sm:$0xf] %v1336
                %v1338 = vld [vmem:[%s1272 + $0x80] sm:$0xf]
                %1339 = vst [vmem:[%s1273 + $0x80] sm:$0xf] %v1338
                %v1340 = vld [vmem:[%s1272 + $0x84] sm:$0xf]
                %1341 = vst [vmem:[%s1273 + $0x84] sm:$0xf] %v1340
                %v1342 = vld [vmem:[%s1272 + $0x88] sm:$0xf]
                %1343 = vst [vmem:[%s1273 + $0x88] sm:$0xf] %v1342
                %v1344 = vld [vmem:[%s1272 + $0x8c] sm:$0xf]
                %1345 = vst [vmem:[%s1273 + $0x8c] sm:$0xf] %v1344
                %v1346 = vld [vmem:[%s1272 + $0x90] sm:$0xf]
                %1347 = vst [vmem:[%s1273 + $0x90] sm:$0xf] %v1346
                %v1348 = vld [vmem:[%s1272 + $0x94] sm:$0xf]
                %1349 = vst [vmem:[%s1273 + $0x94] sm:$0xf] %v1348
                %v1350 = vld [vmem:[%s1272 + $0x98] sm:$0xf]
                %1351 = vst [vmem:[%s1273 + $0x98] sm:$0xf] %v1350
                %v1352 = vld [vmem:[%s1272 + $0x9c] sm:$0xf]
                %1353 = vst [vmem:[%s1273 + $0x9c] sm:$0xf] %v1352
                %v1354 = vld [vmem:[%s1272 + $0xa0] sm:$0xf]
                %1355 = vst [vmem:[%s1273 + $0xa0] sm:$0xf] %v1354
                %v1356 = vld [vmem:[%s1272 + $0xa4] sm:$0xf]
                %1357 = vst [vmem:[%s1273 + $0xa4] sm:$0xf] %v1356
                %v1358 = vld [vmem:[%s1272 + $0xa8] sm:$0xf]
                %1359 = vst [vmem:[%s1273 + $0xa8] sm:$0xf] %v1358
                %v1360 = vld [vmem:[%s1272 + $0xac] sm:$0xf]
                %1361 = vst [vmem:[%s1273 + $0xac] sm:$0xf] %v1360
                %v1362 = vld [vmem:[%s1272 + $0xb0] sm:$0xf]
                %1363 = vst [vmem:[%s1273 + $0xb0] sm:$0xf] %v1362
                %v1364 = vld [vmem:[%s1272 + $0xb4] sm:$0xf]
                %1365 = vst [vmem:[%s1273 + $0xb4] sm:$0xf] %v1364
                %v1366 = vld [vmem:[%s1272 + $0xb8] sm:$0xf]
                %1367 = vst [vmem:[%s1273 + $0xb8] sm:$0xf] %v1366
                %v1368 = vld [vmem:[%s1272 + $0xbc] sm:$0xf]
                %1369 = vst [vmem:[%s1273 + $0xbc] sm:$0xf] %v1368
                %v1370 = vld [vmem:[%s1272 + $0xc0] sm:$0xf]
                %1371 = vst [vmem:[%s1273 + $0xc0] sm:$0xf] %v1370
                %v1372 = vld [vmem:[%s1272 + $0xc4] sm:$0xf]
                %1373 = vst [vmem:[%s1273 + $0xc4] sm:$0xf] %v1372
                %v1374 = vld [vmem:[%s1272 + $0xc8] sm:$0xf]
                %1375 = vst [vmem:[%s1273 + $0xc8] sm:$0xf] %v1374
                %v1376 = vld [vmem:[%s1272 + $0xcc] sm:$0xf]
                %1377 = vst [vmem:[%s1273 + $0xcc] sm:$0xf] %v1376
                %v1378 = vld [vmem:[%s1272 + $0xd0] sm:$0xf]
                %1379 = vst [vmem:[%s1273 + $0xd0] sm:$0xf] %v1378
                %v1380 = vld [vmem:[%s1272 + $0xd4] sm:$0xf]
                %1381 = vst [vmem:[%s1273 + $0xd4] sm:$0xf] %v1380
                %v1382 = vld [vmem:[%s1272 + $0xd8] sm:$0xf]
                %1383 = vst [vmem:[%s1273 + $0xd8] sm:$0xf] %v1382
                %v1384 = vld [vmem:[%s1272 + $0xdc] sm:$0xf]
                %1385 = vst [vmem:[%s1273 + $0xdc] sm:$0xf] %v1384
                %v1386 = vld [vmem:[%s1272 + $0xe0] sm:$0xf]
                %1387 = vst [vmem:[%s1273 + $0xe0] sm:$0xf] %v1386
                %v1388 = vld [vmem:[%s1272 + $0xe4] sm:$0xf]
                %1389 = vst [vmem:[%s1273 + $0xe4] sm:$0xf] %v1388
                %v1390 = vld [vmem:[%s1272 + $0xe8] sm:$0xf]
                %1391 = vst [vmem:[%s1273 + $0xe8] sm:$0xf] %v1390
                %v1392 = vld [vmem:[%s1272 + $0xec] sm:$0xf]
                %1393 = vst [vmem:[%s1273 + $0xec] sm:$0xf] %v1392
                %v1394 = vld [vmem:[%s1272 + $0xf0] sm:$0xf]
                %1395 = vst [vmem:[%s1273 + $0xf0] sm:$0xf] %v1394
                %v1396 = vld [vmem:[%s1272 + $0xf4] sm:$0xf]
                %1397 = vst [vmem:[%s1273 + $0xf4] sm:$0xf] %v1396
                %v1398 = vld [vmem:[%s1272 + $0xf8] sm:$0xf]
                %1399 = vst [vmem:[%s1273 + $0xf8] sm:$0xf] %v1398
                %v1400 = vld [vmem:[%s1272 + $0xfc] sm:$0xf]
                %1401 = vst [vmem:[%s1273 + $0xfc] sm:$0xf] %v1400
                %s1402 = sadd.s32 1, %s1271
                %p1403 = scmp.ge.s32.totalorder %s1402, %s1264
                %s1404 = scalar_select %p1403, 0, %s1402
                %s1405 = smul.u32 %s1404, 256
                %s1406 = smul.u32 %s1404, 256
                %s1407 = scalar_lea.vmem %s1244, %s1405 [#allocation2]
                %s1408 = scalar_lea.vmem %s1255, %s1406
              $region53: #{encoder_cnn_forward.5} parent=47 // loop_footer
                %s1268 = sadd.s32 %s1266, 1
              $region54: #{encoder_cnn_forward.5} parent=47 // loop_footer_branch
                %1265 = sbr.rel target = $region50
              $region55: #{encoder_cnn_forward.5} parent=47 // loop_exit
                _
              %s1409 = sshrl.u32 %s1251, 6
              %s1410 = sand.u32 %s1251, 63
              %s1411 = smul.u32 %s1409, 64
              %s1412 = smul.u32 4, %s1411
              %s1413 = scalar_lea.vmem %s1244, %s1412 [#allocation2]
              %s1414 = smul.u32 4, %s1411
              %s1415 = scalar_lea.vmem %s1255, %s1414
              // While loop
              $region56: #{encoder_cnn_forward.5} parent=47 // loop_pre_header
                _
              $region57: #{encoder_cnn_forward.5} parent=47 // loop_header
                %s1417 = sphi 0, %s1419
                %p1418 = scmp.ge.s32.totalorder %s1417, %s1410
                %s1422 = sphi 0, %s1429
                %s1423 = sphi %s1413, %s1432
                %s1424 = sphi %s1415, %s1433
              $region58: #{encoder_cnn_forward.5} parent=47 // loop_header_branch
                %1421 = sbr.rel (%p1418) target = $region62
              $region59: #{encoder_cnn_forward.5} parent=47 // loop_body
                %v1425 = vld [vmem:[%s1423] sm:$0xf]
                %1426 = vst [vmem:[%s1424] sm:$0xf] %v1425
                %s1427 = sadd.s32 1, %s1422
                %p1428 = scmp.ge.s32.totalorder %s1427, %s1410
                %s1429 = scalar_select %p1428, 0, %s1427
                %s1430 = smul.u32 %s1429, 4
                %s1431 = smul.u32 %s1429, 4
                %s1432 = scalar_lea.vmem %s1413, %s1430 [#allocation2]
                %s1433 = scalar_lea.vmem %s1415, %s1431
              $region60: #{encoder_cnn_forward.5} parent=47 // loop_footer
                %s1419 = sadd.s32 %s1417, 1
              $region61: #{encoder_cnn_forward.5} parent=47 // loop_footer_branch
                %1416 = sbr.rel target = $region57
              $region62: #{encoder_cnn_forward.5} parent=47 // loop_exit
                _
            $region48: #{encoder_cnn_forward.5} parent=39 // pred_fallthru
              _
          $region40: #{encoder_cnn_forward.5} parent=35 // pred_fallthru
            _
          %1607 = vnop
        $region36: #{encoder_cnn_forward.5} parent=31 // pred_fallthru
          _
      $region32: #{encoder_cnn_forward.5} parent=5 // pred_fallthru
        _
      %p1608 = scmp.le.s32.totalorder 2, %s9
      // Predicated region
      $region81: #{encoder_cnn_forward.5} parent=5 // pred_check
        %p1609 = pneg %p1608
      $region82: #{encoder_cnn_forward.5} parent=5 // pred_check_branch
        %1611 = sbr.rel (%p1609) target = $region84
      $region83: #{encoder_cnn_forward.5} parent=5 // pred_region
        %s1612 = ssub.s32 %s9, 2
        // Predicated region
        $region85: #{encoder_cnn_forward.5} parent=83 // pred_check
          %p1613 = pneg %p106
        $region86: #{encoder_cnn_forward.5} parent=83 // pred_check_branch
          %1615 = sbr.rel (%p1613) target = $region88
        $region87: #{encoder_cnn_forward.5} parent=83 // pred_region
          %s1616 = sand.u32 %s91, 1
          %s1617 = sand.u32 %s91, 1
          %s1618 = smul.addr %s1617, 256
          %s1619 = scalar_lea.vmem [#allocation2], %s1618
        $region88: #{encoder_cnn_forward.5} parent=83 // pred_fallthru
          _
      $region84: #{encoder_cnn_forward.5} parent=5 // pred_fallthru
        _
    $region6: #{encoder_cnn_forward.5} parent=1 // loop_footer
      %s13 = sadd.s32 1, %s9
    $region7: #{encoder_cnn_forward.5} parent=1 // loop_footer_branch
      %8 = sbr.rel target = $region3
    $region8: #{encoder_cnn_forward.5} parent=1 // loop_exit
      _

// kernel: encoder_cnn_forward.6
$region0: #{encoder_cnn_forward.6}
  #allocation0 [shape = 'u32[]', space=smem, size = 0x4, offset = 0x4, fixed_abs, tag = 'smem constant byte address 0x4 - core index']
  #allocation1 [shape = 'u32[144,128]{1,0:T(1,128)}', space=vmem, size = 0x12000, scoped, tag = 'internal scratch']
  %s0 = inlined_call_operand.vmem [shape: bf16[196,288], index: 0, kind: input, shape index: {}]
  %s1 = inlined_call_operand.vmem [shape: bf16[288,64], index: 1, kind: input, shape index: {}]
  %s2 = inlined_call_operand.vmem [shape: f32[1,64], index: 2, kind: input, shape index: {}]
  %s3 = inlined_call_operand.vmem [shape: bf16[196,64], index: 3, kind: output, shape index: {}]
  %s4 = sld [smem:[#allocation0]]
  $region89: #{encoder_cnn_forward.6} parent=0
    _
  %s6 = ssub.s32 1, %s4
  %s7 = scalar_select 0, %s6, %s4
  $region1: #{encoder_cnn_forward.6} parent=0
    #allocation2 [shape = 'u8[65536]{0}', space=vmem, size = 0x10000, scoped, tag = 'output window, operand 0']
    loop: start=0, step=1, limit=4
    $region2: #{encoder_cnn_forward.6} parent=1 // loop_pre_header
      _
    $region3: #{encoder_cnn_forward.6} parent=1 // loop_header
      %s9 = sphi 0, %s13
      %p10 = scmp.ge.s32.totalorder %s9, 4
      %s19 = sphi 0, %s21
      %s22 = sphi 0, %s19
      %s23 = sphi 0, %s22
      %s39 = sphi 0, %s23
      %s43 = sphi 0, %s43
      %s45 = sphi 0, %s43
      %s46 = sphi 0, %s45
      %s60 = sphi 0, %s46
      %s64 = sphi 0, %s64
      %s66 = sphi 0, %s64
      %s67 = sphi 0, %s66
      %s81 = sphi 0, %s67
      %s87 = sphi 0, %s89
      %s90 = sphi 0, %s87
      %s91 = sphi 0, %s90
      %s107 = sphi 0, %s91
    $region4: #{encoder_cnn_forward.6} parent=1 // loop_header_branch
      %12 = sbr.rel (%p10) target = $region8
    $region5: #{encoder_cnn_forward.6} parent=1 // loop_body
      %s14 = ssub.s32 %s9, 1
      %s15 = ssub.s32 %s9, 2
      %s16 = sadd.s32 %s9, 1
      %s17 = ssub.s32 %s9, %s16
      %p18 = scmp.eq.s32.totalorder %s17, 0
      %s20 = sadd.s32 %s19, 1
      %s21 = scalar_select %p18, %s19, %s20
      %p24 = pneg %p18
      %p25 = scmp.eq.s32.totalorder %s9, 1
      %p26 = por %p24, %p25
      %p27 = scmp.ne.s32.totalorder %s19, %s22
      %p28 = scmp.eq.s32.totalorder %s9, 0
      %p29 = por %p27, %p28
      %p30 = scmp.ne.s32.totalorder %s19, %s22
      %p31 = scmp.eq.s32.totalorder %s14, 1
      %p32 = por %p30, %p31
      %p33 = scmp.ne.s32.totalorder %s22, %s23
      %p34 = scmp.eq.s32.totalorder %s14, 0
      %p35 = por %p33, %p34
      %p36 = scmp.ne.s32.totalorder %s22, %s23
      %p37 = scmp.eq.s32.totalorder %s15, 1
      %p38 = por %p36, %p37
      %p40 = scmp.ne.s32.totalorder %s23, %s39
      %p41 = scmp.eq.s32.totalorder %s15, 0
      %p42 = por %p40, %p41
      %s44 = sadd.s32 %s43, 1
      %p47 = scmp.eq.s32.totalorder %s9, 1
      %p48 = scmp.ne.s32.totalorder %s43, %s45
      %p49 = scmp.eq.s32.totalorder %s9, 0
      %p50 = por %p48, %p49
      %p51 = scmp.ne.s32.totalorder %s43, %s45
      %p52 = scmp.eq.s32.totalorder %s14, 1
      %p53 = por %p51, %p52
      %p54 = scmp.ne.s32.totalorder %s45, %s46
      %p55 = scmp.eq.s32.totalorder %s14, 0
      %p56 = por %p54, %p55
      %p57 = scmp.ne.s32.totalorder %s45, %s46
      %p58 = scmp.eq.s32.totalorder %s15, 1
      %p59 = por %p57, %p58
      %p61 = scmp.ne.s32.totalorder %s46, %s60
      %p62 = scmp.eq.s32.totalorder %s15, 0
      %p63 = por %p61, %p62
      %s65 = sadd.s32 %s64, 1
      %p68 = scmp.eq.s32.totalorder %s9, 1
      %p69 = scmp.ne.s32.totalorder %s64, %s66
      %p70 = scmp.eq.s32.totalorder %s9, 0
      %p71 = por %p69, %p70
      %p72 = scmp.ne.s32.totalorder %s64, %s66
      %p73 = scmp.eq.s32.totalorder %s14, 1
      %p74 = por %p72, %p73
      %p75 = scmp.ne.s32.totalorder %s66, %s67
      %p76 = scmp.eq.s32.totalorder %s14, 0
      %p77 = por %p75, %p76
      %p78 = scmp.ne.s32.totalorder %s66, %s67
      %p79 = scmp.eq.s32.totalorder %s15, 1
      %p80 = por %p78, %p79
      %p82 = scmp.ne.s32.totalorder %s67, %s81
      %p83 = scmp.eq.s32.totalorder %s15, 0
      %p84 = por %p82, %p83
      %s85 = ssub.s32 %s9, %s16
      %p86 = scmp.eq.s32.totalorder %s85, 0
      %s88 = sadd.s32 %s87, 1
      %s89 = scalar_select %p86, %s87, %s88
      %p92 = pneg %p86
      %p93 = scmp.eq.s32.totalorder %s9, 1
      %p94 = por %p92, %p93
      %p95 = scmp.ne.s32.totalorder %s87, %s90
      %p96 = scmp.eq.s32.totalorder %s9, 0
      %p97 = por %p95, %p96
      %p98 = scmp.ne.s32.totalorder %s87, %s90
      %p99 = scmp.eq.s32.totalorder %s14, 1
      %p100 = por %p98, %p99
      %p101 = scmp.ne.s32.totalorder %s90, %s91
      %p102 = scmp.eq.s32.totalorder %s14, 0
      %p103 = por %p101, %p102
      %p104 = scmp.ne.s32.totalorder %s90, %s91
      %p105 = scmp.eq.s32.totalorder %s15, 1
      %p106 = por %p104, %p105
      %p108 = scmp.ne.s32.totalorder %s91, %s107
      %p109 = scmp.eq.s32.totalorder %s15, 0
      %p110 = por %p108, %p109
      %p111 = scmp.le.s32.totalorder 1, %s9
      %p112 = scmp.lt.s32.totalorder %s9, 3
      %p113 = pnand %p111, %p112
      %p114 = pneg %p113
      // Predicated region
      $region9: #{encoder_cnn_forward.6} parent=5 // pred_check
        _
      $region10: #{encoder_cnn_forward.6} parent=5 // pred_check_branch
        %116 = sbr.rel (%p113) target = $region12
      $region11: #{encoder_cnn_forward.6} parent=5 // pred_region
        %s117 = ssub.s32 %s9, 1
        // Predicated region
        $region13: #{encoder_cnn_forward.6} parent=11 // pred_check
          %p118 = pneg %p56
        $region14: #{encoder_cnn_forward.6} parent=11 // pred_check_branch
          %120 = sbr.rel (%p118) target = $region16
        $region15: #{encoder_cnn_forward.6} parent=11 // pred_region
          _
        $region16: #{encoder_cnn_forward.6} parent=11 // pred_fallthru
          _
        // Predicated region
        $region17: #{encoder_cnn_forward.6} parent=11 // pred_check
          %p121 = pneg %p77
        $region18: #{encoder_cnn_forward.6} parent=11 // pred_check_branch
          %123 = sbr.rel (%p121) target = $region20
        $region19: #{encoder_cnn_forward.6} parent=11 // pred_region
          _
        $region20: #{encoder_cnn_forward.6} parent=11 // pred_fallthru
          _
      $region12: #{encoder_cnn_forward.6} parent=5 // pred_fallthru
        _
      %p124 = scmp.lt.s32.totalorder %s9, 2
      // Predicated region
      $region21: #{encoder_cnn_forward.6} parent=5 // pred_check
        %p125 = pneg %p124
      $region22: #{encoder_cnn_forward.6} parent=5 // pred_check_branch
        %127 = sbr.rel (%p125) target = $region24
      $region23: #{encoder_cnn_forward.6} parent=5 // pred_region
        // Predicated region
        $region25: #{encoder_cnn_forward.6} parent=23 // pred_check
          %p128 = pneg %p29
        $region26: #{encoder_cnn_forward.6} parent=23 // pred_check_branch
          %130 = sbr.rel (%p128) target = $region28
        $region27: #{encoder_cnn_forward.6} parent=23 // pred_region
          %s131 = smul.u32 16, %s9
          %s132 = ssub.s32 25, %s131
          %p133 = scmp.lt.s32.totalorder %s132, 16
          %s134 = scalar_select %p133, %s132, 16
          %s135 = smul.u32 64, %s134
          %s136 = smul.u32 %s135, 3
          %p137 = scmp.lt.s32.totalorder %s131, 24
          %s138 = scalar_select %p137, %s131, 24
          %s139 = smul.addr %s138, 3
          %s140 = smul.addr %s139, 4
          %s141 = scalar_lea.vmem %s0, %s140
          %s142 = smul.u32 16, %s9
          %s143 = ssub.s32 25, %s142
          %p144 = scmp.lt.s32.totalorder %s143, 16
          %s145 = scalar_select %p144, %s143, 16
          %s146 = smul.u32 64, %s145
          %s147 = smul.u32 %s146, 3
        $region28: #{encoder_cnn_forward.6} parent=23 // pred_fallthru
          _
      $region24: #{encoder_cnn_forward.6} parent=5 // pred_fallthru
        _
      %p148 = scmp.le.s32.totalorder 1, %s9
      %p149 = scmp.lt.s32.totalorder %s9, 3
      %p150 = pnand %p148, %p149
      %p151 = pneg %p150
      // Predicated region
      $region29: #{encoder_cnn_forward.6} parent=5 // pred_check
        _
      $region30: #{encoder_cnn_forward.6} parent=5 // pred_check_branch
        %153 = sbr.rel (%p150) target = $region32
      $region31: #{encoder_cnn_forward.6} parent=5 // pred_region
        %s154 = ssub.s32 %s9, 1
        %s155 = smul.u32 16, %s14
        %s156 = ssub.s32 25, %s155
        %p157 = scmp.lt.s32.totalorder %s156, 16
        %s158 = scalar_select %p157, %s156, 16
        %s159 = smul.u32 64, %s158
        %s160 = smul.u32 %s159, 3
        %p161 = scmp.lt.s32.totalorder %s155, 24
        %s162 = scalar_select %p161, %s155, 24
        %s163 = smul.addr %s162, 3
        %s164 = smul.addr %s163, 4
        %s165 = scalar_lea.vmem %s0, %s164
        %p166 = pneg %p35
        %p167 = pneg %p32
        %p168 = pneg %p56
        %p169 = pneg %p53
        %p170 = pneg %p77
        %p171 = pneg %p74
        %p172 = pneg %p103
        %p173 = pneg %p100
        %s174 = sand.u32 %s90, 1
        %s175 = sand.u32 %s90, 1
        %s176 = smul.addr %s175, 64
        %s177 = scalar_lea.vmem [#allocation2], %s176
        %s178 = smul.u32 16, %s14
        %s179 = ssub.s32 25, %s178
        %p180 = scmp.lt.s32.totalorder %s179, 16
        %s181 = scalar_select %p180, %s179, 16
        %s182 = smul.u32 64, %s181
        %s183 = smul.u32 %s182, 3
        %p184 = scmp.lt.s32.totalorder %s178, 24
        %s185 = scalar_select %p184, %s178, 24
        %s186 = smul.addr %s185, 3
        %s187 = smul.addr %s186, 4
        %s188 = scalar_lea.vmem %s0, %s187
        %s189 = smul.u32 16, %s14
        %s190 = ssub.s32 25, %s189
        %p191 = scmp.lt.s32.totalorder %s190, 16
        %s192 = scalar_select %p191, %s190, 16
        %s193 = smul.u32 64, %s192
        %s194 = smul.u32 %s193, 3
        %s195 = smul.u32 16, %s14
        %s196 = ssub.s32 25, %s195
        %p197 = scmp.lt.s32.totalorder %s196, 16
        %s198 = scalar_select %p197, %s196, 16
        %s199 = smul.u32 64, %s198
        %v201 = vld [vmem:[%s188] sm:$0xff]
        %v202 = vld [vmem:[%s188 + $0x8] sm:$0xf]
        %v203 = vld [vmem:[%s188 + $0xc] sm:$0xff]
        %v204 = vld [vmem:[%s188 + $0x14] sm:$0xf]
        %v205 = vld [vmem:[%s188 + $0x18] sm:$0xff]
        %v206 = vld [vmem:[%s188 + $0x20] sm:$0xf]
        %v207 = vld [vmem:[%s188 + $0x24] sm:$0xff]
        %v208 = vld [vmem:[%s188 + $0x2c] sm:$0xf]
        %v209 = vld [vmem:[%s188 + $0x30] sm:$0xff]
        %v210 = vld [vmem:[%s188 + $0x38] sm:$0xf]
        %v211 = vld [vmem:[%s188 + $0x3c] sm:$0xff]
        %v212 = vld [vmem:[%s188 + $0x44] sm:$0xf]
        %v213 = vld [vmem:[%s188 + $0x48] sm:$0xff]
        %v214 = vld [vmem:[%s188 + $0x50] sm:$0xf]
        %v215 = vld [vmem:[%s188 + $0x54] sm:$0xff]
        %v216 = vld [vmem:[%s188 + $0x5c] sm:$0xf]
        %v217 = vld [vmem:[%s188 + $0x60] sm:$0xff]
        %v218 = vld [vmem:[%s188 + $0x68] sm:$0xf]
        %v219 = vld [vmem:[%s188 + $0x6c] sm:$0xff]
        %v220 = vld [vmem:[%s188 + $0x74] sm:$0xf]
        %v221 = vld [vmem:[%s188 + $0x78] sm:$0xff]
        %v222 = vld [vmem:[%s188 + $0x80] sm:$0xf]
        %v223 = vld [vmem:[%s188 + $0x84] sm:$0xff]
        %v224 = vld [vmem:[%s188 + $0x8c] sm:$0xf]
        %v225 = vld [vmem:[%s188 + $0x90] sm:$0xff]
        %v226 = vld [vmem:[%s188 + $0x98] sm:$0xf]
        %v227 = vld [vmem:[%s188 + $0x9c] sm:$0xff]
        %v228 = vld [vmem:[%s188 + $0xa4] sm:$0xf]
        %v229 = vld [vmem:[%s188 + $0xa8] sm:$0xff]
        %v230 = vld [vmem:[%s188 + $0xb0] sm:$0xf]
        %v231 = vld [vmem:[%s188 + $0xb4] sm:$0xff]
        %v232 = vld [vmem:[%s188 + $0xbc] sm:$0xf]
        %v233 = vld [vmem:[%s1] sm:$0xf]
        %v234 = vld [vmem:[%s1 + $0x4] sm:$0xf]
        %v235 = vld [vmem:[%s1 + $0x8] sm:$0xf]
        %v236 = vld [vmem:[%s1 + $0xc] sm:$0xf]
        %v237 = vld [vmem:[%s1 + $0x10] sm:$0xf]
        %v238 = vld [vmem:[%s1 + $0x14] sm:$0xf]
        %v239 = vld [vmem:[%s1 + $0x18] sm:$0xf]
        %v240 = vld [vmem:[%s1 + $0x1c] sm:$0xf]
        %v241 = vld [vmem:[%s1 + $0x20] sm:$0xf]
        %v242 = vld [vmem:[%s1 + $0x24] sm:$0xf]
        %v243 = vld [vmem:[%s1 + $0x28] sm:$0xf]
        %v244 = vld [vmem:[%s1 + $0x2c] sm:$0xf]
        %v245 = vld [vmem:[%s1 + $0x30] sm:$0xf]
        %v246 = vld [vmem:[%s1 + $0x34] sm:$0xf]
        %v247 = vld [vmem:[%s1 + $0x38] sm:$0xf]
        %v248 = vld [vmem:[%s1 + $0x3c] sm:$0xf]
        %v249 = vld [vmem:[%s1 + $0x40] sm:$0xf]
        %v250 = vld [vmem:[%s1 + $0x44] sm:$0xf]
        %v251 = vld [vmem:[%s1 + $0x48] sm:$0xf]
        %v252 = vld [vmem:[%s1 + $0x4c] sm:$0xf]
        %v253 = vld [vmem:[%s1 + $0x50] sm:$0xf]
        %v254 = vld [vmem:[%s1 + $0x54] sm:$0xf]
        %v255 = vld [vmem:[%s1 + $0x58] sm:$0xf]
        %v256 = vld [vmem:[%s1 + $0x5c] sm:$0xf]
        %v257 = vld [vmem:[%s1 + $0x60] sm:$0xf]
        %v258 = vld [vmem:[%s1 + $0x64] sm:$0xf]
        %v259 = vld [vmem:[%s1 + $0x68] sm:$0xf]
        %v260 = vld [vmem:[%s1 + $0x6c] sm:$0xf]
        %v261 = vld [vmem:[%s1 + $0x70] sm:$0xf]
        %v262 = vld [vmem:[%s1 + $0x74] sm:$0xf]
        %v263 = vld [vmem:[%s1 + $0x78] sm:$0xf]
        %v264 = vld [vmem:[%s1 + $0x7c] sm:$0xf]
        %v265 = vld [vmem:[%s1 + $0x80] sm:$0xf]
        %v266 = vld [vmem:[%s1 + $0x84] sm:$0xf]
        %v267 = vld [vmem:[%s1 + $0x88] sm:$0xf]
        %v268 = vld [vmem:[%s1 + $0x8c] sm:$0xf]
        %v269 = vld [vmem:[%s2] sm:$0x1]
        %v271 = vlaneseq
        %v272 = vshrl.u32 %v271, 7
        %v273 = vsub.s32 0, %v272
        %v274 = vrot.slane %v269, %v273
        %v308 = vunpack.c.l.b16 %v201
        %v309 = vunpack.c.h.b16 %v201
        %v310 = vunpack.c.l.b16 %v202
        %v311 = vunpack.c.l.b16 %v203
        %v312 = vunpack.c.h.b16 %v203
        %v313 = vunpack.c.l.b16 %v204
        %v314 = vunpack.c.l.b16 %v205
        %v315 = vunpack.c.h.b16 %v205
        %v316 = vunpack.c.l.b16 %v206
        %v317 = vunpack.c.l.b16 %v207
        %v318 = vunpack.c.h.b16 %v207
        %v319 = vunpack.c.l.b16 %v208
        %v320 = vunpack.c.l.b16 %v209
        %v321 = vunpack.c.h.b16 %v209
        %v322 = vunpack.c.l.b16 %v210
        %v323 = vunpack.c.l.b16 %v211
        %v324 = vunpack.c.h.b16 %v211
        %v325 = vunpack.c.l.b16 %v212
        %v326 = vunpack.c.l.b16 %v213
        %v327 = vunpack.c.h.b16 %v213
        %v328 = vunpack.c.l.b16 %v214
        %v329 = vunpack.c.l.b16 %v215
        %v330 = vunpack.c.h.b16 %v215
        %v331 = vunpack.c.l.b16 %v216
        %v332 = vunpack.c.l.b16 %v217
        %v333 = vunpack.c.h.b16 %v217
        %v334 = vunpack.c.l.b16 %v218
        %v335 = vunpack.c.l.b16 %v219
        %v336 = vunpack.c.h.b16 %v219
        %v337 = vunpack.c.l.b16 %v220
        %v338 = vunpack.c.l.b16 %v221
        %v339 = vunpack.c.h.b16 %v221
        %v340 = vunpack.c.l.b16 %v222
        %v341 = vunpack.c.l.b16 %v223
        %v342 = vunpack.c.h.b16 %v223
        %v343 = vunpack.c.l.b16 %v224
        %v344 = vunpack.c.l.b16 %v225
        %v345 = vunpack.c.h.b16 %v225
        %v346 = vunpack.c.l.b16 %v226
        %v347 = vunpack.c.l.b16 %v227
        %v348 = vunpack.c.h.b16 %v227
        %v349 = vunpack.c.l.b16 %v228
        %v350 = vunpack.c.l.b16 %v229
        %v351 = vunpack.c.h.b16 %v229
        %v352 = vunpack.c.l.b16 %v230
        %v353 = vunpack.c.l.b16 %v231
        %v354 = vunpack.c.h.b16 %v231
        %v355 = vunpack.c.l.b16 %v232
        %v356 = vpack.c.b16 %v311, %v308
        %v357 = vpack.c.b16 %v312, %v309
        %v358 = vpack.c.b16 %v313, %v310
        %v359 = vpack.c.b16 %v317, %v314
        %v360 = vpack.c.b16 %v318, %v315
        %v361 = vpack.c.b16 %v319, %v316
        %v362 = vpack.c.b16 %v323, %v320
        %v363 = vpack.c.b16 %v324, %v321
        %v364 = vpack.c.b16 %v325, %v322
        %v365 = vpack.c.b16 %v329, %v326
        %v366 = vpack.c.b16 %v330, %v327
        %v367 = vpack.c.b16 %v331, %v328
        %v368 = vpack.c.b16 %v335, %v332
        %v369 = vpack.c.b16 %v336, %v333
        %v370 = vpack.c.b16 %v337, %v334
        %v371 = vpack.c.b16 %v341, %v338
        %v372 = vpack.c.b16 %v342, %v339
        %v373 = vpack.c.b16 %v343, %v340
        %v374 = vpack.c.b16 %v347, %v344
        %v375 = vpack.c.b16 %v348, %v345
        %v376 = vpack.c.b16 %v349, %v346
        %v377 = vpack.c.b16 %v353, %v350
        %v378 = vpack.c.b16 %v354, %v351
        %v379 = vpack.c.b16 %v355, %v352
        %v432 = vunpack.c.l.b16 %v233
        %v433 = vunpack.c.l.b16 %v234
        %v434 = vunpack.c.l.b16 %v235
        %v435 = vunpack.c.l.b16 %v236
        %v436 = vunpack.c.l.b16 %v237
        %v437 = vunpack.c.l.b16 %v238
        %v438 = vunpack.c.l.b16 %v239
        %v439 = vunpack.c.l.b16 %v240
        %v440 = vunpack.c.l.b16 %v241
        %v441 = vunpack.c.l.b16 %v242
        %v442 = vunpack.c.l.b16 %v243
        %v443 = vunpack.c.l.b16 %v244
        %v444 = vunpack.c.l.b16 %v245
        %v445 = vunpack.c.l.b16 %v246
        %v446 = vunpack.c.l.b16 %v247
        %v447 = vunpack.c.l.b16 %v248
        %v448 = vunpack.c.l.b16 %v249
        %v449 = vunpack.c.l.b16 %v250
        %v450 = vunpack.c.l.b16 %v251
        %v451 = vunpack.c.l.b16 %v252
        %v452 = vunpack.c.l.b16 %v253
        %v453 = vunpack.c.l.b16 %v254
        %v454 = vunpack.c.l.b16 %v255
        %v455 = vunpack.c.l.b16 %v256
        %v456 = vunpack.c.l.b16 %v257
        %v457 = vunpack.c.l.b16 %v258
        %v458 = vunpack.c.l.b16 %v259
        %v459 = vunpack.c.l.b16 %v260
        %v460 = vunpack.c.l.b16 %v261
        %v461 = vunpack.c.l.b16 %v262
        %v462 = vunpack.c.l.b16 %v263
        %v463 = vunpack.c.l.b16 %v264
        %v464 = vunpack.c.l.b16 %v265
        %v465 = vunpack.c.l.b16 %v266
        %v466 = vunpack.c.l.b16 %v267
        %v467 = vunpack.c.l.b16 %v268
        %v468 = vpack.c.b16 %v433, %v432
        %v469 = vpack.c.b16 %v435, %v434
        %v470 = vpack.c.b16 %v437, %v436
        %v471 = vpack.c.b16 %v439, %v438
        %v472 = vpack.c.b16 %v441, %v440
        %v473 = vpack.c.b16 %v443, %v442
        %v474 = vpack.c.b16 %v445, %v444
        %v475 = vpack.c.b16 %v447, %v446
        %v476 = vpack.c.b16 %v449, %v448
        %v477 = vpack.c.b16 %v451, %v450
        %v478 = vpack.c.b16 %v453, %v452
        %v479 = vpack.c.b16 %v455, %v454
        %v480 = vpack.c.b16 %v457, %v456
        %v481 = vpack.c.b16 %v459, %v458
        %v482 = vpack.c.b16 %v461, %v460
        %v483 = vpack.c.b16 %v463, %v462
        %v484 = vpack.c.b16 %v465, %v464
        %v485 = vpack.c.b16 %v467, %v466
        %vm504 = vcmask 261120
        %v506 = vsel %vm504, %v358, 0
        %v509 = vsel %vm504, %v361, 0
        %v512 = vsel %vm504, %v364, 0
        %v515 = vsel %vm504, %v367, 0
        %v518 = vsel %vm504, %v370, 0
        %v521 = vsel %vm504, %v373, 0
        %v524 = vsel %vm504, %v376, 0
        %v527 = vsel %vm504, %v379, 0
        %529 = vmatprep.subr.bf16.mxu0 0
        %530 = vmatpush1.bf16.msra.mxu0 %v468
        %531 = vmatprep.subr.bf16.mxu0 0
        %532 = vmatpush1.bf16.msra.mxu0 %v469
        %533 = vmatprep.subr.bf16.mxu0 0
        %534 = vmatpush1.bf16.msra.mxu0 %v470
        %535 = vmatprep.subr.bf16.mxu0 0
        %536 = vmatpush1.bf16.msra.mxu0 %v471
        %537 = vmatprep.subr.bf16.mxu0 0
        %538 = vmatpush1.bf16.msra.mxu0 %v472
        %539 = vmatprep.subr.bf16.mxu0 0
        %540 = vmatpush1.bf16.msra.mxu0 %v473
        %541 = vmatprep.subr.bf16.mxu0 0
        %542 = vmatpush1.bf16.msra.mxu0 %v474
        %543 = vmatprep.subr.bf16.mxu0 0
        %544 = vmatpush1.bf16.msra.mxu0 %v475
        %545 = vmatprep.subr.bf16.mxu0 0
        %546 = vmatpush1.bf16.msra.mxu0 %v476
        %547 = vmatprep.subr.bf16.mxu0 0
        %548 = vmatpush1.bf16.msra.mxu0 %v477
        %549 = vmatprep.subr.bf16.mxu0 0
        %550 = vmatpush1.bf16.msra.mxu0 %v478
        %551 = vmatprep.subr.bf16.mxu0 0
        %552 = vmatpush1.bf16.msra.mxu0 %v479
        %553 = vmatprep.subr.bf16.mxu0 0
        %554 = vmatpush1.bf16.msra.mxu0 %v480
        %555 = vmatprep.subr.bf16.mxu0 0
        %556 = vmatpush1.bf16.msra.mxu0 %v481
        %557 = vmatprep.subr.bf16.mxu0 0
        %558 = vmatpush1.bf16.msra.mxu0 %v482
        %559 = vmatprep.subr.bf16.mxu0 0
        %560 = vmatpush1.bf16.msra.mxu0 %v483
        %561 = vmatprep.mubr.bf16.mxu0 %v357
        %562 = vmatmul.mubr.bf16.gmra.mrb[0].mxu0 %v356
        %v563 = vpop.f32.mrb[0].mxu0
        %v564 = vadd.f32 %v274, %v563
        %v565 = vpop.f32.mrb[0].mxu0
        %v566 = vpop.f32.mrb[0].mxu0
        %v567 = vadd.f32 %v274, %v566
        %v568 = vpop.f32.mrb[0].mxu0
        %569 = vmatprep.mubr.bf16.mxu0 %v360
        %570 = vmatmul.mubr.bf16.gmra.mrb[0].mxu0 %v359
        %v571 = vpop.f32.mrb[0].mxu0
        %v572 = vadd.f32 %v274, %v571
        %v573 = vpop.f32.mrb[0].mxu0
        %v574 = vpop.f32.mrb[0].mxu0
        %v575 = vadd.f32 %v274, %v574
        %v576 = vpop.f32.mrb[0].mxu0
        %577 = vmatprep.mubr.bf16.mxu0 %v363
        %578 = vmatmul.mubr.bf16.gmra.mrb[0].mxu0 %v362
        %v579 = vpop.f32.mrb[0].mxu0
        %v580 = vadd.f32 %v274, %v579
        %v581 = vpop.f32.mrb[0].mxu0
        %v582 = vpop.f32.mrb[0].mxu0
        %v583 = vadd.f32 %v274, %v582
        %v584 = vpop.f32.mrb[0].mxu0
        %585 = vmatprep.mubr.bf16.mxu0 %v366
        %586 = vmatmul.mubr.bf16.gmra.mrb[0].mxu0 %v365
        %v587 = vpop.f32.mrb[0].mxu0
        %v588 = vadd.f32 %v274, %v587
        %v589 = vpop.f32.mrb[0].mxu0
        %v590 = vpop.f32.mrb[0].mxu0
        %v591 = vadd.f32 %v274, %v590
        %v592 = vpop.f32.mrb[0].mxu0
        %593 = vmatprep.mubr.bf16.mxu0 %v369
        %594 = vmatmul.mubr.bf16.gmra.mrb[0].mxu0 %v368
        %v595 = vpop.f32.mrb[0].mxu0
        %v596 = vadd.f32 %v274, %v595
        %v597 = vpop.f32.mrb[0].mxu0
        %v598 = vpop.f32.mrb[0].mxu0
        %v599 = vadd.f32 %v274, %v598
        %v600 = vpop.f32.mrb[0].mxu0
        %601 = vmatprep.mubr.bf16.mxu0 %v372
        %602 = vmatmul.mubr.bf16.gmra.mrb[0].mxu0 %v371
        %v603 = vpop.f32.mrb[0].mxu0
        %v604 = vadd.f32 %v274, %v603
        %v605 = vpop.f32.mrb[0].mxu0
        %v606 = vpop.f32.mrb[0].mxu0
        %v607 = vadd.f32 %v274, %v606
        %v608 = vpop.f32.mrb[0].mxu0
        %609 = vmatprep.mubr.bf16.mxu0 %v375
        %610 = vmatmul.mubr.bf16.gmra.mrb[0].mxu0 %v374
        %v611 = vpop.f32.mrb[0].mxu0
        %v612 = vadd.f32 %v274, %v611
        %v613 = vpop.f32.mrb[0].mxu0
        %v614 = vpop.f32.mrb[0].mxu0
        %v615 = vadd.f32 %v274, %v614
        %v616 = vpop.f32.mrb[0].mxu0
        %617 = vmatprep.mubr.bf16.mxu0 %v378
        %618 = vmatmul.mubr.bf16.gmra.mrb[0].mxu0 %v377
        %v619 = vpop.f32.mrb[0].mxu0
        %v620 = vadd.f32 %v274, %v619
        %v621 = vpop.f32.mrb[0].mxu0
        %v622 = vpop.f32.mrb[0].mxu0
        %v623 = vadd.f32 %v274, %v622
        %v624 = vpop.f32.mrb[0].mxu0
        %625 = vdwg.mxu0
        %626 = vmatprep.subr.bf16.mxu0 0
        %627 = vmatpush1.bf16.msra.mxu0 %v484
        %628 = vmatprep.subr.bf16.mxu0 0
        %629 = vmatpush1.bf16.msra.mxu0 %v485
        %630 = vmatprep.subr.bf16.mxu0 0
        %631 = vmatpush1.bf16.msra.mxu0 0
        %632 = vmatprep.subr.bf16.mxu0 0
        %633 = vmatpush1.bf16.msra.mxu0 0
        %634 = vmatprep.subr.bf16.mxu0 0
        %635 = vmatpush1.bf16.msra.mxu0 0
        %636 = vmatprep.subr.bf16.mxu0 0
        %637 = vmatpush1.bf16.msra.mxu0 0
        %638 = vmatprep.subr.bf16.mxu0 0
        %639 = vmatpush1.bf16.msra.mxu0 0
        %640 = vmatprep.subr.bf16.mxu0 0
        %641 = vmatpush1.bf16.msra.mxu0 0
        %642 = vmatprep.subr.bf16.mxu0 0
        %643 = vmatpush1.bf16.msra.mxu0 0
        %644 = vmatprep.subr.bf16.mxu0 0
        %645 = vmatpush1.bf16.msra.mxu0 0
        %646 = vmatprep.subr.bf16.mxu0 0
        %647 = vmatpush1.bf16.msra.mxu0 0
        %648 = vmatprep.subr.bf16.mxu0 0
        %649 = vmatpush1.bf16.msra.mxu0 0
        %650 = vmatprep.subr.bf16.mxu0 0
        %651 = vmatpush1.bf16.msra.mxu0 0
        %652 = vmatprep.subr.bf16.mxu0 0
        %653 = vmatpush1.bf16.msra.mxu0 0
        %654 = vmatprep.subr.bf16.mxu0 0
        %655 = vmatpush1.bf16.msra.mxu0 0
        %656 = vmatprep.subr.bf16.mxu0 0
        %657 = vmatpush1.bf16.msra.mxu0 0
        %658 = vmatprep.mubr.bf16.mxu0 0
        %659 = vmatmul.mubr.bf16.gmra.mrb[0].mxu0 %v506
        %v660 = vpop.f32.mrb[0].mxu0
        %v661 = vadd.f32 %v564, %v660
        %v662 = vpop.f32.mrb[0].mxu0
        %v663 = vpop.f32.mrb[0].mxu0
        %v664 = vadd.f32 %v567, %v663
        %v665 = vpop.f32.mrb[0].mxu0
        %666 = vmatprep.mubr.bf16.mxu0 0
        %667 = vmatmul.mubr.bf16.gmra.mrb[0].mxu0 %v509
        %v668 = vpop.f32.mrb[0].mxu0
        %v669 = vadd.f32 %v572, %v668
        %v670 = vpop.f32.mrb[0].mxu0
        %v671 = vpop.f32.mrb[0].mxu0
        %v672 = vadd.f32 %v575, %v671
        %v673 = vpop.f32.mrb[0].mxu0
        %674 = vmatprep.mubr.bf16.mxu0 0
        %675 = vmatmul.mubr.bf16.gmra.mrb[0].mxu0 %v512
        %v676 = vpop.f32.mrb[0].mxu0
        %v677 = vadd.f32 %v580, %v676
        %v678 = vpop.f32.mrb[0].mxu0
        %v679 = vpop.f32.mrb[0].mxu0
        %v680 = vadd.f32 %v583, %v679
        %v681 = vpop.f32.mrb[0].mxu0
        %682 = vmatprep.mubr.bf16.mxu0 0
        %683 = vmatmul.mubr.bf16.gmra.mrb[0].mxu0 %v515
        %v684 = vpop.f32.mrb[0].mxu0
        %v685 = vadd.f32 %v588, %v684
        %v686 = vpop.f32.mrb[0].mxu0
        %v687 = vpop.f32.mrb[0].mxu0
        %v688 = vadd.f32 %v591, %v687
        %v689 = vpop.f32.mrb[0].mxu0
        %690 = vmatprep.mubr.bf16.mxu0 0
        %691 = vmatmul.mubr.bf16.gmra.mrb[0].mxu0 %v518
        %v692 = vpop.f32.mrb[0].mxu0
        %v693 = vadd.f32 %v596, %v692
        %v694 = vpop.f32.mrb[0].mxu0
        %v695 = vpop.f32.mrb[0].mxu0
        %v696 = vadd.f32 %v599, %v695
        %v697 = vpop.f32.mrb[0].mxu0
        %698 = vmatprep.mubr.bf16.mxu0 0
        %699 = vmatmul.mubr.bf16.gmra.mrb[0].mxu0 %v521
        %v700 = vpop.f32.mrb[0].mxu0
        %v701 = vadd.f32 %v604, %v700
        %v702 = vpop.f32.mrb[0].mxu0
        %v703 = vpop.f32.mrb[0].mxu0
        %v704 = vadd.f32 %v607, %v703
        %v705 = vpop.f32.mrb[0].mxu0
        %706 = vmatprep.mubr.bf16.mxu0 0
        %707 = vmatmul.mubr.bf16.gmra.mrb[0].mxu0 %v524
        %v708 = vpop.f32.mrb[0].mxu0
        %v709 = vadd.f32 %v612, %v708
        %v710 = vpop.f32.mrb[0].mxu0
        %v711 = vpop.f32.mrb[0].mxu0
        %v712 = vadd.f32 %v615, %v711
        %v713 = vpop.f32.mrb[0].mxu0
        %714 = vmatprep.mubr.bf16.mxu0 0
        %715 = vmatmul.mubr.bf16.gmra.mrb[0].mxu0 %v527
        %v716 = vpop.f32.mrb[0].mxu0
        %v717 = vadd.f32 %v620, %v716
        %v718 = vpop.f32.mrb[0].mxu0
        %v719 = vpop.f32.mrb[0].mxu0
        %v720 = vadd.f32 %v623, %v719
        %v721 = vpop.f32.mrb[0].mxu0
        %722 = vdwg.mxu0
        %v723 = vmax.f32 %v661, 0.0
        %v724 = vmax.f32 %v664, 0.0
        %v725 = vmax.f32 %v669, 0.0
        %v726 = vmax.f32 %v672, 0.0
        %v727 = vmax.f32 %v677, 0.0
        %v728 = vmax.f32 %v680, 0.0
        %v729 = vmax.f32 %v685, 0.0
        %v730 = vmax.f32 %v688, 0.0
        %v731 = vmax.f32 %v693, 0.0
        %v732 = vmax.f32 %v696, 0.0
        %v733 = vmax.f32 %v701, 0.0
        %v734 = vmax.f32 %v704, 0.0
        %v735 = vmax.f32 %v709, 0.0
        %v736 = vmax.f32 %v712, 0.0
        %v737 = vmax.f32 %v717, 0.0
        %v738 = vmax.f32 %v720, 0.0
        %v739 = vpack.c.bf16 %v724, %v723
        %v740 = vpack.c.bf16 %v726, %v725
        %v741 = vpack.c.bf16 %v728, %v727
        %v742 = vpack.c.bf16 %v730, %v729
        %v743 = vpack.c.bf16 %v732, %v731
        %v744 = vpack.c.bf16 %v734, %v733
        %v745 = vpack.c.bf16 %v736, %v735
        %v746 = vpack.c.bf16 %v738, %v737
        %v755 = vunpack.c.l.b16 %v739
        %v756 = vunpack.c.h.b16 %v739
        %v757 = vunpack.c.l.b16 %v740
        %v758 = vunpack.c.h.b16 %v740
        %v759 = vunpack.c.l.b16 %v741
        %v760 = vunpack.c.h.b16 %v741
        %v761 = vunpack.c.l.b16 %v742
        %v762 = vunpack.c.h.b16 %v742
        %v763 = vunpack.c.l.b16 %v743
        %v764 = vunpack.c.h.b16 %v743
        %v765 = vunpack.c.l.b16 %v744
        %v766 = vunpack.c.h.b16 %v744
        %v767 = vunpack.c.l.b16 %v745
        %v768 = vunpack.c.h.b16 %v745
        %v769 = vunpack.c.l.b16 %v746
        %v770 = vunpack.c.h.b16 %v746
        %v771 = vpack.c.b16 %v755, %v755
        %v772 = vpack.c.b16 %v756, %v756
        %v773 = vpack.c.b16 %v757, %v757
        %v774 = vpack.c.b16 %v758, %v758
        %v775 = vpack.c.b16 %v759, %v759
        %v776 = vpack.c.b16 %v760, %v760
        %v777 = vpack.c.b16 %v761, %v761
        %v778 = vpack.c.b16 %v762, %v762
        %v779 = vpack.c.b16 %v763, %v763
        %v780 = vpack.c.b16 %v764, %v764
        %v781 = vpack.c.b16 %v765, %v765
        %v782 = vpack.c.b16 %v766, %v766
        %v783 = vpack.c.b16 %v767, %v767
        %v784 = vpack.c.b16 %v768, %v768
        %v785 = vpack.c.b16 %v769, %v769
        %v786 = vpack.c.b16 %v770, %v770
        %vm803 = vcmask 519168
        %804 = vst.msk [vmem:[%s177] sm:$0xf] %vm803, %v771
        %805 = vst.msk [vmem:[%s177 + $0x4] sm:$0xf] %vm803, %v772
        %806 = vst.msk [vmem:[%s177 + $0x8] sm:$0xf] %vm803, %v773
        %807 = vst.msk [vmem:[%s177 + $0xc] sm:$0xf] %vm803, %v774
        %808 = vst.msk [vmem:[%s177 + $0x10] sm:$0xf] %vm803, %v775
        %809 = vst.msk [vmem:[%s177 + $0x14] sm:$0xf] %vm803, %v776
        %810 = vst.msk [vmem:[%s177 + $0x18] sm:$0xf] %vm803, %v777
        %811 = vst.msk [vmem:[%s177 + $0x1c] sm:$0xf] %vm803, %v778
        %812 = vst.msk [vmem:[%s177 + $0x20] sm:$0xf] %vm803, %v779
        %813 = vst.msk [vmem:[%s177 + $0x24] sm:$0xf] %vm803, %v780
        %814 = vst.msk [vmem:[%s177 + $0x28] sm:$0xf] %vm803, %v781
        %815 = vst.msk [vmem:[%s177 + $0x2c] sm:$0xf] %vm803, %v782
        %816 = vst.msk [vmem:[%s177 + $0x30] sm:$0xf] %vm803, %v783
        %817 = vst.msk [vmem:[%s177 + $0x34] sm:$0xf] %vm803, %v784
        %818 = vst.msk [vmem:[%s177 + $0x38] sm:$0xf] %vm803, %v785
        %819 = vst.msk [vmem:[%s177 + $0x3c] sm:$0xf] %vm803, %v786
        %s820 = sand.u32 %s90, 1
        %s821 = sand.u32 %s90, 1
        %s822 = smul.addr %s821, 64
        %s823 = scalar_lea.vmem [#allocation2], %s822
        // Predicated region
        $region33: #{encoder_cnn_forward.6} parent=31 // pred_check
          %p824 = pneg %p100
        $region34: #{encoder_cnn_forward.6} parent=31 // pred_check_branch
          %826 = sbr.rel (%p824) target = $region36
        $region35: #{encoder_cnn_forward.6} parent=31 // pred_region
          %s827 = smul.u32 16, %s14
          %s828 = ssub.s32 25, %s827
          %p829 = scmp.lt.s32.totalorder %s828, 16
          %s830 = scalar_select %p829, %s828, 16
          %s831 = smul.u32 64, %s830
          %p832 = scmp.ne.s32.totalorder 0, %s831
          %s833 = smul.addr %s827, 4
          %s834 = scalar_lea.vmem %s3, %s833
          // Predicated region
          $region37: #{encoder_cnn_forward.6} parent=35 // pred_check
            %p835 = pneg %p832
          $region38: #{encoder_cnn_forward.6} parent=35 // pred_check_branch
            %837 = sbr.rel (%p835) target = $region40
          $region39: #{encoder_cnn_forward.6} parent=35 // pred_region
            // Predicated region
            $region41: #{encoder_cnn_forward.6} parent=39 // pred_check
              _
            $region42: #{encoder_cnn_forward.6} parent=39 // pred_check_branch
              %839 = sbr.rel target = $region44
            $region43: #{encoder_cnn_forward.6} parent=39 // pred_region
              // Predicated region
              $region63: #{encoder_cnn_forward.6} parent=43 // pred_check
                _
              $region64: #{encoder_cnn_forward.6} parent=43 // pred_check_branch
                %918 = sbr.rel (0) target = $region66
              $region65: #{encoder_cnn_forward.6} parent=43 // pred_region
                %s920 = sshrl.u32 %s830, 4
                // While loop
                $region67: #{encoder_cnn_forward.6} parent=65 // loop_pre_header
                  _
                $region68: #{encoder_cnn_forward.6} parent=65 // loop_header
                  %s922 = sphi 0, %s924
                  %p923 = scmp.ge.s32.totalorder %s922, %s920
                  %s927 = sphi 0, %s964
                  %s928 = sphi %s823, %s967
                  %s929 = sphi %s834, %s968
                $region69: #{encoder_cnn_forward.6} parent=65 // loop_header_branch
                  %926 = sbr.rel (%p923) target = $region73
                $region70: #{encoder_cnn_forward.6} parent=65 // loop_body
                  %v930 = vld [vmem:[%s928] sm:$0xf]
                  %931 = vst [vmem:[%s929] sm:$0xf] %v930
                  %v932 = vld [vmem:[%s928 + $0x4] sm:$0xf]
                  %933 = vst [vmem:[%s929 + $0x4] sm:$0xf] %v932
                  %v934 = vld [vmem:[%s928 + $0x8] sm:$0xf]
                  %935 = vst [vmem:[%s929 + $0x8] sm:$0xf] %v934
                  %v936 = vld [vmem:[%s928 + $0xc] sm:$0xf]
                  %937 = vst [vmem:[%s929 + $0xc] sm:$0xf] %v936
                  %v938 = vld [vmem:[%s928 + $0x10] sm:$0xf]
                  %939 = vst [vmem:[%s929 + $0x10] sm:$0xf] %v938
                  %v940 = vld [vmem:[%s928 + $0x14] sm:$0xf]
                  %941 = vst [vmem:[%s929 + $0x14] sm:$0xf] %v940
                  %v942 = vld [vmem:[%s928 + $0x18] sm:$0xf]
                  %943 = vst [vmem:[%s929 + $0x18] sm:$0xf] %v942
                  %v944 = vld [vmem:[%s928 + $0x1c] sm:$0xf]
                  %945 = vst [vmem:[%s929 + $0x1c] sm:$0xf] %v944
                  %v946 = vld [vmem:[%s928 + $0x20] sm:$0xf]
                  %947 = vst [vmem:[%s929 + $0x20] sm:$0xf] %v946
                  %v948 = vld [vmem:[%s928 + $0x24] sm:$0xf]
                  %949 = vst [vmem:[%s929 + $0x24] sm:$0xf] %v948
                  %v950 = vld [vmem:[%s928 + $0x28] sm:$0xf]
                  %951 = vst [vmem:[%s929 + $0x28] sm:$0xf] %v950
                  %v952 = vld [vmem:[%s928 + $0x2c] sm:$0xf]
                  %953 = vst [vmem:[%s929 + $0x2c] sm:$0xf] %v952
                  %v954 = vld [vmem:[%s928 + $0x30] sm:$0xf]
                  %955 = vst [vmem:[%s929 + $0x30] sm:$0xf] %v954
                  %v956 = vld [vmem:[%s928 + $0x34] sm:$0xf]
                  %957 = vst [vmem:[%s929 + $0x34] sm:$0xf] %v956
                  %v958 = vld [vmem:[%s928 + $0x38] sm:$0xf]
                  %959 = vst [vmem:[%s929 + $0x38] sm:$0xf] %v958
                  %v960 = vld [vmem:[%s928 + $0x3c] sm:$0xf]
                  %961 = vst [vmem:[%s929 + $0x3c] sm:$0xf] %v960
                  %s962 = sadd.s32 1, %s927
                  %p963 = scmp.ge.s32.totalorder %s962, %s920
                  %s964 = scalar_select %p963, 0, %s962
                  %s965 = smul.u32 %s964, 64
                  %s966 = smul.u32 %s964, 64
                  %s967 = scalar_lea.vmem %s823, %s965 [#allocation2]
                  %s968 = scalar_lea.vmem %s834, %s966
                $region71: #{encoder_cnn_forward.6} parent=65 // loop_footer
                  %s924 = sadd.s32 %s922, 1
                $region72: #{encoder_cnn_forward.6} parent=65 // loop_footer_branch
                  %921 = sbr.rel target = $region68
                $region73: #{encoder_cnn_forward.6} parent=65 // loop_exit
                  _
                %s969 = sshrl.u32 %s830, 4
                %s970 = sand.u32 %s830, 15
                %s971 = smul.u32 %s969, 16
                %s972 = smul.u32 4, %s971
                %s973 = scalar_lea.vmem %s823, %s972 [#allocation2]
                %s974 = smul.u32 4, %s971
                %s975 = scalar_lea.vmem %s834, %s974
                // While loop
                $region74: #{encoder_cnn_forward.6} parent=65 // loop_pre_header
                  _
                $region75: #{encoder_cnn_forward.6} parent=65 // loop_header
                  %s977 = sphi 0, %s979
                  %p978 = scmp.ge.s32.totalorder %s977, %s970
                  %s982 = sphi 0, %s989
                  %s983 = sphi %s973, %s992
                  %s984 = sphi %s975, %s993
                $region76: #{encoder_cnn_forward.6} parent=65 // loop_header_branch
                  %981 = sbr.rel (%p978) target = $region80
                $region77: #{encoder_cnn_forward.6} parent=65 // loop_body
                  %v985 = vld [vmem:[%s983] sm:$0xf]
                  %986 = vst [vmem:[%s984] sm:$0xf] %v985
                  %s987 = sadd.s32 1, %s982
                  %p988 = scmp.ge.s32.totalorder %s987, %s970
                  %s989 = scalar_select %p988, 0, %s987
                  %s990 = smul.u32 %s989, 4
                  %s991 = smul.u32 %s989, 4
                  %s992 = scalar_lea.vmem %s973, %s990 [#allocation2]
                  %s993 = scalar_lea.vmem %s975, %s991
                $region78: #{encoder_cnn_forward.6} parent=65 // loop_footer
                  %s979 = sadd.s32 %s977, 1
                $region79: #{encoder_cnn_forward.6} parent=65 // loop_footer_branch
                  %976 = sbr.rel target = $region75
                $region80: #{encoder_cnn_forward.6} parent=65 // loop_exit
                  _
              $region66: #{encoder_cnn_forward.6} parent=43 // pred_fallthru
                _
            $region44: #{encoder_cnn_forward.6} parent=39 // pred_fallthru
              _
            // Predicated region
            $region45: #{encoder_cnn_forward.6} parent=39 // pred_check
              _
            $region46: #{encoder_cnn_forward.6} parent=39 // pred_check_branch
              %841 = sbr.rel (0) target = $region48
            $region47: #{encoder_cnn_forward.6} parent=39 // pred_region
              %s843 = sshrl.u32 %s830, 4
              // While loop
              $region49: #{encoder_cnn_forward.6} parent=47 // loop_pre_header
                _
              $region50: #{encoder_cnn_forward.6} parent=47 // loop_header
                %s845 = sphi 0, %s847
                %p846 = scmp.ge.s32.totalorder %s845, %s843
                %s850 = sphi 0, %s887
                %s851 = sphi %s823, %s890
                %s852 = sphi %s834, %s891
              $region51: #{encoder_cnn_forward.6} parent=47 // loop_header_branch
                %849 = sbr.rel (%p846) target = $region55
              $region52: #{encoder_cnn_forward.6} parent=47 // loop_body
                %v853 = vld [vmem:[%s851] sm:$0xf]
                %854 = vst [vmem:[%s852] sm:$0xf] %v853
                %v855 = vld [vmem:[%s851 + $0x4] sm:$0xf]
                %856 = vst [vmem:[%s852 + $0x4] sm:$0xf] %v855
                %v857 = vld [vmem:[%s851 + $0x8] sm:$0xf]
                %858 = vst [vmem:[%s852 + $0x8] sm:$0xf] %v857
                %v859 = vld [vmem:[%s851 + $0xc] sm:$0xf]
                %860 = vst [vmem:[%s852 + $0xc] sm:$0xf] %v859
                %v861 = vld [vmem:[%s851 + $0x10] sm:$0xf]
                %862 = vst [vmem:[%s852 + $0x10] sm:$0xf] %v861
                %v863 = vld [vmem:[%s851 + $0x14] sm:$0xf]
                %864 = vst [vmem:[%s852 + $0x14] sm:$0xf] %v863
                %v865 = vld [vmem:[%s851 + $0x18] sm:$0xf]
                %866 = vst [vmem:[%s852 + $0x18] sm:$0xf] %v865
                %v867 = vld [vmem:[%s851 + $0x1c] sm:$0xf]
                %868 = vst [vmem:[%s852 + $0x1c] sm:$0xf] %v867
                %v869 = vld [vmem:[%s851 + $0x20] sm:$0xf]
                %870 = vst [vmem:[%s852 + $0x20] sm:$0xf] %v869
                %v871 = vld [vmem:[%s851 + $0x24] sm:$0xf]
                %872 = vst [vmem:[%s852 + $0x24] sm:$0xf] %v871
                %v873 = vld [vmem:[%s851 + $0x28] sm:$0xf]
                %874 = vst [vmem:[%s852 + $0x28] sm:$0xf] %v873
                %v875 = vld [vmem:[%s851 + $0x2c] sm:$0xf]
                %876 = vst [vmem:[%s852 + $0x2c] sm:$0xf] %v875
                %v877 = vld [vmem:[%s851 + $0x30] sm:$0xf]
                %878 = vst [vmem:[%s852 + $0x30] sm:$0xf] %v877
                %v879 = vld [vmem:[%s851 + $0x34] sm:$0xf]
                %880 = vst [vmem:[%s852 + $0x34] sm:$0xf] %v879
                %v881 = vld [vmem:[%s851 + $0x38] sm:$0xf]
                %882 = vst [vmem:[%s852 + $0x38] sm:$0xf] %v881
                %v883 = vld [vmem:[%s851 + $0x3c] sm:$0xf]
                %884 = vst [vmem:[%s852 + $0x3c] sm:$0xf] %v883
                %s885 = sadd.s32 1, %s850
                %p886 = scmp.ge.s32.totalorder %s885, %s843
                %s887 = scalar_select %p886, 0, %s885
                %s888 = smul.u32 %s887, 64
                %s889 = smul.u32 %s887, 64
                %s890 = scalar_lea.vmem %s823, %s888 [#allocation2]
                %s891 = scalar_lea.vmem %s834, %s889
              $region53: #{encoder_cnn_forward.6} parent=47 // loop_footer
                %s847 = sadd.s32 %s845, 1
              $region54: #{encoder_cnn_forward.6} parent=47 // loop_footer_branch
                %844 = sbr.rel target = $region50
              $region55: #{encoder_cnn_forward.6} parent=47 // loop_exit
                _
              %s892 = sshrl.u32 %s830, 4
              %s893 = sand.u32 %s830, 15
              %s894 = smul.u32 %s892, 16
              %s895 = smul.u32 4, %s894
              %s896 = scalar_lea.vmem %s823, %s895 [#allocation2]
              %s897 = smul.u32 4, %s894
              %s898 = scalar_lea.vmem %s834, %s897
              // While loop
              $region56: #{encoder_cnn_forward.6} parent=47 // loop_pre_header
                _
              $region57: #{encoder_cnn_forward.6} parent=47 // loop_header
                %s900 = sphi 0, %s902
                %p901 = scmp.ge.s32.totalorder %s900, %s893
                %s905 = sphi 0, %s912
                %s906 = sphi %s896, %s915
                %s907 = sphi %s898, %s916
              $region58: #{encoder_cnn_forward.6} parent=47 // loop_header_branch
                %904 = sbr.rel (%p901) target = $region62
              $region59: #{encoder_cnn_forward.6} parent=47 // loop_body
                %v908 = vld [vmem:[%s906] sm:$0xf]
                %909 = vst [vmem:[%s907] sm:$0xf] %v908
                %s910 = sadd.s32 1, %s905
                %p911 = scmp.ge.s32.totalorder %s910, %s893
                %s912 = scalar_select %p911, 0, %s910
                %s913 = smul.u32 %s912, 4
                %s914 = smul.u32 %s912, 4
                %s915 = scalar_lea.vmem %s896, %s913 [#allocation2]
                %s916 = scalar_lea.vmem %s898, %s914
              $region60: #{encoder_cnn_forward.6} parent=47 // loop_footer
                %s902 = sadd.s32 %s900, 1
              $region61: #{encoder_cnn_forward.6} parent=47 // loop_footer_branch
                %899 = sbr.rel target = $region57
              $region62: #{encoder_cnn_forward.6} parent=47 // loop_exit
                _
            $region48: #{encoder_cnn_forward.6} parent=39 // pred_fallthru
              _
          $region40: #{encoder_cnn_forward.6} parent=35 // pred_fallthru
            _
          %994 = vnop
        $region36: #{encoder_cnn_forward.6} parent=31 // pred_fallthru
          _
      $region32: #{encoder_cnn_forward.6} parent=5 // pred_fallthru
        _
      %p995 = scmp.le.s32.totalorder 2, %s9
      // Predicated region
      $region81: #{encoder_cnn_forward.6} parent=5 // pred_check
        %p996 = pneg %p995
      $region82: #{encoder_cnn_forward.6} parent=5 // pred_check_branch
        %998 = sbr.rel (%p996) target = $region84
      $region83: #{encoder_cnn_forward.6} parent=5 // pred_region
        %s999 = ssub.s32 %s9, 2
        // Predicated region
        $region85: #{encoder_cnn_forward.6} parent=83 // pred_check
          %p1000 = pneg %p106
        $region86: #{encoder_cnn_forward.6} parent=83 // pred_check_branch
          %1002 = sbr.rel (%p1000) target = $region88
        $region87: #{encoder_cnn_forward.6} parent=83 // pred_region
          %s1003 = sand.u32 %s91, 1
          %s1004 = sand.u32 %s91, 1
          %s1005 = smul.addr %s1004, 64
          %s1006 = scalar_lea.vmem [#allocation2], %s1005
        $region88: #{encoder_cnn_forward.6} parent=83 // pred_fallthru
          _
      $region84: #{encoder_cnn_forward.6} parent=5 // pred_fallthru
        _
    $region6: #{encoder_cnn_forward.6} parent=1 // loop_footer
      %s13 = sadd.s32 1, %s9
    $region7: #{encoder_cnn_forward.6} parent=1 // loop_footer_branch
      %8 = sbr.rel target = $region3
    $region8: #{encoder_cnn_forward.6} parent=1 // loop_exit
      _

// kernel: encoder_cnn_forward.7
$region0: #{encoder_cnn_forward.7}
  #allocation0 [shape = 'u32[]', space=smem, size = 0x4, offset = 0x4, fixed_abs, tag = 'smem constant byte address 0x4 - core index']
  #allocation1 [shape = 'u32[144,128]{1,0:T(1,128)}', space=vmem, size = 0x12000, scoped, tag = 'internal scratch']
  %s0 = inlined_call_operand.vmem [shape: bf16[36,576], index: 0, kind: input, shape index: {}]
  %s1 = inlined_call_operand.vmem [shape: bf16[576,128], index: 1, kind: input, shape index: {}]
  %s2 = inlined_call_operand.vmem [shape: f32[1,128], index: 2, kind: input, shape index: {}]
  %s3 = inlined_call_operand.vmem [shape: bf16[36,128], index: 3, kind: output, shape index: {}]
  %s4 = sld [smem:[#allocation0]]
  $region89: #{encoder_cnn_forward.7} parent=0
    _
  %s6 = ssub.s32 1, %s4
  %s7 = scalar_select 0, %s6, %s4
  $region1: #{encoder_cnn_forward.7} parent=0
    #allocation2 [shape = 'u8[16384]{0}', space=vmem, size = 0x4000, scoped, tag = 'output window, operand 0']
    loop: start=0, step=1, limit=4
    $region2: #{encoder_cnn_forward.7} parent=1 // loop_pre_header
      _
    $region3: #{encoder_cnn_forward.7} parent=1 // loop_header
      %s9 = sphi 0, %s13
      %p10 = scmp.ge.s32.totalorder %s9, 4
      %s19 = sphi 0, %s21
      %s22 = sphi 0, %s19
      %s23 = sphi 0, %s22
      %s39 = sphi 0, %s23
      %s43 = sphi 0, %s43
      %s45 = sphi 0, %s43
      %s46 = sphi 0, %s45
      %s60 = sphi 0, %s46
      %s64 = sphi 0, %s64
      %s66 = sphi 0, %s64
      %s67 = sphi 0, %s66
      %s81 = sphi 0, %s67
      %s87 = sphi 0, %s89
      %s90 = sphi 0, %s87
      %s91 = sphi 0, %s90
      %s107 = sphi 0, %s91
    $region4: #{encoder_cnn_forward.7} parent=1 // loop_header_branch
      %12 = sbr.rel (%p10) target = $region8
    $region5: #{encoder_cnn_forward.7} parent=1 // loop_body
      %s14 = ssub.s32 %s9, 1
      %s15 = ssub.s32 %s9, 2
      %s16 = sadd.s32 %s9, 1
      %s17 = ssub.s32 %s9, %s16
      %p18 = scmp.eq.s32.totalorder %s17, 0
      %s20 = sadd.s32 %s19, 1
      %s21 = scalar_select %p18, %s19, %s20
      %p24 = pneg %p18
      %p25 = scmp.eq.s32.totalorder %s9, 1
      %p26 = por %p24, %p25
      %p27 = scmp.ne.s32.totalorder %s19, %s22
      %p28 = scmp.eq.s32.totalorder %s9, 0
      %p29 = por %p27, %p28
      %p30 = scmp.ne.s32.totalorder %s19, %s22
      %p31 = scmp.eq.s32.totalorder %s14, 1
      %p32 = por %p30, %p31
      %p33 = scmp.ne.s32.totalorder %s22, %s23
      %p34 = scmp.eq.s32.totalorder %s14, 0
      %p35 = por %p33, %p34
      %p36 = scmp.ne.s32.totalorder %s22, %s23
      %p37 = scmp.eq.s32.totalorder %s15, 1
      %p38 = por %p36, %p37
      %p40 = scmp.ne.s32.totalorder %s23, %s39
      %p41 = scmp.eq.s32.totalorder %s15, 0
      %p42 = por %p40, %p41
      %s44 = sadd.s32 %s43, 1
      %p47 = scmp.eq.s32.totalorder %s9, 1
      %p48 = scmp.ne.s32.totalorder %s43, %s45
      %p49 = scmp.eq.s32.totalorder %s9, 0
      %p50 = por %p48, %p49
      %p51 = scmp.ne.s32.totalorder %s43, %s45
      %p52 = scmp.eq.s32.totalorder %s14, 1
      %p53 = por %p51, %p52
      %p54 = scmp.ne.s32.totalorder %s45, %s46
      %p55 = scmp.eq.s32.totalorder %s14, 0
      %p56 = por %p54, %p55
      %p57 = scmp.ne.s32.totalorder %s45, %s46
      %p58 = scmp.eq.s32.totalorder %s15, 1
      %p59 = por %p57, %p58
      %p61 = scmp.ne.s32.totalorder %s46, %s60
      %p62 = scmp.eq.s32.totalorder %s15, 0
      %p63 = por %p61, %p62
      %s65 = sadd.s32 %s64, 1
      %p68 = scmp.eq.s32.totalorder %s9, 1
      %p69 = scmp.ne.s32.totalorder %s64, %s66
      %p70 = scmp.eq.s32.totalorder %s9, 0
      %p71 = por %p69, %p70
      %p72 = scmp.ne.s32.totalorder %s64, %s66
      %p73 = scmp.eq.s32.totalorder %s14, 1
      %p74 = por %p72, %p73
      %p75 = scmp.ne.s32.totalorder %s66, %s67
      %p76 = scmp.eq.s32.totalorder %s14, 0
      %p77 = por %p75, %p76
      %p78 = scmp.ne.s32.totalorder %s66, %s67
      %p79 = scmp.eq.s32.totalorder %s15, 1
      %p80 = por %p78, %p79
      %p82 = scmp.ne.s32.totalorder %s67, %s81
      %p83 = scmp.eq.s32.totalorder %s15, 0
      %p84 = por %p82, %p83
      %s85 = ssub.s32 %s9, %s16
      %p86 = scmp.eq.s32.totalorder %s85, 0
      %s88 = sadd.s32 %s87, 1
      %s89 = scalar_select %p86, %s87, %s88
      %p92 = pneg %p86
      %p93 = scmp.eq.s32.totalorder %s9, 1
      %p94 = por %p92, %p93
      %p95 = scmp.ne.s32.totalorder %s87, %s90
      %p96 = scmp.eq.s32.totalorder %s9, 0
      %p97 = por %p95, %p96
      %p98 = scmp.ne.s32.totalorder %s87, %s90
      %p99 = scmp.eq.s32.totalorder %s14, 1
      %p100 = por %p98, %p99
      %p101 = scmp.ne.s32.totalorder %s90, %s91
      %p102 = scmp.eq.s32.totalorder %s14, 0
      %p103 = por %p101, %p102
      %p104 = scmp.ne.s32.totalorder %s90, %s91
      %p105 = scmp.eq.s32.totalorder %s15, 1
      %p106 = por %p104, %p105
      %p108 = scmp.ne.s32.totalorder %s91, %s107
      %p109 = scmp.eq.s32.totalorder %s15, 0
      %p110 = por %p108, %p109
      %p111 = scmp.le.s32.totalorder 1, %s9
      %p112 = scmp.lt.s32.totalorder %s9, 3
      %p113 = pnand %p111, %p112
      %p114 = pneg %p113
      // Predicated region
      $region9: #{encoder_cnn_forward.7} parent=5 // pred_check
        _
      $region10: #{encoder_cnn_forward.7} parent=5 // pred_check_branch
        %116 = sbr.rel (%p113) target = $region12
      $region11: #{encoder_cnn_forward.7} parent=5 // pred_region
        %s117 = ssub.s32 %s9, 1
        // Predicated region
        $region13: #{encoder_cnn_forward.7} parent=11 // pred_check
          %p118 = pneg %p56
        $region14: #{encoder_cnn_forward.7} parent=11 // pred_check_branch
          %120 = sbr.rel (%p118) target = $region16
        $region15: #{encoder_cnn_forward.7} parent=11 // pred_region
          _
        $region16: #{encoder_cnn_forward.7} parent=11 // pred_fallthru
          _
        // Predicated region
        $region17: #{encoder_cnn_forward.7} parent=11 // pred_check
          %p121 = pneg %p77
        $region18: #{encoder_cnn_forward.7} parent=11 // pred_check_branch
          %123 = sbr.rel (%p121) target = $region20
        $region19: #{encoder_cnn_forward.7} parent=11 // pred_region
          _
        $region20: #{encoder_cnn_forward.7} parent=11 // pred_fallthru
          _
      $region12: #{encoder_cnn_forward.7} parent=5 // pred_fallthru
        _
      %p124 = scmp.lt.s32.totalorder %s9, 2
      // Predicated region
      $region21: #{encoder_cnn_forward.7} parent=5 // pred_check
        %p125 = pneg %p124
      $region22: #{encoder_cnn_forward.7} parent=5 // pred_check_branch
        %127 = sbr.rel (%p125) target = $region24
      $region23: #{encoder_cnn_forward.7} parent=5 // pred_region
        // Predicated region
        $region25: #{encoder_cnn_forward.7} parent=23 // pred_check
          %p128 = pneg %p29
        $region26: #{encoder_cnn_forward.7} parent=23 // pred_check_branch
          %130 = sbr.rel (%p128) target = $region28
        $region27: #{encoder_cnn_forward.7} parent=23 // pred_region
          %s131 = smul.u32 4, %s9
          %s132 = ssub.s32 5, %s131
          %p133 = scmp.lt.s32.totalorder %s132, 4
          %s134 = scalar_select %p133, %s132, 4
          %s135 = smul.u32 64, %s134
          %s136 = smul.u32 %s135, 5
          %p137 = scmp.lt.s32.totalorder %s131, 4
          %s138 = scalar_select %p137, %s131, 4
          %s139 = smul.addr %s138, 5
          %s140 = smul.addr %s139, 4
          %s141 = scalar_lea.vmem %s0, %s140
          %s142 = smul.u32 4, %s9
          %s143 = ssub.s32 5, %s142
          %p144 = scmp.lt.s32.totalorder %s143, 4
          %s145 = scalar_select %p144, %s143, 4
          %s146 = smul.u32 64, %s145
          %s147 = smul.u32 %s146, 5
        $region28: #{encoder_cnn_forward.7} parent=23 // pred_fallthru
          _
      $region24: #{encoder_cnn_forward.7} parent=5 // pred_fallthru
        _
      %p148 = scmp.le.s32.totalorder 1, %s9
      %p149 = scmp.lt.s32.totalorder %s9, 3
      %p150 = pnand %p148, %p149
      %p151 = pneg %p150
      // Predicated region
      $region29: #{encoder_cnn_forward.7} parent=5 // pred_check
        _
      $region30: #{encoder_cnn_forward.7} parent=5 // pred_check_branch
        %153 = sbr.rel (%p150) target = $region32
      $region31: #{encoder_cnn_forward.7} parent=5 // pred_region
        %s154 = ssub.s32 %s9, 1
        %s155 = smul.u32 4, %s14
        %s156 = ssub.s32 5, %s155
        %p157 = scmp.lt.s32.totalorder %s156, 4
        %s158 = scalar_select %p157, %s156, 4
        %s159 = smul.u32 64, %s158
        %s160 = smul.u32 %s159, 5
        %p161 = scmp.lt.s32.totalorder %s155, 4
        %s162 = scalar_select %p161, %s155, 4
        %s163 = smul.addr %s162, 5
        %s164 = smul.addr %s163, 4
        %s165 = scalar_lea.vmem %s0, %s164
        %p166 = pneg %p35
        %p167 = pneg %p32
        %p168 = pneg %p56
        %p169 = pneg %p53
        %p170 = pneg %p77
        %p171 = pneg %p74
        %p172 = pneg %p103
        %p173 = pneg %p100
        %s174 = sand.u32 %s90, 1
        %s175 = sand.u32 %s90, 1
        %s176 = smul.addr %s175, 16
        %s177 = scalar_lea.vmem [#allocation2], %s176
        %s178 = smul.u32 4, %s14
        %s179 = ssub.s32 5, %s178
        %p180 = scmp.lt.s32.totalorder %s179, 4
        %s181 = scalar_select %p180, %s179, 4
        %s182 = smul.u32 64, %s181
        %s183 = smul.u32 %s182, 5
        %p184 = scmp.lt.s32.totalorder %s178, 4
        %s185 = scalar_select %p184, %s178, 4
        %s186 = smul.addr %s185, 5
        %s187 = smul.addr %s186, 4
        %s188 = scalar_lea.vmem %s0, %s187
        %s189 = smul.u32 4, %s14
        %s190 = ssub.s32 5, %s189
        %p191 = scmp.lt.s32.totalorder %s190, 4
        %s192 = scalar_select %p191, %s190, 4
        %s193 = smul.u32 64, %s192
        %s194 = smul.u32 %s193, 5
        %s195 = smul.u32 4, %s14
        %s196 = ssub.s32 5, %s195
        %p197 = scmp.lt.s32.totalorder %s196, 4
        %s198 = scalar_select %p197, %s196, 4
        %s199 = smul.u32 64, %s198
        %v201 = vld [vmem:[%s188] sm:$0xff]
        %v202 = vld [vmem:[%s188 + $0x8] sm:$0xff]
        %v203 = vld [vmem:[%s188 + $0x10] sm:$0xf]
        %v204 = vld [vmem:[%s188 + $0x14] sm:$0xff]
        %v205 = vld [vmem:[%s188 + $0x1c] sm:$0xff]
        %v206 = vld [vmem:[%s188 + $0x24] sm:$0xf]
        %v207 = vld [vmem:[%s188 + $0x28] sm:$0xff]
        %v208 = vld [vmem:[%s188 + $0x30] sm:$0xff]
        %v209 = vld [vmem:[%s188 + $0x38] sm:$0xf]
        %v210 = vld [vmem:[%s188 + $0x3c] sm:$0xff]
        %v211 = vld [vmem:[%s188 + $0x44] sm:$0xff]
        %v212 = vld [vmem:[%s188 + $0x4c] sm:$0xf]
        %v213 = vld [vmem:[%s1] sm:$0xf]
        %v214 = vld [vmem:[%s1 + $0x4] sm:$0xf]
        %v215 = vld [vmem:[%s1 + $0x8] sm:$0xf]
        %v216 = vld [vmem:[%s1 + $0xc] sm:$0xf]
        %v217 = vld [vmem:[%s1 + $0x10] sm:$0xf]
        %v218 = vld [vmem:[%s1 + $0x14] sm:$0xf]
        %v219 = vld [vmem:[%s1 + $0x18] sm:$0xf]
        %v220 = vld [vmem:[%s1 + $0x1c] sm:$0xf]
        %v221 = vld [vmem:[%s1 + $0x20] sm:$0xf]
        %v222 = vld [vmem:[%s1 + $0x24] sm:$0xf]
        %v223 = vld [vmem:[%s1 + $0x28] sm:$0xf]
        %v224 = vld [vmem:[%s1 + $0x2c] sm:$0xf]
        %v225 = vld [vmem:[%s1 + $0x30] sm:$0xf]
        %v226 = vld [vmem:[%s1 + $0x34] sm:$0xf]
        %v227 = vld [vmem:[%s1 + $0x38] sm:$0xf]
        %v228 = vld [vmem:[%s1 + $0x3c] sm:$0xf]
        %v229 = vld [vmem:[%s1 + $0x40] sm:$0xf]
        %v230 = vld [vmem:[%s1 + $0x44] sm:$0xf]
        %v231 = vld [vmem:[%s1 + $0x48] sm:$0xf]
        %v232 = vld [vmem:[%s1 + $0x4c] sm:$0xf]
        %v233 = vld [vmem:[%s1 + $0x50] sm:$0xf]
        %v234 = vld [vmem:[%s1 + $0x54] sm:$0xf]
        %v235 = vld [vmem:[%s1 + $0x58] sm:$0xf]
        %v236 = vld [vmem:[%s1 + $0x5c] sm:$0xf]
        %v237 = vld [vmem:[%s1 + $0x60] sm:$0xf]
        %v238 = vld [vmem:[%s1 + $0x64] sm:$0xf]
        %v239 = vld [vmem:[%s1 + $0x68] sm:$0xf]
        %v240 = vld [vmem:[%s1 + $0x6c] sm:$0xf]
        %v241 = vld [vmem:[%s1 + $0x70] sm:$0xf]
        %v242 = vld [vmem:[%s1 + $0x74] sm:$0xf]
        %v243 = vld [vmem:[%s1 + $0x78] sm:$0xf]
        %v244 = vld [vmem:[%s1 + $0x7c] sm:$0xf]
        %v245 = vld [vmem:[%s1 + $0x80] sm:$0xf]
        %v246 = vld [vmem:[%s1 + $0x84] sm:$0xf]
        %v247 = vld [vmem:[%s1 + $0x88] sm:$0xf]
        %v248 = vld [vmem:[%s1 + $0x8c] sm:$0xf]
        %v249 = vld [vmem:[%s1 + $0x90] sm:$0xf]
        %v250 = vld [vmem:[%s1 + $0x94] sm:$0xf]
        %v251 = vld [vmem:[%s1 + $0x98] sm:$0xf]
        %v252 = vld [vmem:[%s1 + $0x9c] sm:$0xf]
        %v253 = vld [vmem:[%s1 + $0xa0] sm:$0xf]
        %v254 = vld [vmem:[%s1 + $0xa4] sm:$0xf]
        %v255 = vld [vmem:[%s1 + $0xa8] sm:$0xf]
        %v256 = vld [vmem:[%s1 + $0xac] sm:$0xf]
        %v257 = vld [vmem:[%s1 + $0xb0] sm:$0xf]
        %v258 = vld [vmem:[%s1 + $0xb4] sm:$0xf]
        %v259 = vld [vmem:[%s1 + $0xb8] sm:$0xf]
        %v260 = vld [vmem:[%s1 + $0xbc] sm:$0xf]
        %v261 = vld [vmem:[%s1 + $0xc0] sm:$0xf]
        %v262 = vld [vmem:[%s1 + $0xc4] sm:$0xf]
        %v263 = vld [vmem:[%s1 + $0xc8] sm:$0xf]
        %v264 = vld [vmem:[%s1 + $0xcc] sm:$0xf]
        %v265 = vld [vmem:[%s1 + $0xd0] sm:$0xf]
        %v266 = vld [vmem:[%s1 + $0xd4] sm:$0xf]
        %v267 = vld [vmem:[%s1 + $0xd8] sm:$0xf]
        %v268 = vld [vmem:[%s1 + $0xdc] sm:$0xf]
        %v269 = vld [vmem:[%s1 + $0xe0] sm:$0xf]
        %v270 = vld [vmem:[%s1 + $0xe4] sm:$0xf]
        %v271 = vld [vmem:[%s1 + $0xe8] sm:$0xf]
        %v272 = vld [vmem:[%s1 + $0xec] sm:$0xf]
        %v273 = vld [vmem:[%s1 + $0xf0] sm:$0xf]
        %v274 = vld [vmem:[%s1 + $0xf4] sm:$0xf]
        %v275 = vld [vmem:[%s1 + $0xf8] sm:$0xf]
        %v276 = vld [vmem:[%s1 + $0xfc] sm:$0xf]
        %v277 = vld [vmem:[%s1 + $0x100] sm:$0xf]
        %v278 = vld [vmem:[%s1 + $0x104] sm:$0xf]
        %v279 = vld [vmem:[%s1 + $0x108] sm:$0xf]
        %v280 = vld [vmem:[%s1 + $0x10c] sm:$0xf]
        %v281 = vld [vmem:[%s1 + $0x110] sm:$0xf]
        %v282 = vld [vmem:[%s1 + $0x114] sm:$0xf]
        %v283 = vld [vmem:[%s1 + $0x118] sm:$0xf]
        %v284 = vld [vmem:[%s1 + $0x11c] sm:$0xf]
        %v285 = vld [vmem:[%s2] sm:$0x1]
        %v287 = vlaneseq
        %v288 = vshrl.u32 %v287, 7
        %v289 = vsub.s32 0, %v288
        %v290 = vrot.slane %v285, %v289
        %v304 = vunpack.c.l.b16 %v201
        %v305 = vunpack.c.h.b16 %v201
        %v306 = vunpack.c.l.b16 %v202
        %v307 = vunpack.c.h.b16 %v202
        %v308 = vunpack.c.l.b16 %v203
        %v309 = vunpack.c.l.b16 %v204
        %v310 = vunpack.c.h.b16 %v204
        %v311 = vunpack.c.l.b16 %v205
        %v312 = vunpack.c.h.b16 %v205
        %v313 = vunpack.c.l.b16 %v206
        %v314 = vunpack.c.l.b16 %v207
        %v315 = vunpack.c.h.b16 %v207
        %v316 = vunpack.c.l.b16 %v208
        %v317 = vunpack.c.h.b16 %v208
        %v318 = vunpack.c.l.b16 %v209
        %v319 = vunpack.c.l.b16 %v210
        %v320 = vunpack.c.h.b16 %v210
        %v321 = vunpack.c.l.b16 %v211
        %v322 = vunpack.c.h.b16 %v211
        %v323 = vunpack.c.l.b16 %v212
        %v324 = vpack.c.b16 %v309, %v304
        %v325 = vpack.c.b16 %v310, %v305
        %v326 = vpack.c.b16 %v311, %v306
        %v327 = vpack.c.b16 %v312, %v307
        %v328 = vpack.c.b16 %v313, %v308
        %v329 = vpack.c.b16 %v319, %v314
        %v330 = vpack.c.b16 %v320, %v315
        %v331 = vpack.c.b16 %v321, %v316
        %v332 = vpack.c.b16 %v322, %v317
        %v333 = vpack.c.b16 %v323, %v318
        %v414 = vunpack.c.l.b16 %v213
        %v415 = vunpack.c.l.b16 %v214
        %v416 = vunpack.c.l.b16 %v215
        %v417 = vunpack.c.l.b16 %v216
        %v418 = vunpack.c.l.b16 %v217
        %v419 = vunpack.c.l.b16 %v218
        %v420 = vunpack.c.l.b16 %v219
        %v421 = vunpack.c.l.b16 %v220
        %v422 = vunpack.c.l.b16 %v221
        %v423 = vunpack.c.l.b16 %v222
        %v424 = vunpack.c.l.b16 %v223
        %v425 = vunpack.c.l.b16 %v224
        %v426 = vunpack.c.l.b16 %v225
        %v427 = vunpack.c.l.b16 %v226
        %v428 = vunpack.c.l.b16 %v227
        %v429 = vunpack.c.l.b16 %v228
        %v430 = vunpack.c.l.b16 %v229
        %v431 = vunpack.c.l.b16 %v230
        %v432 = vunpack.c.l.b16 %v231
        %v433 = vunpack.c.l.b16 %v232
        %v434 = vunpack.c.l.b16 %v233
        %v435 = vunpack.c.l.b16 %v234
        %v436 = vunpack.c.l.b16 %v235
        %v437 = vunpack.c.l.b16 %v236
        %v438 = vunpack.c.l.b16 %v237
        %v439 = vunpack.c.l.b16 %v238
        %v440 = vunpack.c.l.b16 %v239
        %v441 = vunpack.c.l.b16 %v240
        %v442 = vunpack.c.l.b16 %v241
        %v443 = vunpack.c.l.b16 %v242
        %v444 = vunpack.c.l.b16 %v243
        %v445 = vunpack.c.l.b16 %v244
        %v446 = vunpack.c.l.b16 %v245
        %v447 = vunpack.c.l.b16 %v246
        %v448 = vunpack.c.l.b16 %v247
        %v449 = vunpack.c.l.b16 %v248
        %v450 = vunpack.c.l.b16 %v249
        %v451 = vunpack.c.l.b16 %v250
        %v452 = vunpack.c.l.b16 %v251
        %v453 = vunpack.c.l.b16 %v252
        %v454 = vunpack.c.l.b16 %v253
        %v455 = vunpack.c.l.b16 %v254
        %v456 = vunpack.c.l.b16 %v255
        %v457 = vunpack.c.l.b16 %v256
        %v458 = vunpack.c.l.b16 %v257
        %v459 = vunpack.c.l.b16 %v258
        %v460 = vunpack.c.l.b16 %v259
        %v461 = vunpack.c.l.b16 %v260
        %v462 = vunpack.c.l.b16 %v261
        %v463 = vunpack.c.l.b16 %v262
        %v464 = vunpack.c.l.b16 %v263
        %v465 = vunpack.c.l.b16 %v264
        %v466 = vunpack.c.l.b16 %v265
        %v467 = vunpack.c.l.b16 %v266
        %v468 = vunpack.c.l.b16 %v267
        %v469 = vunpack.c.l.b16 %v268
        %v470 = vunpack.c.l.b16 %v269
        %v471 = vunpack.c.l.b16 %v270
        %v472 = vunpack.c.l.b16 %v271
        %v473 = vunpack.c.l.b16 %v272
        %v474 = vunpack.c.l.b16 %v273
        %v475 = vunpack.c.l.b16 %v274
        %v476 = vunpack.c.l.b16 %v275
        %v477 = vunpack.c.l.b16 %v276
        %v478 = vunpack.c.l.b16 %v277
        %v479 = vunpack.c.l.b16 %v278
        %v480 = vunpack.c.l.b16 %v279
        %v481 = vunpack.c.l.b16 %v280
        %v482 = vunpack.c.l.b16 %v281
        %v483 = vunpack.c.l.b16 %v282
        %v484 = vunpack.c.l.b16 %v283
        %v485 = vunpack.c.l.b16 %v284
        %v486 = vpack.c.b16 %v415, %v414
        %v487 = vpack.c.b16 %v417, %v416
        %v488 = vpack.c.b16 %v419, %v418
        %v489 = vpack.c.b16 %v421, %v420
        %v490 = vpack.c.b16 %v423, %v422
        %v491 = vpack.c.b16 %v425, %v424
        %v492 = vpack.c.b16 %v427, %v426
        %v493 = vpack.c.b16 %v429, %v428
        %v494 = vpack.c.b16 %v431, %v430
        %v495 = vpack.c.b16 %v433, %v432
        %v496 = vpack.c.b16 %v435, %v434
        %v497 = vpack.c.b16 %v437, %v436
        %v498 = vpack.c.b16 %v439, %v438
        %v499 = vpack.c.b16 %v441, %v440
        %v500 = vpack.c.b16 %v443, %v442
        %v501 = vpack.c.b16 %v445, %v444
        %v502 = vpack.c.b16 %v447, %v446
        %v503 = vpack.c.b16 %v449, %v448
        %v504 = vpack.c.b16 %v451, %v450
        %v505 = vpack.c.b16 %v453, %v452
        %v506 = vpack.c.b16 %v455, %v454
        %v507 = vpack.c.b16 %v457, %v456
        %v508 = vpack.c.b16 %v459, %v458
        %v509 = vpack.c.b16 %v461, %v460
        %v510 = vpack.c.b16 %v463, %v462
        %v511 = vpack.c.b16 %v465, %v464
        %v512 = vpack.c.b16 %v467, %v466
        %v513 = vpack.c.b16 %v469, %v468
        %v514 = vpack.c.b16 %v471, %v470
        %v515 = vpack.c.b16 %v473, %v472
        %v516 = vpack.c.b16 %v475, %v474
        %v517 = vpack.c.b16 %v477, %v476
        %v518 = vpack.c.b16 %v479, %v478
        %v519 = vpack.c.b16 %v481, %v480
        %v520 = vpack.c.b16 %v483, %v482
        %v521 = vpack.c.b16 %v485, %v484
        %vm558 = vcmask 523264
        %v560 = vsel %vm558, %v328, 0
        %v563 = vsel %vm558, %v333, 0
        %565 = vmatprep.subr.bf16.mxu0 0
        %566 = vmatpush1.bf16.msra.mxu0 %v486
        %567 = vmatprep.subr.bf16.mxu0 0
        %568 = vmatpush1.bf16.msra.mxu0 %v487
        %569 = vmatprep.subr.bf16.mxu0 0
        %570 = vmatpush1.bf16.msra.mxu0 %v488
        %571 = vmatprep.subr.bf16.mxu0 0
        %572 = vmatpush1.bf16.msra.mxu0 %v489
        %573 = vmatprep.subr.bf16.mxu0 0
        %574 = vmatpush1.bf16.msra.mxu0 %v490
        %575 = vmatprep.subr.bf16.mxu0 0
        %576 = vmatpush1.bf16.msra.mxu0 %v491
        %577 = vmatprep.subr.bf16.mxu0 0
        %578 = vmatpush1.bf16.msra.mxu0 %v492
        %579 = vmatprep.subr.bf16.mxu0 0
        %580 = vmatpush1.bf16.msra.mxu0 %v493
        %581 = vmatprep.subr.bf16.mxu0 0
        %582 = vmatpush1.bf16.msra.mxu0 %v494
        %583 = vmatprep.subr.bf16.mxu0 0
        %584 = vmatpush1.bf16.msra.mxu0 %v495
        %585 = vmatprep.subr.bf16.mxu0 0
        %586 = vmatpush1.bf16.msra.mxu0 %v496
        %587 = vmatprep.subr.bf16.mxu0 0
        %588 = vmatpush1.bf16.msra.mxu0 %v497
        %589 = vmatprep.subr.bf16.mxu0 0
        %590 = vmatpush1.bf16.msra.mxu0 %v498
        %591 = vmatprep.subr.bf16.mxu0 0
        %592 = vmatpush1.bf16.msra.mxu0 %v499
        %593 = vmatprep.subr.bf16.mxu0 0
        %594 = vmatpush1.bf16.msra.mxu0 %v500
        %595 = vmatprep.subr.bf16.mxu0 0
        %596 = vmatpush1.bf16.msra.mxu0 %v501
        %597 = vmatprep.mubr.bf16.mxu0 %v325
        %598 = vmatmul.mubr.bf16.gmra.mrb[0].mxu0 %v324
        %v599 = vpop.f32.mrb[0].mxu0
        %v600 = vadd.f32 %v290, %v599
        %v601 = vpop.f32.mrb[0].mxu0
        %v602 = vpop.f32.mrb[0].mxu0
        %v603 = vadd.f32 %v290, %v602
        %v604 = vpop.f32.mrb[0].mxu0
        %605 = vmatprep.mubr.bf16.mxu0 %v330
        %606 = vmatmul.mubr.bf16.gmra.mrb[0].mxu0 %v329
        %v607 = vpop.f32.mrb[0].mxu0
        %v608 = vadd.f32 %v290, %v607
        %v609 = vpop.f32.mrb[0].mxu0
        %v610 = vpop.f32.mrb[0].mxu0
        %v611 = vadd.f32 %v290, %v610
        %v612 = vpop.f32.mrb[0].mxu0
        %613 = vdwg.mxu0
        %614 = vmatprep.subr.bf16.mxu0 0
        %615 = vmatpush1.bf16.msra.mxu0 %v502
        %616 = vmatprep.subr.bf16.mxu0 0
        %617 = vmatpush1.bf16.msra.mxu0 %v503
        %618 = vmatprep.subr.bf16.mxu0 0
        %619 = vmatpush1.bf16.msra.mxu0 %v504
        %620 = vmatprep.subr.bf16.mxu0 0
        %621 = vmatpush1.bf16.msra.mxu0 %v505
        %622 = vmatprep.subr.bf16.mxu0 0
        %623 = vmatpush1.bf16.msra.mxu0 %v506
        %624 = vmatprep.subr.bf16.mxu0 0
        %625 = vmatpush1.bf16.msra.mxu0 %v507
        %626 = vmatprep.subr.bf16.mxu0 0
        %627 = vmatpush1.bf16.msra.mxu0 %v508
        %628 = vmatprep.subr.bf16.mxu0 0
        %629 = vmatpush1.bf16.msra.mxu0 %v509
        %630 = vmatprep.subr.bf16.mxu0 0
        %631 = vmatpush1.bf16.msra.mxu0 %v510
        %632 = vmatprep.subr.bf16.mxu0 0
        %633 = vmatpush1.bf16.msra.mxu0 %v511
        %634 = vmatprep.subr.bf16.mxu0 0
        %635 = vmatpush1.bf16.msra.mxu0 %v512
        %636 = vmatprep.subr.bf16.mxu0 0
        %637 = vmatpush1.bf16.msra.mxu0 %v513
        %638 = vmatprep.subr.bf16.mxu0 0
        %639 = vmatpush1.bf16.msra.mxu0 %v514
        %640 = vmatprep.subr.bf16.mxu0 0
        %641 = vmatpush1.bf16.msra.mxu0 %v515
        %642 = vmatprep.subr.bf16.mxu0 0
        %643 = vmatpush1.bf16.msra.mxu0 %v516
        %644 = vmatprep.subr.bf16.mxu0 0
        %645 = vmatpush1.bf16.msra.mxu0 %v517
        %646 = vmatprep.mubr.bf16.mxu0 %v327
        %647 = vmatmul.mubr.bf16.gmra.mrb[0].mxu0 %v326
        %v648 = vpop.f32.mrb[0].mxu0
        %v649 = vadd.f32 %v600, %v648
        %v650 = vpop.f32.mrb[0].mxu0
        %v651 = vpop.f32.mrb[0].mxu0
        %v652 = vadd.f32 %v603, %v651
        %v653 = vpop.f32.mrb[0].mxu0
        %654 = vmatprep.mubr.bf16.mxu0 %v332
        %655 = vmatmul.mubr.bf16.gmra.mrb[0].mxu0 %v331
        %v656 = vpop.f32.mrb[0].mxu0
        %v657 = vadd.f32 %v608, %v656
        %v658 = vpop.f32.mrb[0].mxu0
        %v659 = vpop.f32.mrb[0].mxu0
        %v660 = vadd.f32 %v611, %v659
        %v661 = vpop.f32.mrb[0].mxu0
        %662 = vdwg.mxu0
        %663 = vmatprep.subr.bf16.mxu0 0
        %664 = vmatpush1.bf16.msra.mxu0 %v518
        %665 = vmatprep.subr.bf16.mxu0 0
        %666 = vmatpush1.bf16.msra.mxu0 %v519
        %667 = vmatprep.subr.bf16.mxu0 0
        %668 = vmatpush1.bf16.msra.mxu0 %v520
        %669 = vmatprep.subr.bf16.mxu0 0
        %670 = vmatpush1.bf16.msra.mxu0 %v521
        %671 = vmatprep.subr.bf16.mxu0 0
        %672 = vmatpush1.bf16.msra.mxu0 0
        %673 = vmatprep.subr.bf16.mxu0 0
        %674 = vmatpush1.bf16.msra.mxu0 0
        %675 = vmatprep.subr.bf16.mxu0 0
        %676 = vmatpush1.bf16.msra.mxu0 0
        %677 = vmatprep.subr.bf16.mxu0 0
        %678 = vmatpush1.bf16.msra.mxu0 0
        %679 = vmatprep.subr.bf16.mxu0 0
        %680 = vmatpush1.bf16.msra.mxu0 0
        %681 = vmatprep.subr.bf16.mxu0 0
        %682 = vmatpush1.bf16.msra.mxu0 0
        %683 = vmatprep.subr.bf16.mxu0 0
        %684 = vmatpush1.bf16.msra.mxu0 0
        %685 = vmatprep.subr.bf16.mxu0 0
        %686 = vmatpush1.bf16.msra.mxu0 0
        %687 = vmatprep.subr.bf16.mxu0 0
        %688 = vmatpush1.bf16.msra.mxu0 0
        %689 = vmatprep.subr.bf16.mxu0 0
        %690 = vmatpush1.bf16.msra.mxu0 0
        %691 = vmatprep.subr.bf16.mxu0 0
        %692 = vmatpush1.bf16.msra.mxu0 0
        %693 = vmatprep.subr.bf16.mxu0 0
        %694 = vmatpush1.bf16.msra.mxu0 0
        %695 = vmatprep.mubr.bf16.mxu0 0
        %696 = vmatmul.mubr.bf16.gmra.mrb[0].mxu0 %v560
        %v697 = vpop.f32.mrb[0].mxu0
        %v698 = vadd.f32 %v649, %v697
        %v699 = vpop.f32.mrb[0].mxu0
        %v700 = vpop.f32.mrb[0].mxu0
        %v701 = vadd.f32 %v652, %v700
        %v702 = vpop.f32.mrb[0].mxu0
        %703 = vmatprep.mubr.bf16.mxu0 0
        %704 = vmatmul.mubr.bf16.gmra.mrb[0].mxu0 %v563
        %v705 = vpop.f32.mrb[0].mxu0
        %v706 = vadd.f32 %v657, %v705
        %v707 = vpop.f32.mrb[0].mxu0
        %v708 = vpop.f32.mrb[0].mxu0
        %v709 = vadd.f32 %v660, %v708
        %v710 = vpop.f32.mrb[0].mxu0
        %711 = vdwg.mxu0
        %v712 = vmax.f32 %v698, 0.0
        %v713 = vmax.f32 %v701, 0.0
        %v714 = vmax.f32 %v706, 0.0
        %v715 = vmax.f32 %v709, 0.0
        %v716 = vpack.c.bf16 %v713, %v712
        %v717 = vpack.c.bf16 %v715, %v714
        %v720 = vunpack.c.l.b16 %v716
        %v721 = vunpack.c.h.b16 %v716
        %v722 = vunpack.c.l.b16 %v717
        %v723 = vunpack.c.h.b16 %v717
        %v724 = vpack.c.b16 %v720, %v720
        %v725 = vpack.c.b16 %v721, %v721
        %v726 = vpack.c.b16 %v722, %v722
        %v727 = vpack.c.b16 %v723, %v723
        %732 = vst [vmem:[%s177] sm:$0xf] %v724
        %733 = vst [vmem:[%s177 + $0x4] sm:$0xf] %v725
        %734 = vst [vmem:[%s177 + $0x8] sm:$0xf] %v726
        %735 = vst [vmem:[%s177 + $0xc] sm:$0xf] %v727
        %s736 = sand.u32 %s90, 1
        %s737 = sand.u32 %s90, 1
        %s738 = smul.addr %s737, 16
        %s739 = scalar_lea.vmem [#allocation2], %s738
        // Predicated region
        $region33: #{encoder_cnn_forward.7} parent=31 // pred_check
          %p740 = pneg %p100
        $region34: #{encoder_cnn_forward.7} parent=31 // pred_check_branch
          %742 = sbr.rel (%p740) target = $region36
        $region35: #{encoder_cnn_forward.7} parent=31 // pred_region
          %s743 = smul.u32 4, %s14
          %s744 = ssub.s32 5, %s743
          %p745 = scmp.lt.s32.totalorder %s744, 4
          %s746 = scalar_select %p745, %s744, 4
          %s747 = smul.u32 64, %s746
          %p748 = scmp.ne.s32.totalorder 0, %s747
          %s749 = smul.addr %s743, 4
          %s750 = scalar_lea.vmem %s3, %s749
          // Predicated region
          $region37: #{encoder_cnn_forward.7} parent=35 // pred_check
            %p751 = pneg %p748
          $region38: #{encoder_cnn_forward.7} parent=35 // pred_check_branch
            %753 = sbr.rel (%p751) target = $region40
          $region39: #{encoder_cnn_forward.7} parent=35 // pred_region
            // Predicated region
            $region41: #{encoder_cnn_forward.7} parent=39 // pred_check
              _
            $region42: #{encoder_cnn_forward.7} parent=39 // pred_check_branch
              %755 = sbr.rel target = $region44
            $region43: #{encoder_cnn_forward.7} parent=39 // pred_region
              // Predicated region
              $region63: #{encoder_cnn_forward.7} parent=43 // pred_check
                _
              $region64: #{encoder_cnn_forward.7} parent=43 // pred_check_branch
                %810 = sbr.rel (0) target = $region66
              $region65: #{encoder_cnn_forward.7} parent=43 // pred_region
                %s812 = sshrl.u32 %s746, 2
                // While loop
                $region67: #{encoder_cnn_forward.7} parent=65 // loop_pre_header
                  _
                $region68: #{encoder_cnn_forward.7} parent=65 // loop_header
                  %s814 = sphi 0, %s816
                  %p815 = scmp.ge.s32.totalorder %s814, %s812
                  %s819 = sphi 0, %s832
                  %s820 = sphi %s739, %s835
                  %s821 = sphi %s750, %s836
                $region69: #{encoder_cnn_forward.7} parent=65 // loop_header_branch
                  %818 = sbr.rel (%p815) target = $region73
                $region70: #{encoder_cnn_forward.7} parent=65 // loop_body
                  %v822 = vld [vmem:[%s820] sm:$0xf]
                  %823 = vst [vmem:[%s821] sm:$0xf] %v822
                  %v824 = vld [vmem:[%s820 + $0x4] sm:$0xf]
                  %825 = vst [vmem:[%s821 + $0x4] sm:$0xf] %v824
                  %v826 = vld [vmem:[%s820 + $0x8] sm:$0xf]
                  %827 = vst [vmem:[%s821 + $0x8] sm:$0xf] %v826
                  %v828 = vld [vmem:[%s820 + $0xc] sm:$0xf]
                  %829 = vst [vmem:[%s821 + $0xc] sm:$0xf] %v828
                  %s830 = sadd.s32 1, %s819
                  %p831 = scmp.ge.s32.totalorder %s830, %s812
                  %s832 = scalar_select %p831, 0, %s830
                  %s833 = smul.u32 %s832, 16
                  %s834 = smul.u32 %s832, 16
                  %s835 = scalar_lea.vmem %s739, %s833 [#allocation2]
                  %s836 = scalar_lea.vmem %s750, %s834
                $region71: #{encoder_cnn_forward.7} parent=65 // loop_footer
                  %s816 = sadd.s32 %s814, 1
                $region72: #{encoder_cnn_forward.7} parent=65 // loop_footer_branch
                  %813 = sbr.rel target = $region68
                $region73: #{encoder_cnn_forward.7} parent=65 // loop_exit
                  _
                %s837 = sshrl.u32 %s746, 2
                %s838 = sand.u32 %s746, 3
                %s839 = smul.u32 %s837, 4
                %s840 = smul.u32 4, %s839
                %s841 = scalar_lea.vmem %s739, %s840 [#allocation2]
                %s842 = smul.u32 4, %s839
                %s843 = scalar_lea.vmem %s750, %s842
                // While loop
                $region74: #{encoder_cnn_forward.7} parent=65 // loop_pre_header
                  _
                $region75: #{encoder_cnn_forward.7} parent=65 // loop_header
                  %s845 = sphi 0, %s847
                  %p846 = scmp.ge.s32.totalorder %s845, %s838
                  %s850 = sphi 0, %s857
                  %s851 = sphi %s841, %s860
                  %s852 = sphi %s843, %s861
                $region76: #{encoder_cnn_forward.7} parent=65 // loop_header_branch
                  %849 = sbr.rel (%p846) target = $region80
                $region77: #{encoder_cnn_forward.7} parent=65 // loop_body
                  %v853 = vld [vmem:[%s851] sm:$0xf]
                  %854 = vst [vmem:[%s852] sm:$0xf] %v853
                  %s855 = sadd.s32 1, %s850
                  %p856 = scmp.ge.s32.totalorder %s855, %s838
                  %s857 = scalar_select %p856, 0, %s855
                  %s858 = smul.u32 %s857, 4
                  %s859 = smul.u32 %s857, 4
                  %s860 = scalar_lea.vmem %s841, %s858 [#allocation2]
                  %s861 = scalar_lea.vmem %s843, %s859
                $region78: #{encoder_cnn_forward.7} parent=65 // loop_footer
                  %s847 = sadd.s32 %s845, 1
                $region79: #{encoder_cnn_forward.7} parent=65 // loop_footer_branch
                  %844 = sbr.rel target = $region75
                $region80: #{encoder_cnn_forward.7} parent=65 // loop_exit
                  _
              $region66: #{encoder_cnn_forward.7} parent=43 // pred_fallthru
                _
            $region44: #{encoder_cnn_forward.7} parent=39 // pred_fallthru
              _
            // Predicated region
            $region45: #{encoder_cnn_forward.7} parent=39 // pred_check
              _
            $region46: #{encoder_cnn_forward.7} parent=39 // pred_check_branch
              %757 = sbr.rel (0) target = $region48
            $region47: #{encoder_cnn_forward.7} parent=39 // pred_region
              %s759 = sshrl.u32 %s746, 2
              // While loop
              $region49: #{encoder_cnn_forward.7} parent=47 // loop_pre_header
                _
              $region50: #{encoder_cnn_forward.7} parent=47 // loop_header
                %s761 = sphi 0, %s763
                %p762 = scmp.ge.s32.totalorder %s761, %s759
                %s766 = sphi 0, %s779
                %s767 = sphi %s739, %s782
                %s768 = sphi %s750, %s783
              $region51: #{encoder_cnn_forward.7} parent=47 // loop_header_branch
                %765 = sbr.rel (%p762) target = $region55
              $region52: #{encoder_cnn_forward.7} parent=47 // loop_body
                %v769 = vld [vmem:[%s767] sm:$0xf]
                %770 = vst [vmem:[%s768] sm:$0xf] %v769
                %v771 = vld [vmem:[%s767 + $0x4] sm:$0xf]
                %772 = vst [vmem:[%s768 + $0x4] sm:$0xf] %v771
                %v773 = vld [vmem:[%s767 + $0x8] sm:$0xf]
                %774 = vst [vmem:[%s768 + $0x8] sm:$0xf] %v773
                %v775 = vld [vmem:[%s767 + $0xc] sm:$0xf]
                %776 = vst [vmem:[%s768 + $0xc] sm:$0xf] %v775
                %s777 = sadd.s32 1, %s766
                %p778 = scmp.ge.s32.totalorder %s777, %s759
                %s779 = scalar_select %p778, 0, %s777
                %s780 = smul.u32 %s779, 16
                %s781 = smul.u32 %s779, 16
                %s782 = scalar_lea.vmem %s739, %s780 [#allocation2]
                %s783 = scalar_lea.vmem %s750, %s781
              $region53: #{encoder_cnn_forward.7} parent=47 // loop_footer
                %s763 = sadd.s32 %s761, 1
              $region54: #{encoder_cnn_forward.7} parent=47 // loop_footer_branch
                %760 = sbr.rel target = $region50
              $region55: #{encoder_cnn_forward.7} parent=47 // loop_exit
                _
              %s784 = sshrl.u32 %s746, 2
              %s785 = sand.u32 %s746, 3
              %s786 = smul.u32 %s784, 4
              %s787 = smul.u32 4, %s786
              %s788 = scalar_lea.vmem %s739, %s787 [#allocation2]
              %s789 = smul.u32 4, %s786
              %s790 = scalar_lea.vmem %s750, %s789
              // While loop
              $region56: #{encoder_cnn_forward.7} parent=47 // loop_pre_header
                _
              $region57: #{encoder_cnn_forward.7} parent=47 // loop_header
                %s792 = sphi 0, %s794
                %p793 = scmp.ge.s32.totalorder %s792, %s785
                %s797 = sphi 0, %s804
                %s798 = sphi %s788, %s807
                %s799 = sphi %s790, %s808
              $region58: #{encoder_cnn_forward.7} parent=47 // loop_header_branch
                %796 = sbr.rel (%p793) target = $region62
              $region59: #{encoder_cnn_forward.7} parent=47 // loop_body
                %v800 = vld [vmem:[%s798] sm:$0xf]
                %801 = vst [vmem:[%s799] sm:$0xf] %v800
                %s802 = sadd.s32 1, %s797
                %p803 = scmp.ge.s32.totalorder %s802, %s785
                %s804 = scalar_select %p803, 0, %s802
                %s805 = smul.u32 %s804, 4
                %s806 = smul.u32 %s804, 4
                %s807 = scalar_lea.vmem %s788, %s805 [#allocation2]
                %s808 = scalar_lea.vmem %s790, %s806
              $region60: #{encoder_cnn_forward.7} parent=47 // loop_footer
                %s794 = sadd.s32 %s792, 1
              $region61: #{encoder_cnn_forward.7} parent=47 // loop_footer_branch
                %791 = sbr.rel target = $region57
              $region62: #{encoder_cnn_forward.7} parent=47 // loop_exit
                _
            $region48: #{encoder_cnn_forward.7} parent=39 // pred_fallthru
              _
          $region40: #{encoder_cnn_forward.7} parent=35 // pred_fallthru
            _
          %862 = vnop
        $region36: #{encoder_cnn_forward.7} parent=31 // pred_fallthru
          _
      $region32: #{encoder_cnn_forward.7} parent=5 // pred_fallthru
        _
      %p863 = scmp.le.s32.totalorder 2, %s9
      // Predicated region
      $region81: #{encoder_cnn_forward.7} parent=5 // pred_check
        %p864 = pneg %p863
      $region82: #{encoder_cnn_forward.7} parent=5 // pred_check_branch
        %866 = sbr.rel (%p864) target = $region84
      $region83: #{encoder_cnn_forward.7} parent=5 // pred_region
        %s867 = ssub.s32 %s9, 2
        // Predicated region
        $region85: #{encoder_cnn_forward.7} parent=83 // pred_check
          %p868 = pneg %p106
        $region86: #{encoder_cnn_forward.7} parent=83 // pred_check_branch
          %870 = sbr.rel (%p868) target = $region88
        $region87: #{encoder_cnn_forward.7} parent=83 // pred_region
          %s871 = sand.u32 %s91, 1
          %s872 = sand.u32 %s91, 1
          %s873 = smul.addr %s872, 16
          %s874 = scalar_lea.vmem [#allocation2], %s873
        $region88: #{encoder_cnn_forward.7} parent=83 // pred_fallthru
          _
      $region84: #{encoder_cnn_forward.7} parent=5 // pred_fallthru
        _
    $region6: #{encoder_cnn_forward.7} parent=1 // loop_footer
      %s13 = sadd.s32 1, %s9
    $region7: #{encoder_cnn_forward.7} parent=1 // loop_footer_branch
      %8 = sbr.rel target = $region3
    $region8: #{encoder_cnn_forward.7} parent=1 // loop_exit
      _

// kernel: encoder_cnn_forward.9
$region0: #{encoder_cnn_forward.9}
  #allocation0 [shape = 'u32[]', space=smem, size = 0x4, offset = 0x4, fixed_abs, tag = 'smem constant byte address 0x4 - core index']
  #allocation1 [shape = 'u32[144,128]{1,0:T(1,128)}', space=vmem, size = 0x12000, scoped, tag = 'internal scratch']
  %s0 = inlined_call_operand.vmem [shape: bf16[4,256], index: 0, kind: input, shape index: {}]
  %s1 = inlined_call_operand.vmem [shape: bf16[256,32], index: 1, kind: input, shape index: {}]
  %s2 = inlined_call_operand.vmem [shape: f32[1,32], index: 2, kind: input, shape index: {}]
  %s3 = inlined_call_operand.vmem [shape: bf16[32,32], index: 3, kind: input, shape index: {}]
  %s4 = inlined_call_operand.vmem [shape: f32[1,32], index: 4, kind: input, shape index: {}]
  %s5 = inlined_call_operand.vmem [shape: bf16[32,16], index: 5, kind: input, shape index: {}]
  %s6 = inlined_call_operand.vmem [shape: f32[1,16], index: 6, kind: input, shape index: {}]
  %s7 = inlined_call_operand.hbm [shape: f32[4,16], index: 7, kind: output, shape index: {}]
  %s8 = sld [smem:[#allocation0]]
  $region38: #{encoder_cnn_forward.9} parent=0
    _
  %s10 = ssub.s32 1, %s8
  %s11 = scalar_select 0, %s10, %s8
  $region1: #{encoder_cnn_forward.9} parent=0
    #allocation2 [shape = 'u8[2048]{0}', space=vmem, size = 0x800, scoped, tag = 'output window, operand 0, single buffered']
    #allocation3 [shape = 's32[1]{0}', space=sflag, size = 0x4, scoped, tag = 'scoped memory for encoder_cnn_forward.9']
    %12 = vsyncpa [#allocation3], 0
    // Predicated region
    $region2: #{encoder_cnn_forward.9} parent=1 // pred_check
      _
    $region3: #{encoder_cnn_forward.9} parent=1 // pred_check_branch
      %14 = sbr.rel (0) target = $region5
    $region4: #{encoder_cnn_forward.9} parent=1 // pred_region
      _
    $region5: #{encoder_cnn_forward.9} parent=1 // pred_fallthru
      _
    // Predicated region
    $region6: #{encoder_cnn_forward.9} parent=1 // pred_check
      _
    $region7: #{encoder_cnn_forward.9} parent=1 // pred_check_branch
      %16 = sbr.rel (0) target = $region9
    $region8: #{encoder_cnn_forward.9} parent=1 // pred_region
      _
    $region9: #{encoder_cnn_forward.9} parent=1 // pred_fallthru
      _
    // Predicated region
    $region10: #{encoder_cnn_forward.9} parent=1 // pred_check
      _
    $region11: #{encoder_cnn_forward.9} parent=1 // pred_check_branch
      %18 = sbr.rel (0) target = $region13
    $region12: #{encoder_cnn_forward.9} parent=1 // pred_region
      _
    $region13: #{encoder_cnn_forward.9} parent=1 // pred_fallthru
      _
    // Predicated region
    $region14: #{encoder_cnn_forward.9} parent=1 // pred_check
      _
    $region15: #{encoder_cnn_forward.9} parent=1 // pred_check_branch
      %20 = sbr.rel (0) target = $region17
    $region16: #{encoder_cnn_forward.9} parent=1 // pred_region
      _
    $region17: #{encoder_cnn_forward.9} parent=1 // pred_fallthru
      _
    // Predicated region
    $region18: #{encoder_cnn_forward.9} parent=1 // pred_check
      _
    $region19: #{encoder_cnn_forward.9} parent=1 // pred_check_branch
      %22 = sbr.rel (0) target = $region21
    $region20: #{encoder_cnn_forward.9} parent=1 // pred_region
      _
    $region21: #{encoder_cnn_forward.9} parent=1 // pred_fallthru
      _
    // Predicated region
    $region22: #{encoder_cnn_forward.9} parent=1 // pred_check
      _
    $region23: #{encoder_cnn_forward.9} parent=1 // pred_check_branch
      %24 = sbr.rel (0) target = $region25
    $region24: #{encoder_cnn_forward.9} parent=1 // pred_region
      _
    $region25: #{encoder_cnn_forward.9} parent=1 // pred_fallthru
      _
    // Predicated region
    $region26: #{encoder_cnn_forward.9} parent=1 // pred_check
      _
    $region27: #{encoder_cnn_forward.9} parent=1 // pred_check_branch
      %26 = sbr.rel (0) target = $region29
    $region28: #{encoder_cnn_forward.9} parent=1 // pred_region
      _
    $region29: #{encoder_cnn_forward.9} parent=1 // pred_fallthru
      _
    %v28 = vld [vmem:[%s0] sm:$0xf]
    %v29 = vld [vmem:[%s1] sm:$0xf]
    %v30 = vld [vmem:[%s1 + $0x4] sm:$0xf]
    %v31 = vld [vmem:[%s1 + $0x8] sm:$0xf]
    %v32 = vld [vmem:[%s1 + $0xc] sm:$0xf]
    %v33 = vld [vmem:[%s1 + $0x10] sm:$0xf]
    %v34 = vld [vmem:[%s1 + $0x14] sm:$0xf]
    %v35 = vld [vmem:[%s1 + $0x18] sm:$0xf]
    %v36 = vld [vmem:[%s1 + $0x1c] sm:$0xf]
    %v37 = vld [vmem:[%s1 + $0x20] sm:$0xf]
    %v38 = vld [vmem:[%s1 + $0x24] sm:$0xf]
    %v39 = vld [vmem:[%s1 + $0x28] sm:$0xf]
    %v40 = vld [vmem:[%s1 + $0x2c] sm:$0xf]
    %v41 = vld [vmem:[%s1 + $0x30] sm:$0xf]
    %v42 = vld [vmem:[%s1 + $0x34] sm:$0xf]
    %v43 = vld [vmem:[%s1 + $0x38] sm:$0xf]
    %v44 = vld [vmem:[%s1 + $0x3c] sm:$0xf]
    %v45 = vld [vmem:[%s1 + $0x40] sm:$0xf]
    %v46 = vld [vmem:[%s1 + $0x44] sm:$0xf]
    %v47 = vld [vmem:[%s1 + $0x48] sm:$0xf]
    %v48 = vld [vmem:[%s1 + $0x4c] sm:$0xf]
    %v49 = vld [vmem:[%s1 + $0x50] sm:$0xf]
    %v50 = vld [vmem:[%s1 + $0x54] sm:$0xf]
    %v51 = vld [vmem:[%s1 + $0x58] sm:$0xf]
    %v52 = vld [vmem:[%s1 + $0x5c] sm:$0xf]
    %v53 = vld [vmem:[%s1 + $0x60] sm:$0xf]
    %v54 = vld [vmem:[%s1 + $0x64] sm:$0xf]
    %v55 = vld [vmem:[%s1 + $0x68] sm:$0xf]
    %v56 = vld [vmem:[%s1 + $0x6c] sm:$0xf]
    %v57 = vld [vmem:[%s1 + $0x70] sm:$0xf]
    %v58 = vld [vmem:[%s1 + $0x74] sm:$0xf]
    %v59 = vld [vmem:[%s1 + $0x78] sm:$0xf]
    %v60 = vld [vmem:[%s1 + $0x7c] sm:$0xf]
    %v61 = vld [vmem:[%s2] sm:$0x1]
    %v63 = vlaneseq
    %v64 = vshrl.u32 %v63, 7
    %v65 = vsub.s32 0, %v64
    %v66 = vrot.slane %v61, %v65
    %v70 = vunpack.c.l.s4 1983009808
    %v71 = vunpack.c.0.s8 %v70
    %v72 = vlaneseq
    %v73 = vshrl.u32 %v72, 7
    %v74 = vsub.s32 %v71, %v73
    %v75 = vrot.slane %v28, %v74
    %v76 = vcombine.high %v75, %v75
    %v111 = vunpack.c.l.b16 %v29
    %v112 = vunpack.c.l.b16 %v30
    %v113 = vunpack.c.l.b16 %v31
    %v114 = vunpack.c.l.b16 %v32
    %v115 = vunpack.c.l.b16 %v33
    %v116 = vunpack.c.l.b16 %v34
    %v117 = vunpack.c.l.b16 %v35
    %v118 = vunpack.c.l.b16 %v36
    %v119 = vunpack.c.l.b16 %v37
    %v120 = vunpack.c.l.b16 %v38
    %v121 = vunpack.c.l.b16 %v39
    %v122 = vunpack.c.l.b16 %v40
    %v123 = vunpack.c.l.b16 %v41
    %v124 = vunpack.c.l.b16 %v42
    %v125 = vunpack.c.l.b16 %v43
    %v126 = vunpack.c.l.b16 %v44
    %v127 = vunpack.c.l.b16 %v45
    %v128 = vunpack.c.l.b16 %v46
    %v129 = vunpack.c.l.b16 %v47
    %v130 = vunpack.c.l.b16 %v48
    %v131 = vunpack.c.l.b16 %v49
    %v132 = vunpack.c.l.b16 %v50
    %v133 = vunpack.c.l.b16 %v51
    %v134 = vunpack.c.l.b16 %v52
    %v135 = vunpack.c.l.b16 %v53
    %v136 = vunpack.c.l.b16 %v54
    %v137 = vunpack.c.l.b16 %v55
    %v138 = vunpack.c.l.b16 %v56
    %v139 = vunpack.c.l.b16 %v57
    %v140 = vunpack.c.l.b16 %v58
    %v141 = vunpack.c.l.b16 %v59
    %v142 = vunpack.c.l.b16 %v60
    %v143 = vpack.c.b16 %v112, %v111
    %v144 = vpack.c.b16 %v114, %v113
    %v145 = vpack.c.b16 %v116, %v115
    %v146 = vpack.c.b16 %v118, %v117
    %v147 = vpack.c.b16 %v120, %v119
    %v148 = vpack.c.b16 %v122, %v121
    %v149 = vpack.c.b16 %v124, %v123
    %v150 = vpack.c.b16 %v126, %v125
    %v151 = vpack.c.b16 %v128, %v127
    %v152 = vpack.c.b16 %v130, %v129
    %v153 = vpack.c.b16 %v132, %v131
    %v154 = vpack.c.b16 %v134, %v133
    %v155 = vpack.c.b16 %v136, %v135
    %v156 = vpack.c.b16 %v138, %v137
    %v157 = vpack.c.b16 %v140, %v139
    %v158 = vpack.c.b16 %v142, %v141
    %175 = vmatprep.subr.bf16.mxu0 0
    %176 = vmatpush1.bf16.msra.mxu0 %v143
    %177 = vmatprep.subr.bf16.mxu0 0
    %178 = vmatpush1.bf16.msra.mxu0 %v144
    %179 = vmatprep.subr.bf16.mxu0 0
    %180 = vmatpush1.bf16.msra.mxu0 %v145
    %181 = vmatprep.subr.bf16.mxu0 0
    %182 = vmatpush1.bf16.msra.mxu0 %v146
    %183 = vmatprep.subr.bf16.mxu0 0
    %184 = vmatpush1.bf16.msra.mxu0 %v147
    %185 = vmatprep.subr.bf16.mxu0 0
    %186 = vmatpush1.bf16.msra.mxu0 %v148
    %187 = vmatprep.subr.bf16.mxu0 0
    %188 = vmatpush1.bf16.msra.mxu0 %v149
    %189 = vmatprep.subr.bf16.mxu0 0
    %190 = vmatpush1.bf16.msra.mxu0 %v150
    %191 = vmatprep.subr.bf16.mxu0 0
    %192 = vmatpush1.bf16.msra.mxu0 %v151
    %193 = vmatprep.subr.bf16.mxu0 0
    %194 = vmatpush1.bf16.msra.mxu0 %v152
    %195 = vmatprep.subr.bf16.mxu0 0
    %196 = vmatpush1.bf16.msra.mxu0 %v153
    %197 = vmatprep.subr.bf16.mxu0 0
    %198 = vmatpush1.bf16.msra.mxu0 %v154
    %199 = vmatprep.subr.bf16.mxu0 0
    %200 = vmatpush1.bf16.msra.mxu0 %v155
    %201 = vmatprep.subr.bf16.mxu0 0
    %202 = vmatpush1.bf16.msra.mxu0 %v156
    %203 = vmatprep.subr.bf16.mxu0 0
    %204 = vmatpush1.bf16.msra.mxu0 %v157
    %205 = vmatprep.subr.bf16.mxu0 0
    %206 = vmatpush1.bf16.msra.mxu0 %v158
    %207 = vmatprep.mubr.bf16.mxu0 %v76
    %208 = vmatmul.mubr.bf16.gmra.mrb[0].mxu0 %v75
    %v209 = vpop.f32.mrb[0].mxu0
    %v210 = vadd.f32 %v66, %v209
    %v211 = vpop.f32.mrb[0].mxu0
    %v212 = vpop.f32.mrb[0].mxu0
    %v213 = vpop.f32.mrb[0].mxu0
    %214 = vdwg.mxu0
    %v215 = vmax.f32 %v210, 0.0
    %v216 = vpack.c.bf16 %v215, %v215
    %v217 = vld [vmem:[%s3] sm:$0xf]
    %v218 = vld [vmem:[%s3 + $0x4] sm:$0xf]
    %v219 = vld [vmem:[%s3 + $0x8] sm:$0xf]
    %v220 = vld [vmem:[%s3 + $0xc] sm:$0xf]
    %v221 = vld [vmem:[%s4] sm:$0x1]
    %v223 = vlaneseq
    %v224 = vshrl.u32 %v223, 7
    %v225 = vsub.s32 0, %v224
    %v226 = vrot.slane %v221, %v225
    %v232 = vunpack.c.l.b16 %v217
    %v233 = vunpack.c.l.b16 %v218
    %v234 = vunpack.c.l.b16 %v219
    %v235 = vunpack.c.l.b16 %v220
    %v236 = vpack.c.b16 %v233, %v232
    %v237 = vpack.c.b16 %v235, %v234
    %vm240 = vcmask 261120
    %v242 = vsel %vm240, %v216, 0
    %244 = vmatprep.subr.bf16.mxu0 0
    %245 = vmatpush1.bf16.msra.mxu0 %v236
    %246 = vmatprep.subr.bf16.mxu0 0
    %247 = vmatpush1.bf16.msra.mxu0 %v237
    %248 = vmatprep.subr.bf16.mxu0 0
    %249 = vmatpush1.bf16.msra.mxu0 0
    %250 = vmatprep.subr.bf16.mxu0 0
    %251 = vmatpush1.bf16.msra.mxu0 0
    %252 = vmatprep.subr.bf16.mxu0 0
    %253 = vmatpush1.bf16.msra.mxu0 0
    %254 = vmatprep.subr.bf16.mxu0 0
    %255 = vmatpush1.bf16.msra.mxu0 0
    %256 = vmatprep.subr.bf16.mxu0 0
    %257 = vmatpush1.bf16.msra.mxu0 0
    %258 = vmatprep.subr.bf16.mxu0 0
    %259 = vmatpush1.bf16.msra.mxu0 0
    %260 = vmatprep.subr.bf16.mxu0 0
    %261 = vmatpush1.bf16.msra.mxu0 0
    %262 = vmatprep.subr.bf16.mxu0 0
    %263 = vmatpush1.bf16.msra.mxu0 0
    %264 = vmatprep.subr.bf16.mxu0 0
    %265 = vmatpush1.bf16.msra.mxu0 0
    %266 = vmatprep.subr.bf16.mxu0 0
    %267 = vmatpush1.bf16.msra.mxu0 0
    %268 = vmatprep.subr.bf16.mxu0 0
    %269 = vmatpush1.bf16.msra.mxu0 0
    %270 = vmatprep.subr.bf16.mxu0 0
    %271 = vmatpush1.bf16.msra.mxu0 0
    %272 = vmatprep.subr.bf16.mxu0 0
    %273 = vmatpush1.bf16.msra.mxu0 0
    %274 = vmatprep.subr.bf16.mxu0 0
    %275 = vmatpush1.bf16.msra.mxu0 0
    %276 = vmatprep.mubr.bf16.mxu0 0
    %277 = vmatmul.mubr.bf16.gmra.mrb[0].mxu0 %v242
    %v278 = vpop.f32.mrb[0].mxu0
    %v279 = vadd.f32 %v226, %v278
    %v280 = vpop.f32.mrb[0].mxu0
    %v281 = vpop.f32.mrb[0].mxu0
    %v282 = vpop.f32.mrb[0].mxu0
    %283 = vdwg.mxu0
    %v284 = vmax.f32 %v279, 0.0
    %v285 = vpack.c.bf16 %v284, %v284
    %v286 = vld [vmem:[%s5] sm:$0xf]
    %v287 = vld [vmem:[%s5 + $0x4] sm:$0xf]
    %v288 = vld [vmem:[%s5 + $0x8] sm:$0xf]
    %v289 = vld [vmem:[%s5 + $0xc] sm:$0xf]
    %v290 = vld [vmem:[%s6] sm:$0x1]
    %v292 = vlaneseq
    %v293 = vshrl.u32 %v292, 7
    %v294 = vsub.s32 0, %v293
    %v295 = vrot.slane %v290, %v294
    %v301 = vunpack.c.l.b16 %v286
    %v302 = vunpack.c.l.b16 %v287
    %v303 = vunpack.c.l.b16 %v288
    %v304 = vunpack.c.l.b16 %v289
    %v305 = vpack.c.b16 %v302, %v301
    %v306 = vpack.c.b16 %v304, %v303
    %v310 = vsel %vm240, %v285, 0
    %312 = vmatprep.subr.bf16.mxu0 0
    %313 = vmatpush1.bf16.msra.mxu0 %v305
    %314 = vmatprep.subr.bf16.mxu0 0
    %315 = vmatpush1.bf16.msra.mxu0 %v306
    %316 = vmatprep.subr.bf16.mxu0 0
    %317 = vmatpush1.bf16.msra.mxu0 0
    %318 = vmatprep.subr.bf16.mxu0 0
    %319 = vmatpush1.bf16.msra.mxu0 0
    %320 = vmatprep.subr.bf16.mxu0 0
    %321 = vmatpush1.bf16.msra.mxu0 0
    %322 = vmatprep.subr.bf16.mxu0 0
    %323 = vmatpush1.bf16.msra.mxu0 0
    %324 = vmatprep.subr.bf16.mxu0 0
    %325 = vmatpush1.bf16.msra.mxu0 0
    %326 = vmatprep.subr.bf16.mxu0 0
    %327 = vmatpush1.bf16.msra.mxu0 0
    %328 = vmatprep.subr.bf16.mxu0 0
    %329 = vmatpush1.bf16.msra.mxu0 0
    %330 = vmatprep.subr.bf16.mxu0 0
    %331 = vmatpush1.bf16.msra.mxu0 0
    %332 = vmatprep.subr.bf16.mxu0 0
    %333 = vmatpush1.bf16.msra.mxu0 0
    %334 = vmatprep.subr.bf16.mxu0 0
    %335 = vmatpush1.bf16.msra.mxu0 0
    %336 = vmatprep.subr.bf16.mxu0 0
    %337 = vmatpush1.bf16.msra.mxu0 0
    %338 = vmatprep.subr.bf16.mxu0 0
    %339 = vmatpush1.bf16.msra.mxu0 0
    %340 = vmatprep.subr.bf16.mxu0 0
    %341 = vmatpush1.bf16.msra.mxu0 0
    %342 = vmatprep.subr.bf16.mxu0 0
    %343 = vmatpush1.bf16.msra.mxu0 0
    %344 = vmatprep.mubr.bf16.mxu0 0
    %345 = vmatmul.mubr.bf16.gmra.mrb[0].mxu0 %v310
    %v346 = vpop.f32.mrb[0].mxu0
    %v347 = vadd.f32 %v295, %v346
    %v348 = vpop.f32.mrb[0].mxu0
    %v349 = vpop.f32.mrb[0].mxu0
    %v350 = vpop.f32.mrb[0].mxu0
    %351 = vdwg.mxu0
    %vm352 = vcmask 125952
    %353 = vst.msk [vmem:[#allocation2] sm:$0xf] %vm352, %v347
    // Predicated region
    $region30: #{encoder_cnn_forward.9} parent=1 // pred_check
      _
    $region31: #{encoder_cnn_forward.9} parent=1 // pred_check_branch
      %355 = sbr.rel (0) target = $region33
    $region32: #{encoder_cnn_forward.9} parent=1 // pred_region
      %s357 = ssub.s32 64, 64
      %358 = vsyncadd [#allocation3], %s357
      %s360 = sshll.u32 [#allocation2], 4
      %s361 = int_to_ptr.vmem [resolvable:$true] %s360
      %363 = dma.vmem_to_hbm [thread:$0]  %s361, 64, %s7, [#allocation3]
    $region33: #{encoder_cnn_forward.9} parent=1 // pred_fallthru
      _
    // Predicated region
    $region34: #{encoder_cnn_forward.9} parent=1 // pred_check
      _
    $region35: #{encoder_cnn_forward.9} parent=1 // pred_check_branch
      %365 = sbr.rel (0) target = $region37
    $region36: #{encoder_cnn_forward.9} parent=1 // pred_region
      %366 = dma.done [#allocation3], 64
    $region37: #{encoder_cnn_forward.9} parent=1 // pred_fallthru
      _
    %367 = vsyncpa [#allocation3], 1

// kernel: encoder_cnn_forward.8
$region0: #{encoder_cnn_forward.8}
  #allocation0 [shape = 'u32[]', space=smem, size = 0x4, offset = 0x4, fixed_abs, tag = 'smem constant byte address 0x4 - core index']
  #allocation1 [shape = 'u32[144,128]{1,0:T(1,128)}', space=vmem, size = 0x12000, scoped, tag = 'internal scratch']
  %s0 = inlined_call_operand.vmem [shape: bf16[4,1152], index: 0, kind: input, shape index: {}]
  %s1 = inlined_call_operand.vmem [shape: bf16[1152,256], index: 1, kind: input, shape index: {}]
  %s2 = inlined_call_operand.vmem [shape: f32[1,256], index: 2, kind: input, shape index: {}]
  %s3 = inlined_call_operand.vmem [shape: bf16[4,256], index: 3, kind: output, shape index: {}]
  %s4 = sld [smem:[#allocation0]]
  $region22: #{encoder_cnn_forward.8} parent=0
    _
  %s6 = ssub.s32 1, %s4
  %s7 = scalar_select 0, %s6, %s4
  // Predicated region
  $region2: #{encoder_cnn_forward.8} parent=0 // pred_check
    _
  $region3: #{encoder_cnn_forward.8} parent=0 // pred_check_branch
    %9 = sbr.rel (0) target = $region5
  $region4: #{encoder_cnn_forward.8} parent=0 // pred_region
    _
  $region5: #{encoder_cnn_forward.8} parent=0 // pred_fallthru
    _
  // Predicated region
  $region6: #{encoder_cnn_forward.8} parent=0 // pred_check
    _
  $region7: #{encoder_cnn_forward.8} parent=0 // pred_check_branch
    %11 = sbr.rel (0) target = $region9
  $region8: #{encoder_cnn_forward.8} parent=0 // pred_region
    _
  $region9: #{encoder_cnn_forward.8} parent=0 // pred_fallthru
    _
  // Predicated region
  $region10: #{encoder_cnn_forward.8} parent=0 // pred_check
    _
  $region11: #{encoder_cnn_forward.8} parent=0 // pred_check_branch
    %13 = sbr.rel (0) target = $region13
  $region12: #{encoder_cnn_forward.8} parent=0 // pred_region
    _
  $region13: #{encoder_cnn_forward.8} parent=0 // pred_fallthru
    _
  %v15 = vld [vmem:[%s0] sm:$0xff]
  %v16 = vld [vmem:[%s0 + $0x8] sm:$0xff]
  %v17 = vld [vmem:[%s0 + $0x10] sm:$0x3]
  %v18 = vld [vmem:[%s1] sm:$0xff]
  %v19 = vld [vmem:[%s1 + $0x8] sm:$0xff]
  %v20 = vld [vmem:[%s1 + $0x10] sm:$0xff]
  %v21 = vld [vmem:[%s1 + $0x18] sm:$0xff]
  %v22 = vld [vmem:[%s1 + $0x20] sm:$0xff]
  %v23 = vld [vmem:[%s1 + $0x28] sm:$0xff]
  %v24 = vld [vmem:[%s1 + $0x30] sm:$0xff]
  %v25 = vld [vmem:[%s1 + $0x38] sm:$0xff]
  %v26 = vld [vmem:[%s1 + $0x40] sm:$0xff]
  %v27 = vld [vmem:[%s1 + $0x48] sm:$0xff]
  %v28 = vld [vmem:[%s1 + $0x50] sm:$0xff]
  %v29 = vld [vmem:[%s1 + $0x58] sm:$0xff]
  %v30 = vld [vmem:[%s1 + $0x60] sm:$0xff]
  %v31 = vld [vmem:[%s1 + $0x68] sm:$0xff]
  %v32 = vld [vmem:[%s1 + $0x70] sm:$0xff]
  %v33 = vld [vmem:[%s1 + $0x78] sm:$0xff]
  %v34 = vld [vmem:[%s1 + $0x80] sm:$0xff]
  %v35 = vld [vmem:[%s1 + $0x88] sm:$0xff]
  %v36 = vld [vmem:[%s1 + $0x90] sm:$0xff]
  %v37 = vld [vmem:[%s1 + $0x98] sm:$0xff]
  %v38 = vld [vmem:[%s1 + $0xa0] sm:$0xff]
  %v39 = vld [vmem:[%s1 + $0xa8] sm:$0xff]
  %v40 = vld [vmem:[%s1 + $0xb0] sm:$0xff]
  %v41 = vld [vmem:[%s1 + $0xb8] sm:$0xff]
  %v42 = vld [vmem:[%s1 + $0xc0] sm:$0xff]
  %v43 = vld [vmem:[%s1 + $0xc8] sm:$0xff]
  %v44 = vld [vmem:[%s1 + $0xd0] sm:$0xff]
  %v45 = vld [vmem:[%s1 + $0xd8] sm:$0xff]
  %v46 = vld [vmem:[%s1 + $0xe0] sm:$0xff]
  %v47 = vld [vmem:[%s1 + $0xe8] sm:$0xff]
  %v48 = vld [vmem:[%s1 + $0xf0] sm:$0xff]
  %v49 = vld [vmem:[%s1 + $0xf8] sm:$0xff]
  %v50 = vld [vmem:[%s1 + $0x100] sm:$0xff]
  %v51 = vld [vmem:[%s1 + $0x108] sm:$0xff]
  %v52 = vld [vmem:[%s1 + $0x110] sm:$0xff]
  %v53 = vld [vmem:[%s1 + $0x118] sm:$0xff]
  %v54 = vld [vmem:[%s1 + $0x120] sm:$0xff]
  %v55 = vld [vmem:[%s1 + $0x128] sm:$0xff]
  %v56 = vld [vmem:[%s1 + $0x130] sm:$0xff]
  %v57 = vld [vmem:[%s1 + $0x138] sm:$0xff]
  %v58 = vld [vmem:[%s1 + $0x140] sm:$0xff]
  %v59 = vld [vmem:[%s1 + $0x148] sm:$0xff]
  %v60 = vld [vmem:[%s1 + $0x150] sm:$0xff]
  %v61 = vld [vmem:[%s1 + $0x158] sm:$0xff]
  %v62 = vld [vmem:[%s1 + $0x160] sm:$0xff]
  %v63 = vld [vmem:[%s1 + $0x168] sm:$0xff]
  %v64 = vld [vmem:[%s1 + $0x170] sm:$0xff]
  %v65 = vld [vmem:[%s1 + $0x178] sm:$0xff]
  %v66 = vld [vmem:[%s1 + $0x180] sm:$0xff]
  %v67 = vld [vmem:[%s1 + $0x188] sm:$0xff]
  %v68 = vld [vmem:[%s1 + $0x190] sm:$0xff]
  %v69 = vld [vmem:[%s1 + $0x198] sm:$0xff]
  %v70 = vld [vmem:[%s1 + $0x1a0] sm:$0xff]
  %v71 = vld [vmem:[%s1 + $0x1a8] sm:$0xff]
  %v72 = vld [vmem:[%s1 + $0x1b0] sm:$0xff]
  %v73 = vld [vmem:[%s1 + $0x1b8] sm:$0xff]
  %v74 = vld [vmem:[%s1 + $0x1c0] sm:$0xff]
  %v75 = vld [vmem:[%s1 + $0x1c8] sm:$0xff]
  %v76 = vld [vmem:[%s1 + $0x1d0] sm:$0xff]
  %v77 = vld [vmem:[%s1 + $0x1d8] sm:$0xff]
  %v78 = vld [vmem:[%s1 + $0x1e0] sm:$0xff]
  %v79 = vld [vmem:[%s1 + $0x1e8] sm:$0xff]
  %v80 = vld [vmem:[%s1 + $0x1f0] sm:$0xff]
  %v81 = vld [vmem:[%s1 + $0x1f8] sm:$0xff]
  %v82 = vld [vmem:[%s1 + $0x200] sm:$0xff]
  %v83 = vld [vmem:[%s1 + $0x208] sm:$0xff]
  %v84 = vld [vmem:[%s1 + $0x210] sm:$0xff]
  %v85 = vld [vmem:[%s1 + $0x218] sm:$0xff]
  %v86 = vld [vmem:[%s1 + $0x220] sm:$0xff]
  %v87 = vld [vmem:[%s1 + $0x228] sm:$0xff]
  %v88 = vld [vmem:[%s1 + $0x230] sm:$0xff]
  %v89 = vld [vmem:[%s1 + $0x238] sm:$0xff]
  %v90 = vld [vmem:[%s1 + $0x240] sm:$0xff]
  %v91 = vld [vmem:[%s1 + $0x248] sm:$0xff]
  %v92 = vld [vmem:[%s1 + $0x250] sm:$0xff]
  %v93 = vld [vmem:[%s1 + $0x258] sm:$0xff]
  %v94 = vld [vmem:[%s1 + $0x260] sm:$0xff]
  %v95 = vld [vmem:[%s1 + $0x268] sm:$0xff]
  %v96 = vld [vmem:[%s1 + $0x270] sm:$0xff]
  %v97 = vld [vmem:[%s1 + $0x278] sm:$0xff]
  %v98 = vld [vmem:[%s1 + $0x280] sm:$0xff]
  %v99 = vld [vmem:[%s1 + $0x288] sm:$0xff]
  %v100 = vld [vmem:[%s1 + $0x290] sm:$0xff]
  %v101 = vld [vmem:[%s1 + $0x298] sm:$0xff]
  %v102 = vld [vmem:[%s1 + $0x2a0] sm:$0xff]
  %v103 = vld [vmem:[%s1 + $0x2a8] sm:$0xff]
  %v104 = vld [vmem:[%s1 + $0x2b0] sm:$0xff]
  %v105 = vld [vmem:[%s1 + $0x2b8] sm:$0xff]
  %v106 = vld [vmem:[%s1 + $0x2c0] sm:$0xff]
  %v107 = vld [vmem:[%s1 + $0x2c8] sm:$0xff]
  %v108 = vld [vmem:[%s1 + $0x2d0] sm:$0xff]
  %v109 = vld [vmem:[%s1 + $0x2d8] sm:$0xff]
  %v110 = vld [vmem:[%s1 + $0x2e0] sm:$0xff]
  %v111 = vld [vmem:[%s1 + $0x2e8] sm:$0xff]
  %v112 = vld [vmem:[%s1 + $0x2f0] sm:$0xff]
  %v113 = vld [vmem:[%s1 + $0x2f8] sm:$0xff]
  %v114 = vld [vmem:[%s1 + $0x300] sm:$0xff]
  %v115 = vld [vmem:[%s1 + $0x308] sm:$0xff]
  %v116 = vld [vmem:[%s1 + $0x310] sm:$0xff]
  %v117 = vld [vmem:[%s1 + $0x318] sm:$0xff]
  %v118 = vld [vmem:[%s1 + $0x320] sm:$0xff]
  %v119 = vld [vmem:[%s1 + $0x328] sm:$0xff]
  %v120 = vld [vmem:[%s1 + $0x330] sm:$0xff]
  %v121 = vld [vmem:[%s1 + $0x338] sm:$0xff]
  %v122 = vld [vmem:[%s1 + $0x340] sm:$0xff]
  %v123 = vld [vmem:[%s1 + $0x348] sm:$0xff]
  %v124 = vld [vmem:[%s1 + $0x350] sm:$0xff]
  %v125 = vld [vmem:[%s1 + $0x358] sm:$0xff]
  %v126 = vld [vmem:[%s1 + $0x360] sm:$0xff]
  %v127 = vld [vmem:[%s1 + $0x368] sm:$0xff]
  %v128 = vld [vmem:[%s1 + $0x370] sm:$0xff]
  %v129 = vld [vmem:[%s1 + $0x378] sm:$0xff]
  %v130 = vld [vmem:[%s1 + $0x380] sm:$0xff]
  %v131 = vld [vmem:[%s1 + $0x388] sm:$0xff]
  %v132 = vld [vmem:[%s1 + $0x390] sm:$0xff]
  %v133 = vld [vmem:[%s1 + $0x398] sm:$0xff]
  %v134 = vld [vmem:[%s1 + $0x3a0] sm:$0xff]
  %v135 = vld [vmem:[%s1 + $0x3a8] sm:$0xff]
  %v136 = vld [vmem:[%s1 + $0x3b0] sm:$0xff]
  %v137 = vld [vmem:[%s1 + $0x3b8] sm:$0xff]
  %v138 = vld [vmem:[%s1 + $0x3c0] sm:$0xff]
  %v139 = vld [vmem:[%s1 + $0x3c8] sm:$0xff]
  %v140 = vld [vmem:[%s1 + $0x3d0] sm:$0xff]
  %v141 = vld [vmem:[%s1 + $0x3d8] sm:$0xff]
  %v142 = vld [vmem:[%s1 + $0x3e0] sm:$0xff]
  %v143 = vld [vmem:[%s1 + $0x3e8] sm:$0xff]
  %v144 = vld [vmem:[%s1 + $0x3f0] sm:$0xff]
  %v145 = vld [vmem:[%s1 + $0x3f8] sm:$0xff]
  %v146 = vld [vmem:[%s1 + $0x400] sm:$0xff]
  %v147 = vld [vmem:[%s1 + $0x408] sm:$0xff]
  %v148 = vld [vmem:[%s1 + $0x410] sm:$0xff]
  %v149 = vld [vmem:[%s1 + $0x418] sm:$0xff]
  %v150 = vld [vmem:[%s1 + $0x420] sm:$0xff]
  %v151 = vld [vmem:[%s1 + $0x428] sm:$0xff]
  %v152 = vld [vmem:[%s1 + $0x430] sm:$0xff]
  %v153 = vld [vmem:[%s1 + $0x438] sm:$0xff]
  %v154 = vld [vmem:[%s1 + $0x440] sm:$0xff]
  %v155 = vld [vmem:[%s1 + $0x448] sm:$0xff]
  %v156 = vld [vmem:[%s1 + $0x450] sm:$0xff]
  %v157 = vld [vmem:[%s1 + $0x458] sm:$0xff]
  %v158 = vld [vmem:[%s1 + $0x460] sm:$0xff]
  %v159 = vld [vmem:[%s1 + $0x468] sm:$0xff]
  %v160 = vld [vmem:[%s1 + $0x470] sm:$0xff]
  %v161 = vld [vmem:[%s1 + $0x478] sm:$0xff]
  %v162 = vld [vmem:[%s2] sm:$0x3]
  %v164 = vlaneseq
  %v165 = vshrl.u32 %v164, 7
  %v166 = vsub.s32 0, %v165
  %v167 = vrot.slane %v162, %v166
  %v168 = vlaneseq
  %v169 = vshrl.u32 %v168, 7
  %v170 = vsub.s32 1, %v169
  %v171 = vrot.slane %v162, %v170
  %v177 = vcombine.high %v15, %v15
  %v179 = vunpack.c.l.s4 1983009808
  %v180 = vunpack.c.0.s8 %v179
  %v181 = vlaneseq
  %v182 = vshrl.u32 %v181, 7
  %v183 = vsub.s32 %v180, %v182
  %v184 = vrot.slane %v15, %v183
  %v186 = vunpack.c.l.s4 1983009808
  %v187 = vunpack.c.0.s8 %v186
  %v188 = vlaneseq
  %v189 = vshrl.u32 %v188, 7
  %v190 = vsub.s32 %v187, %v189
  %v191 = vrot.slane %v177, %v190
  %v192 = vcombine.high %v184, %v184
  %v193 = vcombine.high %v191, %v191
  %v194 = vcombine.high %v16, %v16
  %v196 = vunpack.c.l.s4 1983009808
  %v197 = vunpack.c.0.s8 %v196
  %v198 = vlaneseq
  %v199 = vshrl.u32 %v198, 7
  %v200 = vsub.s32 %v197, %v199
  %v201 = vrot.slane %v16, %v200
  %v203 = vunpack.c.l.s4 1983009808
  %v204 = vunpack.c.0.s8 %v203
  %v205 = vlaneseq
  %v206 = vshrl.u32 %v205, 7
  %v207 = vsub.s32 %v204, %v206
  %v208 = vrot.slane %v194, %v207
  %v209 = vcombine.high %v201, %v201
  %v210 = vcombine.high %v208, %v208
  %v212 = vunpack.c.l.s4 1983009808
  %v213 = vunpack.c.0.s8 %v212
  %v214 = vlaneseq
  %v215 = vshrl.u32 %v214, 7
  %v216 = vsub.s32 %v213, %v215
  %v217 = vrot.slane %v17, %v216
  %v371 = vunpack.c.l.b16 %v18
  %v372 = vunpack.c.h.b16 %v18
  %v373 = vunpack.c.l.b16 %v19
  %v374 = vunpack.c.h.b16 %v19
  %v375 = vunpack.c.l.b16 %v20
  %v376 = vunpack.c.h.b16 %v20
  %v377 = vunpack.c.l.b16 %v21
  %v378 = vunpack.c.h.b16 %v21
  %v379 = vunpack.c.l.b16 %v22
  %v380 = vunpack.c.h.b16 %v22
  %v381 = vunpack.c.l.b16 %v23
  %v382 = vunpack.c.h.b16 %v23
  %v383 = vunpack.c.l.b16 %v24
  %v384 = vunpack.c.h.b16 %v24
  %v385 = vunpack.c.l.b16 %v25
  %v386 = vunpack.c.h.b16 %v25
  %v387 = vunpack.c.l.b16 %v26
  %v388 = vunpack.c.h.b16 %v26
  %v389 = vunpack.c.l.b16 %v27
  %v390 = vunpack.c.h.b16 %v27
  %v391 = vunpack.c.l.b16 %v28
  %v392 = vunpack.c.h.b16 %v28
  %v393 = vunpack.c.l.b16 %v29
  %v394 = vunpack.c.h.b16 %v29
  %v395 = vunpack.c.l.b16 %v30
  %v396 = vunpack.c.h.b16 %v30
  %v397 = vunpack.c.l.b16 %v31
  %v398 = vunpack.c.h.b16 %v31
  %v399 = vunpack.c.l.b16 %v32
  %v400 = vunpack.c.h.b16 %v32
  %v401 = vunpack.c.l.b16 %v33
  %v402 = vunpack.c.h.b16 %v33
  %v403 = vunpack.c.l.b16 %v34
  %v404 = vunpack.c.h.b16 %v34
  %v405 = vunpack.c.l.b16 %v35
  %v406 = vunpack.c.h.b16 %v35
  %v407 = vunpack.c.l.b16 %v36
  %v408 = vunpack.c.h.b16 %v36
  %v409 = vunpack.c.l.b16 %v37
  %v410 = vunpack.c.h.b16 %v37
  %v411 = vunpack.c.l.b16 %v38
  %v412 = vunpack.c.h.b16 %v38
  %v413 = vunpack.c.l.b16 %v39
  %v414 = vunpack.c.h.b16 %v39
  %v415 = vunpack.c.l.b16 %v40
  %v416 = vunpack.c.h.b16 %v40
  %v417 = vunpack.c.l.b16 %v41
  %v418 = vunpack.c.h.b16 %v41
  %v419 = vunpack.c.l.b16 %v42
  %v420 = vunpack.c.h.b16 %v42
  %v421 = vunpack.c.l.b16 %v43
  %v422 = vunpack.c.h.b16 %v43
  %v423 = vunpack.c.l.b16 %v44
  %v424 = vunpack.c.h.b16 %v44
  %v425 = vunpack.c.l.b16 %v45
  %v426 = vunpack.c.h.b16 %v45
  %v427 = vunpack.c.l.b16 %v46
  %v428 = vunpack.c.h.b16 %v46
  %v429 = vunpack.c.l.b16 %v47
  %v430 = vunpack.c.h.b16 %v47
  %v431 = vunpack.c.l.b16 %v48
  %v432 = vunpack.c.h.b16 %v48
  %v433 = vunpack.c.l.b16 %v49
  %v434 = vunpack.c.h.b16 %v49
  %v435 = vunpack.c.l.b16 %v50
  %v436 = vunpack.c.h.b16 %v50
  %v437 = vunpack.c.l.b16 %v51
  %v438 = vunpack.c.h.b16 %v51
  %v439 = vunpack.c.l.b16 %v52
  %v440 = vunpack.c.h.b16 %v52
  %v441 = vunpack.c.l.b16 %v53
  %v442 = vunpack.c.h.b16 %v53
  %v443 = vunpack.c.l.b16 %v54
  %v444 = vunpack.c.h.b16 %v54
  %v445 = vunpack.c.l.b16 %v55
  %v446 = vunpack.c.h.b16 %v55
  %v447 = vunpack.c.l.b16 %v56
  %v448 = vunpack.c.h.b16 %v56
  %v449 = vunpack.c.l.b16 %v57
  %v450 = vunpack.c.h.b16 %v57
  %v451 = vunpack.c.l.b16 %v58
  %v452 = vunpack.c.h.b16 %v58
  %v453 = vunpack.c.l.b16 %v59
  %v454 = vunpack.c.h.b16 %v59
  %v455 = vunpack.c.l.b16 %v60
  %v456 = vunpack.c.h.b16 %v60
  %v457 = vunpack.c.l.b16 %v61
  %v458 = vunpack.c.h.b16 %v61
  %v459 = vunpack.c.l.b16 %v62
  %v460 = vunpack.c.h.b16 %v62
  %v461 = vunpack.c.l.b16 %v63
  %v462 = vunpack.c.h.b16 %v63
  %v463 = vunpack.c.l.b16 %v64
  %v464 = vunpack.c.h.b16 %v64
  %v465 = vunpack.c.l.b16 %v65
  %v466 = vunpack.c.h.b16 %v65
  %v467 = vunpack.c.l.b16 %v66
  %v468 = vunpack.c.h.b16 %v66
  %v469 = vunpack.c.l.b16 %v67
  %v470 = vunpack.c.h.b16 %v67
  %v471 = vunpack.c.l.b16 %v68
  %v472 = vunpack.c.h.b16 %v68
  %v473 = vunpack.c.l.b16 %v69
  %v474 = vunpack.c.h.b16 %v69
  %v475 = vunpack.c.l.b16 %v70
  %v476 = vunpack.c.h.b16 %v70
  %v477 = vunpack.c.l.b16 %v71
  %v478 = vunpack.c.h.b16 %v71
  %v479 = vunpack.c.l.b16 %v72
  %v480 = vunpack.c.h.b16 %v72
  %v481 = vunpack.c.l.b16 %v73
  %v482 = vunpack.c.h.b16 %v73
  %v483 = vunpack.c.l.b16 %v74
  %v484 = vunpack.c.h.b16 %v74
  %v485 = vunpack.c.l.b16 %v75
  %v486 = vunpack.c.h.b16 %v75
  %v487 = vunpack.c.l.b16 %v76
  %v488 = vunpack.c.h.b16 %v76
  %v489 = vunpack.c.l.b16 %v77
  %v490 = vunpack.c.h.b16 %v77
  %v491 = vunpack.c.l.b16 %v78
  %v492 = vunpack.c.h.b16 %v78
  %v493 = vunpack.c.l.b16 %v79
  %v494 = vunpack.c.h.b16 %v79
  %v495 = vunpack.c.l.b16 %v80
  %v496 = vunpack.c.h.b16 %v80
  %v497 = vunpack.c.l.b16 %v81
  %v498 = vunpack.c.h.b16 %v81
  %v499 = vunpack.c.l.b16 %v82
  %v500 = vunpack.c.h.b16 %v82
  %v501 = vunpack.c.l.b16 %v83
  %v502 = vunpack.c.h.b16 %v83
  %v503 = vunpack.c.l.b16 %v84
  %v504 = vunpack.c.h.b16 %v84
  %v505 = vunpack.c.l.b16 %v85
  %v506 = vunpack.c.h.b16 %v85
  %v507 = vunpack.c.l.b16 %v86
  %v508 = vunpack.c.h.b16 %v86
  %v509 = vunpack.c.l.b16 %v87
  %v510 = vunpack.c.h.b16 %v87
  %v511 = vunpack.c.l.b16 %v88
  %v512 = vunpack.c.h.b16 %v88
  %v513 = vunpack.c.l.b16 %v89
  %v514 = vunpack.c.h.b16 %v89
  %v515 = vunpack.c.l.b16 %v90
  %v516 = vunpack.c.h.b16 %v90
  %v517 = vunpack.c.l.b16 %v91
  %v518 = vunpack.c.h.b16 %v91
  %v519 = vunpack.c.l.b16 %v92
  %v520 = vunpack.c.h.b16 %v92
  %v521 = vunpack.c.l.b16 %v93
  %v522 = vunpack.c.h.b16 %v93
  %v523 = vunpack.c.l.b16 %v94
  %v524 = vunpack.c.h.b16 %v94
  %v525 = vunpack.c.l.b16 %v95
  %v526 = vunpack.c.h.b16 %v95
  %v527 = vunpack.c.l.b16 %v96
  %v528 = vunpack.c.h.b16 %v96
  %v529 = vunpack.c.l.b16 %v97
  %v530 = vunpack.c.h.b16 %v97
  %v531 = vunpack.c.l.b16 %v98
  %v532 = vunpack.c.h.b16 %v98
  %v533 = vunpack.c.l.b16 %v99
  %v534 = vunpack.c.h.b16 %v99
  %v535 = vunpack.c.l.b16 %v100
  %v536 = vunpack.c.h.b16 %v100
  %v537 = vunpack.c.l.b16 %v101
  %v538 = vunpack.c.h.b16 %v101
  %v539 = vunpack.c.l.b16 %v102
  %v540 = vunpack.c.h.b16 %v102
  %v541 = vunpack.c.l.b16 %v103
  %v542 = vunpack.c.h.b16 %v103
  %v543 = vunpack.c.l.b16 %v104
  %v544 = vunpack.c.h.b16 %v104
  %v545 = vunpack.c.l.b16 %v105
  %v546 = vunpack.c.h.b16 %v105
  %v547 = vunpack.c.l.b16 %v106
  %v548 = vunpack.c.h.b16 %v106
  %v549 = vunpack.c.l.b16 %v107
  %v550 = vunpack.c.h.b16 %v107
  %v551 = vunpack.c.l.b16 %v108
  %v552 = vunpack.c.h.b16 %v108
  %v553 = vunpack.c.l.b16 %v109
  %v554 = vunpack.c.h.b16 %v109
  %v555 = vunpack.c.l.b16 %v110
  %v556 = vunpack.c.h.b16 %v110
  %v557 = vunpack.c.l.b16 %v111
  %v558 = vunpack.c.h.b16 %v111
  %v559 = vunpack.c.l.b16 %v112
  %v560 = vunpack.c.h.b16 %v112
  %v561 = vunpack.c.l.b16 %v113
  %v562 = vunpack.c.h.b16 %v113
  %v563 = vunpack.c.l.b16 %v114
  %v564 = vunpack.c.h.b16 %v114
  %v565 = vunpack.c.l.b16 %v115
  %v566 = vunpack.c.h.b16 %v115
  %v567 = vunpack.c.l.b16 %v116
  %v568 = vunpack.c.h.b16 %v116
  %v569 = vunpack.c.l.b16 %v117
  %v570 = vunpack.c.h.b16 %v117
  %v571 = vunpack.c.l.b16 %v118
  %v572 = vunpack.c.h.b16 %v118
  %v573 = vunpack.c.l.b16 %v119
  %v574 = vunpack.c.h.b16 %v119
  %v575 = vunpack.c.l.b16 %v120
  %v576 = vunpack.c.h.b16 %v120
  %v577 = vunpack.c.l.b16 %v121
  %v578 = vunpack.c.h.b16 %v121
  %v579 = vunpack.c.l.b16 %v122
  %v580 = vunpack.c.h.b16 %v122
  %v581 = vunpack.c.l.b16 %v123
  %v582 = vunpack.c.h.b16 %v123
  %v583 = vunpack.c.l.b16 %v124
  %v584 = vunpack.c.h.b16 %v124
  %v585 = vunpack.c.l.b16 %v125
  %v586 = vunpack.c.h.b16 %v125
  %v587 = vunpack.c.l.b16 %v126
  %v588 = vunpack.c.h.b16 %v126
  %v589 = vunpack.c.l.b16 %v127
  %v590 = vunpack.c.h.b16 %v127
  %v591 = vunpack.c.l.b16 %v128
  %v592 = vunpack.c.h.b16 %v128
  %v593 = vunpack.c.l.b16 %v129
  %v594 = vunpack.c.h.b16 %v129
  %v595 = vunpack.c.l.b16 %v130
  %v596 = vunpack.c.h.b16 %v130
  %v597 = vunpack.c.l.b16 %v131
  %v598 = vunpack.c.h.b16 %v131
  %v599 = vunpack.c.l.b16 %v132
  %v600 = vunpack.c.h.b16 %v132
  %v601 = vunpack.c.l.b16 %v133
  %v602 = vunpack.c.h.b16 %v133
  %v603 = vunpack.c.l.b16 %v134
  %v604 = vunpack.c.h.b16 %v134
  %v605 = vunpack.c.l.b16 %v135
  %v606 = vunpack.c.h.b16 %v135
  %v607 = vunpack.c.l.b16 %v136
  %v608 = vunpack.c.h.b16 %v136
  %v609 = vunpack.c.l.b16 %v137
  %v610 = vunpack.c.h.b16 %v137
  %v611 = vunpack.c.l.b16 %v138
  %v612 = vunpack.c.h.b16 %v138
  %v613 = vunpack.c.l.b16 %v139
  %v614 = vunpack.c.h.b16 %v139
  %v615 = vunpack.c.l.b16 %v140
  %v616 = vunpack.c.h.b16 %v140
  %v617 = vunpack.c.l.b16 %v141
  %v618 = vunpack.c.h.b16 %v141
  %v619 = vunpack.c.l.b16 %v142
  %v620 = vunpack.c.h.b16 %v142
  %v621 = vunpack.c.l.b16 %v143
  %v622 = vunpack.c.h.b16 %v143
  %v623 = vunpack.c.l.b16 %v144
  %v624 = vunpack.c.h.b16 %v144
  %v625 = vunpack.c.l.b16 %v145
  %v626 = vunpack.c.h.b16 %v145
  %v627 = vunpack.c.l.b16 %v146
  %v628 = vunpack.c.h.b16 %v146
  %v629 = vunpack.c.l.b16 %v147
  %v630 = vunpack.c.h.b16 %v147
  %v631 = vunpack.c.l.b16 %v148
  %v632 = vunpack.c.h.b16 %v148
  %v633 = vunpack.c.l.b16 %v149
  %v634 = vunpack.c.h.b16 %v149
  %v635 = vunpack.c.l.b16 %v150
  %v636 = vunpack.c.h.b16 %v150
  %v637 = vunpack.c.l.b16 %v151
  %v638 = vunpack.c.h.b16 %v151
  %v639 = vunpack.c.l.b16 %v152
  %v640 = vunpack.c.h.b16 %v152
  %v641 = vunpack.c.l.b16 %v153
  %v642 = vunpack.c.h.b16 %v153
  %v643 = vunpack.c.l.b16 %v154
  %v644 = vunpack.c.h.b16 %v154
  %v645 = vunpack.c.l.b16 %v155
  %v646 = vunpack.c.h.b16 %v155
  %v647 = vunpack.c.l.b16 %v156
  %v648 = vunpack.c.h.b16 %v156
  %v649 = vunpack.c.l.b16 %v157
  %v650 = vunpack.c.h.b16 %v157
  %v651 = vunpack.c.l.b16 %v158
  %v652 = vunpack.c.h.b16 %v158
  %v653 = vunpack.c.l.b16 %v159
  %v654 = vunpack.c.h.b16 %v159
  %v655 = vunpack.c.l.b16 %v160
  %v656 = vunpack.c.h.b16 %v160
  %v657 = vunpack.c.l.b16 %v161
  %v658 = vunpack.c.h.b16 %v161
  %v659 = vpack.c.b16 %v373, %v371
  %v660 = vpack.c.b16 %v374, %v372
  %v661 = vpack.c.b16 %v377, %v375
  %v662 = vpack.c.b16 %v378, %v376
  %v663 = vpack.c.b16 %v381, %v379
  %v664 = vpack.c.b16 %v382, %v380
  %v665 = vpack.c.b16 %v385, %v383
  %v666 = vpack.c.b16 %v386, %v384
  %v667 = vpack.c.b16 %v389, %v387
  %v668 = vpack.c.b16 %v390, %v388
  %v669 = vpack.c.b16 %v393, %v391
  %v670 = vpack.c.b16 %v394, %v392
  %v671 = vpack.c.b16 %v397, %v395
  %v672 = vpack.c.b16 %v398, %v396
  %v673 = vpack.c.b16 %v401, %v399
  %v674 = vpack.c.b16 %v402, %v400
  %v675 = vpack.c.b16 %v405, %v403
  %v676 = vpack.c.b16 %v406, %v404
  %v677 = vpack.c.b16 %v409, %v407
  %v678 = vpack.c.b16 %v410, %v408
  %v679 = vpack.c.b16 %v413, %v411
  %v680 = vpack.c.b16 %v414, %v412
  %v681 = vpack.c.b16 %v417, %v415
  %v682 = vpack.c.b16 %v418, %v416
  %v683 = vpack.c.b16 %v421, %v419
  %v684 = vpack.c.b16 %v422, %v420
  %v685 = vpack.c.b16 %v425, %v423
  %v686 = vpack.c.b16 %v426, %v424
  %v687 = vpack.c.b16 %v429, %v427
  %v688 = vpack.c.b16 %v430, %v428
  %v689 = vpack.c.b16 %v433, %v431
  %v690 = vpack.c.b16 %v434, %v432
  %v691 = vpack.c.b16 %v437, %v435
  %v692 = vpack.c.b16 %v438, %v436
  %v693 = vpack.c.b16 %v441, %v439
  %v694 = vpack.c.b16 %v442, %v440
  %v695 = vpack.c.b16 %v445, %v443
  %v696 = vpack.c.b16 %v446, %v444
  %v697 = vpack.c.b16 %v449, %v447
  %v698 = vpack.c.b16 %v450, %v448
  %v699 = vpack.c.b16 %v453, %v451
  %v700 = vpack.c.b16 %v454, %v452
  %v701 = vpack.c.b16 %v457, %v455
  %v702 = vpack.c.b16 %v458, %v456
  %v703 = vpack.c.b16 %v461, %v459
  %v704 = vpack.c.b16 %v462, %v460
  %v705 = vpack.c.b16 %v465, %v463
  %v706 = vpack.c.b16 %v466, %v464
  %v707 = vpack.c.b16 %v469, %v467
  %v708 = vpack.c.b16 %v470, %v468
  %v709 = vpack.c.b16 %v473, %v471
  %v710 = vpack.c.b16 %v474, %v472
  %v711 = vpack.c.b16 %v477, %v475
  %v712 = vpack.c.b16 %v478, %v476
  %v713 = vpack.c.b16 %v481, %v479
  %v714 = vpack.c.b16 %v482, %v480
  %v715 = vpack.c.b16 %v485, %v483
  %v716 = vpack.c.b16 %v486, %v484
  %v717 = vpack.c.b16 %v489, %v487
  %v718 = vpack.c.b16 %v490, %v488
  %v719 = vpack.c.b16 %v493, %v491
  %v720 = vpack.c.b16 %v494, %v492
  %v721 = vpack.c.b16 %v497, %v495
  %v722 = vpack.c.b16 %v498, %v496
  %v723 = vpack.c.b16 %v501, %v499
  %v724 = vpack.c.b16 %v502, %v500
  %v725 = vpack.c.b16 %v505, %v503
  %v726 = vpack.c.b16 %v506, %v504
  %v727 = vpack.c.b16 %v509, %v507
  %v728 = vpack.c.b16 %v510, %v508
  %v729 = vpack.c.b16 %v513, %v511
  %v730 = vpack.c.b16 %v514, %v512
  %v731 = vpack.c.b16 %v517, %v515
  %v732 = vpack.c.b16 %v518, %v516
  %v733 = vpack.c.b16 %v521, %v519
  %v734 = vpack.c.b16 %v522, %v520
  %v735 = vpack.c.b16 %v525, %v523
  %v736 = vpack.c.b16 %v526, %v524
  %v737 = vpack.c.b16 %v529, %v527
  %v738 = vpack.c.b16 %v530, %v528
  %v739 = vpack.c.b16 %v533, %v531
  %v740 = vpack.c.b16 %v534, %v532
  %v741 = vpack.c.b16 %v537, %v535
  %v742 = vpack.c.b16 %v538, %v536
  %v743 = vpack.c.b16 %v541, %v539
  %v744 = vpack.c.b16 %v542, %v540
  %v745 = vpack.c.b16 %v545, %v543
  %v746 = vpack.c.b16 %v546, %v544
  %v747 = vpack.c.b16 %v549, %v547
  %v748 = vpack.c.b16 %v550, %v548
  %v749 = vpack.c.b16 %v553, %v551
  %v750 = vpack.c.b16 %v554, %v552
  %v751 = vpack.c.b16 %v557, %v555
  %v752 = vpack.c.b16 %v558, %v556
  %v753 = vpack.c.b16 %v561, %v559
  %v754 = vpack.c.b16 %v562, %v560
  %v755 = vpack.c.b16 %v565, %v563
  %v756 = vpack.c.b16 %v566, %v564
  %v757 = vpack.c.b16 %v569, %v567
  %v758 = vpack.c.b16 %v570, %v568
  %v759 = vpack.c.b16 %v573, %v571
  %v760 = vpack.c.b16 %v574, %v572
  %v761 = vpack.c.b16 %v577, %v575
  %v762 = vpack.c.b16 %v578, %v576
  %v763 = vpack.c.b16 %v581, %v579
  %v764 = vpack.c.b16 %v582, %v580
  %v765 = vpack.c.b16 %v585, %v583
  %v766 = vpack.c.b16 %v586, %v584
  %v767 = vpack.c.b16 %v589, %v587
  %v768 = vpack.c.b16 %v590, %v588
  %v769 = vpack.c.b16 %v593, %v591
  %v770 = vpack.c.b16 %v594, %v592
  %v771 = vpack.c.b16 %v597, %v595
  %v772 = vpack.c.b16 %v598, %v596
  %v773 = vpack.c.b16 %v601, %v599
  %v774 = vpack.c.b16 %v602, %v600
  %v775 = vpack.c.b16 %v605, %v603
  %v776 = vpack.c.b16 %v606, %v604
  %v777 = vpack.c.b16 %v609, %v607
  %v778 = vpack.c.b16 %v610, %v608
  %v779 = vpack.c.b16 %v613, %v611
  %v780 = vpack.c.b16 %v614, %v612
  %v781 = vpack.c.b16 %v617, %v615
  %v782 = vpack.c.b16 %v618, %v616
  %v783 = vpack.c.b16 %v621, %v619
  %v784 = vpack.c.b16 %v622, %v620
  %v785 = vpack.c.b16 %v625, %v623
  %v786 = vpack.c.b16 %v626, %v624
  %v787 = vpack.c.b16 %v629, %v627
  %v788 = vpack.c.b16 %v630, %v628
  %v789 = vpack.c.b16 %v633, %v631
  %v790 = vpack.c.b16 %v634, %v632
  %v791 = vpack.c.b16 %v637, %v635
  %v792 = vpack.c.b16 %v638, %v636
  %v793 = vpack.c.b16 %v641, %v639
  %v794 = vpack.c.b16 %v642, %v640
  %v795 = vpack.c.b16 %v645, %v643
  %v796 = vpack.c.b16 %v646, %v644
  %v797 = vpack.c.b16 %v649, %v647
  %v798 = vpack.c.b16 %v650, %v648
  %v799 = vpack.c.b16 %v653, %v651
  %v800 = vpack.c.b16 %v654, %v652
  %v801 = vpack.c.b16 %v657, %v655
  %v802 = vpack.c.b16 %v658, %v656
  %947 = vmatprep.subr.bf16.mxu0 %v660
  %948 = vmatpush1.bf16.msra.mxu0 %v659
  %949 = vmatprep.subr.bf16.mxu0 %v662
  %950 = vmatpush1.bf16.msra.mxu0 %v661
  %951 = vmatprep.subr.bf16.mxu0 %v664
  %952 = vmatpush1.bf16.msra.mxu0 %v663
  %953 = vmatprep.subr.bf16.mxu0 %v666
  %954 = vmatpush1.bf16.msra.mxu0 %v665
  %955 = vmatprep.subr.bf16.mxu0 %v668
  %956 = vmatpush1.bf16.msra.mxu0 %v667
  %957 = vmatprep.subr.bf16.mxu0 %v670
  %958 = vmatpush1.bf16.msra.mxu0 %v669
  %959 = vmatprep.subr.bf16.mxu0 %v672
  %960 = vmatpush1.bf16.msra.mxu0 %v671
  %961 = vmatprep.subr.bf16.mxu0 %v674
  %962 = vmatpush1.bf16.msra.mxu0 %v673
  %963 = vmatprep.subr.bf16.mxu0 %v676
  %964 = vmatpush1.bf16.msra.mxu0 %v675
  %965 = vmatprep.subr.bf16.mxu0 %v678
  %966 = vmatpush1.bf16.msra.mxu0 %v677
  %967 = vmatprep.subr.bf16.mxu0 %v680
  %968 = vmatpush1.bf16.msra.mxu0 %v679
  %969 = vmatprep.subr.bf16.mxu0 %v682
  %970 = vmatpush1.bf16.msra.mxu0 %v681
  %971 = vmatprep.subr.bf16.mxu0 %v684
  %972 = vmatpush1.bf16.msra.mxu0 %v683
  %973 = vmatprep.subr.bf16.mxu0 %v686
  %974 = vmatpush1.bf16.msra.mxu0 %v685
  %975 = vmatprep.subr.bf16.mxu0 %v688
  %976 = vmatpush1.bf16.msra.mxu0 %v687
  %977 = vmatprep.subr.bf16.mxu0 %v690
  %978 = vmatpush1.bf16.msra.mxu0 %v689
  %979 = vmatprep.mubr.bf16.mxu0 %v192
  %980 = vmatmul.mubr.bf16.gmra.mrb[0].mxu0 %v184
  %v981 = vpop.f32.mrb[0].mxu0
  %v982 = vadd.f32 %v167, %v981
  %v983 = vpop.f32.mrb[0].mxu0
  %v984 = vadd.f32 %v171, %v983
  %v985 = vpop.f32.mrb[0].mxu0
  %v986 = vpop.f32.mrb[0].mxu0
  %987 = vdwg.mxu0
  %988 = vmatprep.subr.bf16.mxu0 %v692
  %989 = vmatpush1.bf16.msra.mxu0 %v691
  %990 = vmatprep.subr.bf16.mxu0 %v694
  %991 = vmatpush1.bf16.msra.mxu0 %v693
  %992 = vmatprep.subr.bf16.mxu0 %v696
  %993 = vmatpush1.bf16.msra.mxu0 %v695
  %994 = vmatprep.subr.bf16.mxu0 %v698
  %995 = vmatpush1.bf16.msra.mxu0 %v697
  %996 = vmatprep.subr.bf16.mxu0 %v700
  %997 = vmatpush1.bf16.msra.mxu0 %v699
  %998 = vmatprep.subr.bf16.mxu0 %v702
  %999 = vmatpush1.bf16.msra.mxu0 %v701
  %1000 = vmatprep.subr.bf16.mxu0 %v704
  %1001 = vmatpush1.bf16.msra.mxu0 %v703
  %1002 = vmatprep.subr.bf16.mxu0 %v706
  %1003 = vmatpush1.bf16.msra.mxu0 %v705
  %1004 = vmatprep.subr.bf16.mxu0 %v708
  %1005 = vmatpush1.bf16.msra.mxu0 %v707
  %1006 = vmatprep.subr.bf16.mxu0 %v710
  %1007 = vmatpush1.bf16.msra.mxu0 %v709
  %1008 = vmatprep.subr.bf16.mxu0 %v712
  %1009 = vmatpush1.bf16.msra.mxu0 %v711
  %1010 = vmatprep.subr.bf16.mxu0 %v714
  %1011 = vmatpush1.bf16.msra.mxu0 %v713
  %1012 = vmatprep.subr.bf16.mxu0 %v716
  %1013 = vmatpush1.bf16.msra.mxu0 %v715
  %1014 = vmatprep.subr.bf16.mxu0 %v718
  %1015 = vmatpush1.bf16.msra.mxu0 %v717
  %1016 = vmatprep.subr.bf16.mxu0 %v720
  %1017 = vmatpush1.bf16.msra.mxu0 %v719
  %1018 = vmatprep.subr.bf16.mxu0 %v722
  %1019 = vmatpush1.bf16.msra.mxu0 %v721
  %1020 = vmatprep.mubr.bf16.mxu0 %v193
  %1021 = vmatmul.mubr.bf16.gmra.mrb[0].mxu0 %v191
  %v1022 = vpop.f32.mrb[0].mxu0
  %v1023 = vadd.f32 %v982, %v1022
  %v1024 = vpop.f32.mrb[0].mxu0
  %v1025 = vadd.f32 %v984, %v1024
  %v1026 = vpop.f32.mrb[0].mxu0
  %v1027 = vpop.f32.mrb[0].mxu0
  %1028 = vdwg.mxu0
  %1029 = vmatprep.subr.bf16.mxu0 %v724
  %1030 = vmatpush1.bf16.msra.mxu0 %v723
  %1031 = vmatprep.subr.bf16.mxu0 %v726
  %1032 = vmatpush1.bf16.msra.mxu0 %v725
  %1033 = vmatprep.subr.bf16.mxu0 %v728
  %1034 = vmatpush1.bf16.msra.mxu0 %v727
  %1035 = vmatprep.subr.bf16.mxu0 %v730
  %1036 = vmatpush1.bf16.msra.mxu0 %v729
  %1037 = vmatprep.subr.bf16.mxu0 %v732
  %1038 = vmatpush1.bf16.msra.mxu0 %v731
  %1039 = vmatprep.subr.bf16.mxu0 %v734
  %1040 = vmatpush1.bf16.msra.mxu0 %v733
  %1041 = vmatprep.subr.bf16.mxu0 %v736
  %1042 = vmatpush1.bf16.msra.mxu0 %v735
  %1043 = vmatprep.subr.bf16.mxu0 %v738
  %1044 = vmatpush1.bf16.msra.mxu0 %v737
  %1045 = vmatprep.subr.bf16.mxu0 %v740
  %1046 = vmatpush1.bf16.msra.mxu0 %v739
  %1047 = vmatprep.subr.bf16.mxu0 %v742
  %1048 = vmatpush1.bf16.msra.mxu0 %v741
  %1049 = vmatprep.subr.bf16.mxu0 %v744
  %1050 = vmatpush1.bf16.msra.mxu0 %v743
  %1051 = vmatprep.subr.bf16.mxu0 %v746
  %1052 = vmatpush1.bf16.msra.mxu0 %v745
  %1053 = vmatprep.subr.bf16.mxu0 %v748
  %1054 = vmatpush1.bf16.msra.mxu0 %v747
  %1055 = vmatprep.subr.bf16.mxu0 %v750
  %1056 = vmatpush1.bf16.msra.mxu0 %v749
  %1057 = vmatprep.subr.bf16.mxu0 %v752
  %1058 = vmatpush1.bf16.msra.mxu0 %v751
  %1059 = vmatprep.subr.bf16.mxu0 %v754
  %1060 = vmatpush1.bf16.msra.mxu0 %v753
  %1061 = vmatprep.mubr.bf16.mxu0 %v209
  %1062 = vmatmul.mubr.bf16.gmra.mrb[0].mxu0 %v201
  %v1063 = vpop.f32.mrb[0].mxu0
  %v1064 = vadd.f32 %v1023, %v1063
  %v1065 = vpop.f32.mrb[0].mxu0
  %v1066 = vadd.f32 %v1025, %v1065
  %v1067 = vpop.f32.mrb[0].mxu0
  %v1068 = vpop.f32.mrb[0].mxu0
  %1069 = vdwg.mxu0
  %1070 = vmatprep.subr.bf16.mxu0 %v756
  %1071 = vmatpush1.bf16.msra.mxu0 %v755
  %1072 = vmatprep.subr.bf16.mxu0 %v758
  %1073 = vmatpush1.bf16.msra.mxu0 %v757
  %1074 = vmatprep.subr.bf16.mxu0 %v760
  %1075 = vmatpush1.bf16.msra.mxu0 %v759
  %1076 = vmatprep.subr.bf16.mxu0 %v762
  %1077 = vmatpush1.bf16.msra.mxu0 %v761
  %1078 = vmatprep.subr.bf16.mxu0 %v764
  %1079 = vmatpush1.bf16.msra.mxu0 %v763
  %1080 = vmatprep.subr.bf16.mxu0 %v766
  %1081 = vmatpush1.bf16.msra.mxu0 %v765
  %1082 = vmatprep.subr.bf16.mxu0 %v768
  %1083 = vmatpush1.bf16.msra.mxu0 %v767
  %1084 = vmatprep.subr.bf16.mxu0 %v770
  %1085 = vmatpush1.bf16.msra.mxu0 %v769
  %1086 = vmatprep.subr.bf16.mxu0 %v772
  %1087 = vmatpush1.bf16.msra.mxu0 %v771
  %1088 = vmatprep.subr.bf16.mxu0 %v774
  %1089 = vmatpush1.bf16.msra.mxu0 %v773
  %1090 = vmatprep.subr.bf16.mxu0 %v776
  %1091 = vmatpush1.bf16.msra.mxu0 %v775
  %1092 = vmatprep.subr.bf16.mxu0 %v778
  %1093 = vmatpush1.bf16.msra.mxu0 %v777
  %1094 = vmatprep.subr.bf16.mxu0 %v780
  %1095 = vmatpush1.bf16.msra.mxu0 %v779
  %1096 = vmatprep.subr.bf16.mxu0 %v782
  %1097 = vmatpush1.bf16.msra.mxu0 %v781
  %1098 = vmatprep.subr.bf16.mxu0 %v784
  %1099 = vmatpush1.bf16.msra.mxu0 %v783
  %1100 = vmatprep.subr.bf16.mxu0 %v786
  %1101 = vmatpush1.bf16.msra.mxu0 %v785
  %1102 = vmatprep.mubr.bf16.mxu0 %v210
  %1103 = vmatmul.mubr.bf16.gmra.mrb[0].mxu0 %v208
  %v1104 = vpop.f32.mrb[0].mxu0
  %v1105 = vadd.f32 %v1064, %v1104
  %v1106 = vpop.f32.mrb[0].mxu0
  %v1107 = vadd.f32 %v1066, %v1106
  %v1108 = vpop.f32.mrb[0].mxu0
  %v1109 = vpop.f32.mrb[0].mxu0
  %1110 = vdwg.mxu0
  %1111 = vmatprep.subr.bf16.mxu0 %v788
  %1112 = vmatpush1.bf16.msra.mxu0 %v787
  %1113 = vmatprep.subr.bf16.mxu0 %v790
  %1114 = vmatpush1.bf16.msra.mxu0 %v789
  %1115 = vmatprep.subr.bf16.mxu0 %v792
  %1116 = vmatpush1.bf16.msra.mxu0 %v791
  %1117 = vmatprep.subr.bf16.mxu0 %v794
  %1118 = vmatpush1.bf16.msra.mxu0 %v793
  %1119 = vmatprep.subr.bf16.mxu0 %v796
  %1120 = vmatpush1.bf16.msra.mxu0 %v795
  %1121 = vmatprep.subr.bf16.mxu0 %v798
  %1122 = vmatpush1.bf16.msra.mxu0 %v797
  %1123 = vmatprep.subr.bf16.mxu0 %v800
  %1124 = vmatpush1.bf16.msra.mxu0 %v799
  %1125 = vmatprep.subr.bf16.mxu0 %v802
  %1126 = vmatpush1.bf16.msra.mxu0 %v801
  %1127 = vmatprep.subr.bf16.mxu0 0
  %1128 = vmatpush1.bf16.msra.mxu0 0
  %1129 = vmatprep.subr.bf16.mxu0 0
  %1130 = vmatpush1.bf16.msra.mxu0 0
  %1131 = vmatprep.subr.bf16.mxu0 0
  %1132 = vmatpush1.bf16.msra.mxu0 0
  %1133 = vmatprep.subr.bf16.mxu0 0
  %1134 = vmatpush1.bf16.msra.mxu0 0
  %1135 = vmatprep.subr.bf16.mxu0 0
  %1136 = vmatpush1.bf16.msra.mxu0 0
  %1137 = vmatprep.subr.bf16.mxu0 0
  %1138 = vmatpush1.bf16.msra.mxu0 0
  %1139 = vmatprep.subr.bf16.mxu0 0
  %1140 = vmatpush1.bf16.msra.mxu0 0
  %1141 = vmatprep.subr.bf16.mxu0 0
  %1142 = vmatpush1.bf16.msra.mxu0 0
  %1143 = vmatprep.mubr.bf16.mxu0 0
  %1144 = vmatmul.mubr.bf16.gmra.mrb[0].mxu0 %v217
  %v1145 = vpop.f32.mrb[0].mxu0
  %v1146 = vadd.f32 %v1105, %v1145
  %v1147 = vpop.f32.mrb[0].mxu0
  %v1148 = vadd.f32 %v1107, %v1147
  %v1149 = vpop.f32.mrb[0].mxu0
  %v1150 = vpop.f32.mrb[0].mxu0
  %1151 = vdwg.mxu0
  %v1152 = vmax.f32 %v1146, 0.0
  %v1153 = vmax.f32 %v1148, 0.0
  %v1154 = vpack.c.bf16 %v1152, %v1152
  %v1155 = vpack.c.bf16 %v1153, %v1153
  %v1158 = vcombine.low %v1154, %v1155
  %v1160 = vunpack.c.l.s4 1983009808
  %v1161 = vunpack.c.0.s8 %v1160
  %v1162 = vlaneseq
  %v1163 = vshrl.u32 %v1162, 7
  %v1164 = vsub.s32 %v1161, %v1163
  %v1165 = vrot.slane %v1158, %v1164
  %1167 = vst [vmem:[%s3] sm:$0xf] %v1165
  // Predicated region
  $region14: #{encoder_cnn_forward.8} parent=0 // pred_check
    _
  $region15: #{encoder_cnn_forward.8} parent=0 // pred_check_branch
    %1169 = sbr.rel (0) target = $region17
  $region16: #{encoder_cnn_forward.8} parent=0 // pred_region
    _
  $region17: #{encoder_cnn_forward.8} parent=0 // pred_fallthru
    _
  // Predicated region
  $region18: #{encoder_cnn_forward.8} parent=0 // pred_check
    _
  $region19: #{encoder_cnn_forward.8} parent=0 // pred_check_branch
    %1171 = sbr.rel (0) target = $region21
  $region20: #{encoder_cnn_forward.8} parent=0 // pred_region
    _
  $region21: #{encoder_cnn_forward.8} parent=0 // pred_fallthru
    _

</llo_original>
